<compile_context>
chip_gen: v6e
topology: v6e:2x2x1
jax: 0.10.0
libtpu: 0.0.40
codegen_flags: <defaults>
</compile_context>

<pallas_src>
import functools

import jax
import jax.numpy as jnp
from jax.experimental import pallas as pl
from jax.experimental.pallas import tpu as pltpu

# ---------------- config ----------------
B = 2           # batch
S = 8           # sequence length
HID = 128       # hidden size (bert-base uses 768)
NH = 2          # attention heads
DH = HID // NH  # head dim
INTER = 512     # FFN intermediate (bert-base uses 3072)
LAYERS = 2      # bert-base uses 12
VOCAB = 128
TYPE_VOCAB = 2
NCLASS = 16
NPAD = 128      # lane-dense padded classifier output width (first NCLASS lanes valid)
LN_EPS = 1e-12


# ---------------- fused kernel ----------------
def _gelu_tanh(x):
    # TODO(synk): bert-base uses exact erf-GELU; tanh approximation used here.
    c = jnp.sqrt(jnp.float32(2.0 / jnp.pi))
    return 0.5 * x * (1.0 + jnp.tanh(c * (x + 0.044715 * x * x * x)))


def _layernorm(h, g, b):
    mu = jnp.mean(h, axis=-1, keepdims=True)
    d = h - mu
    var = jnp.mean(d * d, axis=-1, keepdims=True)
    return d * jax.lax.rsqrt(var + LN_EPS) * g + b


def bert_fused_kernel(
    emb_ref, mask_ref,                      # per-batch activations
    eg_ref, eb_ref,                         # embedding LN
    wqkv_ref, bqkv_ref, wo_ref, bo_ref,     # attention (stacked over layers)
    ln1g_ref, ln1b_ref,
    w1_ref, b1_ref, w2_ref, b2_ref,         # FFN (stacked over layers)
    ln2g_ref, ln2b_ref,
    poolw_ref, poolb_ref, clsw_ref, clsb_ref,
    out_ref,                                # (1, 1, NPAD) logits slab
    ctx_ref,                                # VMEM scratch (S, HID) for merged attention heads
):
    scale = jnp.float32(1.0 / (DH ** 0.5))
    mask = mask_ref[0]                                          # (1, S) additive key mask

    # embeddings LayerNorm (no residual)
    x = _layernorm(emb_ref[0], eg_ref[...], eb_ref[...])        # (S, HID) f32

    for l in range(LAYERS):                                     # static unroll (LAYERS=2)
        # ---- self attention: fused QKV projection ----
        xb = x.astype(jnp.bfloat16)
        qkv = jnp.dot(xb, wqkv_ref[l],
                      preferred_element_type=jnp.float32) + bqkv_ref[l]   # (S, 3*HID)
        for h in range(NH):                                     # static unroll (NH=2)
            q_h = qkv[:, h * DH:(h + 1) * DH]
            k_h = qkv[:, HID + h * DH:HID + (h + 1) * DH]
            v_h = qkv[:, 2 * HID + h * DH:2 * HID + (h + 1) * DH]
            s = jax.lax.dot_general(
                q_h.astype(jnp.bfloat16), k_h.astype(jnp.bfloat16),
                (((1,), (1,)), ((), ())),
                preferred_element_type=jnp.float32) * scale + mask        # (S, S)
            m = jnp.max(s, axis=-1, keepdims=True)
            p = jnp.exp(s - m)
            p = p / jnp.sum(p, axis=-1, keepdims=True)
            ctx_ref[:, h * DH:(h + 1) * DH] = jnp.dot(
                p.astype(jnp.bfloat16), v_h.astype(jnp.bfloat16),
                preferred_element_type=jnp.float32)
        ctx = ctx_ref[...]                                      # (S, HID)

        # ---- output projection + residual + LN (attention dropout: identity in eval) ----
        attn = jnp.dot(ctx.astype(jnp.bfloat16), wo_ref[l],
                       preferred_element_type=jnp.float32) + bo_ref[l]
        x = _layernorm(attn + x, ln1g_ref[l], ln1b_ref[l])

        # ---- feed forward + residual + LN (dropout: identity in eval) ----
        h1 = _gelu_tanh(jnp.dot(x.astype(jnp.bfloat16), w1_ref[l],
                                preferred_element_type=jnp.float32) + b1_ref[l])
        ffn = jnp.dot(h1.astype(jnp.bfloat16), w2_ref[l],
                      preferred_element_type=jnp.float32) + b2_ref[l]
        x = _layernorm(ffn + x, ln2g_ref[l], ln2b_ref[l])

    # ---- pooler (dense + tanh on the [CLS] token) + dropout(0.3)->identity + classifier ----
    cls_tok = x[0:1, :]                                         # (1, HID)
    pooled = jnp.tanh(jnp.dot(cls_tok.astype(jnp.bfloat16), poolw_ref[...],
                              preferred_element_type=jnp.float32) + poolb_ref[...])
    logits = jnp.dot(pooled.astype(jnp.bfloat16), clsw_ref[...],
                     preferred_element_type=jnp.float32) + clsb_ref[...]  # (1, NPAD)
    out_ref[0] = logits.astype(out_ref.dtype)


# ---------------- parameters (deterministic synthetic init) ----------------
def _dense(key, fan_in, fan_out):
    kw, kb = jax.random.split(key)
    w = jax.random.normal(kw, (fan_in, fan_out), jnp.float32) * 0.02
    b = jax.random.normal(kb, (fan_out,), jnp.float32) * 0.02
    return w, b


def init_params(key):
    keys = iter(jax.random.split(key, 64))
    p = {
        "word_emb": jax.random.normal(next(keys), (VOCAB, HID), jnp.float32) * 0.02,
        "pos_emb": jax.random.normal(next(keys), (S, HID), jnp.float32) * 0.02,
        "type_emb": jax.random.normal(next(keys), (TYPE_VOCAB, HID), jnp.float32) * 0.02,
        "emb_ln_g": jnp.ones((HID,), jnp.float32),
        "emb_ln_b": jnp.zeros((HID,), jnp.float32),
        "layers": [],
    }
    for _ in range(LAYERS):
        layer = {}
        layer["wq"], layer["bq"] = _dense(next(keys), HID, HID)
        layer["wk"], layer["bk"] = _dense(next(keys), HID, HID)
        layer["wv"], layer["bv"] = _dense(next(keys), HID, HID)
        layer["wo"], layer["bo"] = _dense(next(keys), HID, HID)
        layer["ln1_g"] = jnp.ones((HID,), jnp.float32)
        layer["ln1_b"] = jnp.zeros((HID,), jnp.float32)
        layer["w1"], layer["b1"] = _dense(next(keys), HID, INTER)
        layer["w2"], layer["b2"] = _dense(next(keys), INTER, HID)
        layer["ln2_g"] = jnp.ones((HID,), jnp.float32)
        layer["ln2_b"] = jnp.zeros((HID,), jnp.float32)
        p["layers"].append(layer)
    p["pool_w"], p["pool_b"] = _dense(next(keys), HID, HID)
    p["cls_w"], p["cls_b"] = _dense(next(keys), HID, NCLASS)
    return p


def pack_params(p):
    """Stack per-layer weights, fuse QKV, pre-cast matmul weights to bf16, pad classifier to 128 lanes."""
    L = p["layers"]

    def stack(f):
        return jnp.stack([f(l) for l in L])

    clsw_pad = jnp.zeros((HID, NPAD), jnp.float32).at[:, :NCLASS].set(p["cls_w"])
    clsb_pad = jnp.zeros((1, NPAD), jnp.float32).at[:, :NCLASS].set(p["cls_b"].reshape(1, NCLASS))
    return dict(
        eg=p["emb_ln_g"].reshape(1, HID),
        eb=p["emb_ln_b"].reshape(1, HID),
        wqkv=stack(lambda l: jnp.concatenate([l["wq"], l["wk"], l["wv"]], axis=1)).astype(jnp.bfloat16),
        bqkv=stack(lambda l: jnp.concatenate([l["bq"], l["bk"], l["bv"]]).reshape(1, 3 * HID)),
        wo=stack(lambda l: l["wo"]).astype(jnp.bfloat16),
        bo=stack(lambda l: l["bo"].reshape(1, HID)),
        ln1g=stack(lambda l: l["ln1_g"].reshape(1, HID)),
        ln1b=stack(lambda l: l["ln1_b"].reshape(1, HID)),
        w1=stack(lambda l: l["w1"]).astype(jnp.bfloat16),
        b1=stack(lambda l: l["b1"].reshape(1, INTER)),
        w2=stack(lambda l: l["w2"]).astype(jnp.bfloat16),
        b2=stack(lambda l: l["b2"].reshape(1, HID)),
        ln2g=stack(lambda l: l["ln2_g"].reshape(1, HID)),
        ln2b=stack(lambda l: l["ln2_b"].reshape(1, HID)),
        poolw=p["pool_w"].astype(jnp.bfloat16),
        poolb=p["pool_b"].reshape(1, HID),
        clsw=clsw_pad.astype(jnp.bfloat16),
        clsb=clsb_pad,
    )


# ---------------- forward ----------------
def _const2(b):
    return (0, 0)


def _const3(b):
    return (0, 0, 0)


@jax.jit
def bert_class_forward(params, input_ids, attention_mask, token_type_ids):
    # embedding gathers are plain-JAX glue feeding the fused kernel
    emb = (jnp.take(params["word_emb"], input_ids, axis=0)
           + params["pos_emb"][None, :, :]
           + jnp.take(params["type_emb"], token_type_ids, axis=0))        # (B, S, HID) f32

    # additive attention mask: 0 where attended, -1e9 where padded
    mask_add = ((1.0 - attention_mask.astype(jnp.float32)) * -1e9).reshape(B, 1, S)

    pk = pack_params(params)

    out = pl.pallas_call(
        bert_fused_kernel,
        out_shape=jax.ShapeDtypeStruct((B, 1, NPAD), jnp.float32),
        grid=(B,),
        in_specs=[
            pl.BlockSpec((1, S, HID), lambda b: (b, 0, 0)),               # emb
            pl.BlockSpec((1, 1, S), lambda b: (b, 0, 0)),                 # mask
            pl.BlockSpec((1, HID), _const2),                              # emb LN gamma
            pl.BlockSpec((1, HID), _const2),                              # emb LN beta
            pl.BlockSpec((LAYERS, HID, 3 * HID), _const3),                # wqkv (bf16)
            pl.BlockSpec((LAYERS, 1, 3 * HID), _const3),                  # bqkv
            pl.BlockSpec((LAYERS, HID, HID), _const3),                    # wo (bf16)
            pl.BlockSpec((LAYERS, 1, HID), _const3),                      # bo
            pl.BlockSpec((LAYERS, 1, HID), _const3),                      # ln1 gamma
            pl.BlockSpec((LAYERS, 1, HID), _const3),                      # ln1 beta
            pl.BlockSpec((LAYERS, HID, INTER), _const3),                  # w1 (bf16)
            pl.BlockSpec((LAYERS, 1, INTER), _const3),                    # b1
            pl.BlockSpec((LAYERS, INTER, HID), _const3),                  # w2 (bf16)
            pl.BlockSpec((LAYERS, 1, HID), _const3),                      # b2
            pl.BlockSpec((LAYERS, 1, HID), _const3),                      # ln2 gamma
            pl.BlockSpec((LAYERS, 1, HID), _const3),                      # ln2 beta
            pl.BlockSpec((HID, HID), _const2),                            # pooler W (bf16)
            pl.BlockSpec((1, HID), _const2),                              # pooler b
            pl.BlockSpec((HID, NPAD), _const2),                           # classifier W padded (bf16)
            pl.BlockSpec((1, NPAD), _const2),                             # classifier b padded
        ],
        out_specs=pl.BlockSpec((1, 1, NPAD), lambda b: (b, 0, 0)),
        scratch_shapes=[pltpu.VMEM((S, HID), jnp.float32)],
        compiler_params=pltpu.CompilerParams(
            dimension_semantics=("parallel",),                            # shard batch across v7x's 2 TCs
        ),
    )(emb, mask_add,
      pk["eg"], pk["eb"],
      pk["wqkv"], pk["bqkv"], pk["wo"], pk["bo"],
      pk["ln1g"], pk["ln1b"],
      pk["w1"], pk["b1"], pk["w2"], pk["b2"],
      pk["ln2g"], pk["ln2b"],
      pk["poolw"], pk["poolb"], pk["clsw"], pk["clsb"])

    return out[:, 0, :NCLASS]                                             # (B, NCLASS)


if __name__ == "__main__":
    key = jax.random.PRNGKey(0)
    kp, kid = jax.random.split(key)
    params = init_params(kp)

    input_ids = jax.random.randint(kid, (B, S), 0, VOCAB, dtype=jnp.int32)
    attention_mask = jnp.ones((B, S), jnp.int32).at[1, S - 2:].set(0)     # pad last 2 of batch 1
    token_type_ids = jnp.zeros((B, S), jnp.int32)

    out = bert_class_forward(params, input_ids, attention_mask, token_type_ids)
    out = jax.block_until_ready(out)
    assert out.shape == (B, NCLASS) and out.dtype == jnp.float32
    assert bool(jnp.all(jnp.isfinite(out)))
    print("KERNEL_OK")
</pallas_src>

<mosaic_0001>
module attributes {stable_mosaic.version = 11 : i64} {
  func.func @bert_fused_kernel(%arg0: i32, %arg1: memref<1x8x128xf32, #tpu.memory_space<vmem>>, %arg2: memref<1x1x8xf32, #tpu.memory_space<vmem>>, %arg3: memref<1x128xf32, #tpu.memory_space<vmem>>, %arg4: memref<1x128xf32, #tpu.memory_space<vmem>>, %arg5: memref<2x128x384xbf16, #tpu.memory_space<vmem>>, %arg6: memref<2x1x384xf32, #tpu.memory_space<vmem>>, %arg7: memref<2x128x128xbf16, #tpu.memory_space<vmem>>, %arg8: memref<2x1x128xf32, #tpu.memory_space<vmem>>, %arg9: memref<2x1x128xf32, #tpu.memory_space<vmem>>, %arg10: memref<2x1x128xf32, #tpu.memory_space<vmem>>, %arg11: memref<2x128x512xbf16, #tpu.memory_space<vmem>>, %arg12: memref<2x1x512xf32, #tpu.memory_space<vmem>>, %arg13: memref<2x512x128xbf16, #tpu.memory_space<vmem>>, %arg14: memref<2x1x128xf32, #tpu.memory_space<vmem>>, %arg15: memref<2x1x128xf32, #tpu.memory_space<vmem>>, %arg16: memref<2x1x128xf32, #tpu.memory_space<vmem>>, %arg17: memref<128x128xbf16, #tpu.memory_space<vmem>>, %arg18: memref<1x128xf32, #tpu.memory_space<vmem>>, %arg19: memref<128x128xbf16, #tpu.memory_space<vmem>>, %arg20: memref<1x128xf32, #tpu.memory_space<vmem>>, %arg21: memref<1x1x128xf32, #tpu.memory_space<vmem>>, %arg22: memref<8x128xf32, #tpu.memory_space<vmem>>) attributes {dimension_semantics = [#tpu.dimension_semantics<parallel>], iteration_bounds = array<i64: 2>, scalar_prefetch = 0 : i64, scratch_operands = 1 : i64, tpu.core_type = #tpu.core_type<tc>, window_params = [{transform_indices = @transform_0, window_bounds = array<i64: 1, 8, 128>}, {transform_indices = @transform_1, window_bounds = array<i64: 1, 1, 8>}, {pipeline_mode = #tpu.pipeline_mode<synchronous>, transform_indices = @transform_2, window_bounds = array<i64: 1, 128>}, {pipeline_mode = #tpu.pipeline_mode<synchronous>, transform_indices = @transform_3, window_bounds = array<i64: 1, 128>}, {pipeline_mode = #tpu.pipeline_mode<synchronous>, transform_indices = @transform_4, window_bounds = array<i64: 2, 128, 384>}, {pipeline_mode = #tpu.pipeline_mode<synchronous>, transform_indices = @transform_5, window_bounds = array<i64: 2, 1, 384>}, {pipeline_mode = #tpu.pipeline_mode<synchronous>, transform_indices = @transform_6, window_bounds = array<i64: 2, 128, 128>}, {pipeline_mode = #tpu.pipeline_mode<synchronous>, transform_indices = @transform_7, window_bounds = array<i64: 2, 1, 128>}, {pipeline_mode = #tpu.pipeline_mode<synchronous>, transform_indices = @transform_8, window_bounds = array<i64: 2, 1, 128>}, {pipeline_mode = #tpu.pipeline_mode<synchronous>, transform_indices = @transform_9, window_bounds = array<i64: 2, 1, 128>}, {pipeline_mode = #tpu.pipeline_mode<synchronous>, transform_indices = @transform_10, window_bounds = array<i64: 2, 128, 512>}, {pipeline_mode = #tpu.pipeline_mode<synchronous>, transform_indices = @transform_11, window_bounds = array<i64: 2, 1, 512>}, {pipeline_mode = #tpu.pipeline_mode<synchronous>, transform_indices = @transform_12, window_bounds = array<i64: 2, 512, 128>}, {pipeline_mode = #tpu.pipeline_mode<synchronous>, transform_indices = @transform_13, window_bounds = array<i64: 2, 1, 128>}, {pipeline_mode = #tpu.pipeline_mode<synchronous>, transform_indices = @transform_14, window_bounds = array<i64: 2, 1, 128>}, {pipeline_mode = #tpu.pipeline_mode<synchronous>, transform_indices = @transform_15, window_bounds = array<i64: 2, 1, 128>}, {pipeline_mode = #tpu.pipeline_mode<synchronous>, transform_indices = @transform_16, window_bounds = array<i64: 128, 128>}, {pipeline_mode = #tpu.pipeline_mode<synchronous>, transform_indices = @transform_17, window_bounds = array<i64: 1, 128>}, {pipeline_mode = #tpu.pipeline_mode<synchronous>, transform_indices = @transform_18, window_bounds = array<i64: 128, 128>}, {pipeline_mode = #tpu.pipeline_mode<synchronous>, transform_indices = @transform_19, window_bounds = array<i64: 1, 128>}, {transform_indices = @transform_20, window_bounds = array<i64: 1, 1, 128>}]} {
    %c0 = arith.constant 0 : index
    %c0_0 = arith.constant 0 : index
    %c0_1 = arith.constant 0 : index
    %0 = vector.load %arg2[%c0, %c0_0, %c0_1] : memref<1x1x8xf32, #tpu.memory_space<vmem>>, vector<1x1x8xf32>
    %1 = vector.shape_cast %0 : vector<1x1x8xf32> to vector<1x8xf32>
    %c0_2 = arith.constant 0 : index
    %c0_3 = arith.constant 0 : index
    %c0_4 = arith.constant 0 : index
    %2 = vector.load %arg1[%c0_2, %c0_3, %c0_4] : memref<1x8x128xf32, #tpu.memory_space<vmem>>, vector<1x8x128xf32>
    %3 = vector.shape_cast %2 : vector<1x8x128xf32> to vector<8x128xf32>
    %c0_5 = arith.constant 0 : index
    %c0_6 = arith.constant 0 : index
    %4 = vector.load %arg3[%c0_5, %c0_6] : memref<1x128xf32, #tpu.memory_space<vmem>>, vector<1x128xf32>
    %c0_7 = arith.constant 0 : index
    %c0_8 = arith.constant 0 : index
    %5 = vector.load %arg4[%c0_7, %c0_8] : memref<1x128xf32, #tpu.memory_space<vmem>>, vector<1x128xf32>
    %cst = arith.constant dense<0.000000e+00> : vector<8xf32>
    %6 = vector.multi_reduction <add>, %3, %cst [1] : vector<8x128xf32> to vector<8xf32>
    %7 = vector.shape_cast %6 : vector<8xf32> to vector<8x1xf32>
    %cst_9 = arith.constant 1.280000e+02 : f32
    %8 = vector.broadcast %cst_9 : f32 to vector<8x1xf32>
    %9 = arith.divf %7, %8 : vector<8x1xf32>
    %10 = vector.broadcast %9 : vector<8x1xf32> to vector<8x128xf32>
    %11 = arith.subf %3, %10 : vector<8x128xf32>
    %12 = arith.mulf %11, %11 : vector<8x128xf32>
    %cst_10 = arith.constant dense<0.000000e+00> : vector<8xf32>
    %13 = vector.multi_reduction <add>, %12, %cst_10 [1] : vector<8x128xf32> to vector<8xf32>
    %14 = vector.shape_cast %13 : vector<8xf32> to vector<8x1xf32>
    %cst_11 = arith.constant 1.280000e+02 : f32
    %15 = vector.broadcast %cst_11 : f32 to vector<8x1xf32>
    %16 = arith.divf %14, %15 : vector<8x1xf32>
    %cst_12 = arith.constant 9.99999996E-13 : f32
    %17 = vector.broadcast %cst_12 : f32 to vector<8x1xf32>
    %18 = arith.addf %16, %17 : vector<8x1xf32>
    %19 = math.rsqrt %18 : vector<8x1xf32>
    %20 = vector.broadcast %19 : vector<8x1xf32> to vector<8x128xf32>
    %21 = arith.mulf %11, %20 : vector<8x128xf32>
    %22 = vector.broadcast %4 : vector<1x128xf32> to vector<8x128xf32>
    %23 = arith.mulf %21, %22 : vector<8x128xf32>
    %24 = vector.broadcast %5 : vector<1x128xf32> to vector<8x128xf32>
    %25 = arith.addf %23, %24 : vector<8x128xf32>
    %26 = arith.truncf %25 : vector<8x128xf32> to vector<8x128xbf16>
    %c0_13 = arith.constant 0 : index
    %c0_14 = arith.constant 0 : index
    %c0_15 = arith.constant 0 : index
    %27 = vector.load %arg5[%c0_13, %c0_14, %c0_15] : memref<2x128x384xbf16, #tpu.memory_space<vmem>>, vector<1x128x384xbf16>
    %28 = vector.shape_cast %27 : vector<1x128x384xbf16> to vector<128x384xbf16>
    %cst_16 = arith.constant dense<0.000000e+00> : vector<8x384xf32>
    %29 = tpu.matmul %26, %28, %cst_16 {dimension_numbers = #tpu.dot_dimension_numbers<[1], [0], [0], [1], [0, 0, 1, 1], [], []>} : vector<8x128xbf16>, vector<128x384xbf16>, vector<8x384xf32> -> vector<8x384xf32>
    %c0_17 = arith.constant 0 : index
    %c0_18 = arith.constant 0 : index
    %c0_19 = arith.constant 0 : index
    %30 = vector.load %arg6[%c0_17, %c0_18, %c0_19] : memref<2x1x384xf32, #tpu.memory_space<vmem>>, vector<1x1x384xf32>
    %31 = vector.shape_cast %30 : vector<1x1x384xf32> to vector<1x384xf32>
    %32 = vector.broadcast %31 : vector<1x384xf32> to vector<8x384xf32>
    %33 = arith.addf %29, %32 : vector<8x384xf32>
    %34 = vector.extract_strided_slice %33 {offsets = [0, 0], sizes = [8, 64], strides = [1, 1]} : vector<8x384xf32> to vector<8x64xf32>
    %35 = vector.extract_strided_slice %33 {offsets = [0, 128], sizes = [8, 64], strides = [1, 1]} : vector<8x384xf32> to vector<8x64xf32>
    %36 = vector.extract_strided_slice %33 {offsets = [0, 256], sizes = [8, 64], strides = [1, 1]} : vector<8x384xf32> to vector<8x64xf32>
    %37 = arith.truncf %34 : vector<8x64xf32> to vector<8x64xbf16>
    %38 = arith.truncf %35 : vector<8x64xf32> to vector<8x64xbf16>
    %cst_20 = arith.constant dense<0.000000e+00> : vector<8x8xf32>
    %39 = tpu.matmul %37, %38, %cst_20 {dimension_numbers = #tpu.dot_dimension_numbers<[1], [1], [0], [0], [0, 0, 1, 0], [], []>} : vector<8x64xbf16>, vector<8x64xbf16>, vector<8x8xf32> -> vector<8x8xf32>
    %cst_21 = arith.constant 1.250000e-01 : f32
    %40 = vector.broadcast %cst_21 : f32 to vector<8x8xf32>
    %41 = arith.mulf %39, %40 : vector<8x8xf32>
    %42 = vector.broadcast %1 : vector<1x8xf32> to vector<8x8xf32>
    %43 = arith.addf %41, %42 : vector<8x8xf32>
    %cst_22 = arith.constant dense<0xFF800000> : vector<8xf32>
    %44 = vector.multi_reduction <maximumf>, %43, %cst_22 [1] : vector<8x8xf32> to vector<8xf32>
    %45 = vector.shape_cast %44 : vector<8xf32> to vector<8x1xf32>
    %46 = vector.broadcast %45 : vector<8x1xf32> to vector<8x8xf32>
    %47 = arith.subf %43, %46 : vector<8x8xf32>
    %48 = math.exp %47 : vector<8x8xf32>
    %cst_23 = arith.constant dense<0.000000e+00> : vector<8xf32>
    %49 = vector.multi_reduction <add>, %48, %cst_23 [1] : vector<8x8xf32> to vector<8xf32>
    %50 = vector.shape_cast %49 : vector<8xf32> to vector<8x1xf32>
    %51 = vector.broadcast %50 : vector<8x1xf32> to vector<8x8xf32>
    %52 = arith.divf %48, %51 : vector<8x8xf32>
    %53 = arith.truncf %52 : vector<8x8xf32> to vector<8x8xbf16>
    %54 = arith.truncf %36 : vector<8x64xf32> to vector<8x64xbf16>
    %cst_24 = arith.constant dense<0.000000e+00> : vector<8x64xf32>
    %55 = tpu.matmul %53, %54, %cst_24 {dimension_numbers = #tpu.dot_dimension_numbers<[1], [0], [0], [1], [0, 0, 1, 1], [], []>} : vector<8x8xbf16>, vector<8x64xbf16>, vector<8x64xf32> -> vector<8x64xf32>
    %c0_25 = arith.constant 0 : index
    %c0_26 = arith.constant 0 : index
    %56 = vector.load %arg22[%c0_25, %c0_26] : memref<8x128xf32, #tpu.memory_space<vmem>>, vector<8x64xf32>
    tpu.vector_store %arg22[%c0_25, %c0_26], %55 {strides = array<i32>} : memref<8x128xf32, #tpu.memory_space<vmem>>, vector<8x64xf32>,
    %57 = vector.extract_strided_slice %33 {offsets = [0, 64], sizes = [8, 64], strides = [1, 1]} : vector<8x384xf32> to vector<8x64xf32>
    %58 = vector.extract_strided_slice %33 {offsets = [0, 192], sizes = [8, 64], strides = [1, 1]} : vector<8x384xf32> to vector<8x64xf32>
    %59 = vector.extract_strided_slice %33 {offsets = [0, 320], sizes = [8, 64], strides = [1, 1]} : vector<8x384xf32> to vector<8x64xf32>
    %60 = arith.truncf %57 : vector<8x64xf32> to vector<8x64xbf16>
    %61 = arith.truncf %58 : vector<8x64xf32> to vector<8x64xbf16>
    %cst_27 = arith.constant dense<0.000000e+00> : vector<8x8xf32>
    %62 = tpu.matmul %60, %61, %cst_27 {dimension_numbers = #tpu.dot_dimension_numbers<[1], [1], [0], [0], [0, 0, 1, 0], [], []>} : vector<8x64xbf16>, vector<8x64xbf16>, vector<8x8xf32> -> vector<8x8xf32>
    %cst_28 = arith.constant 1.250000e-01 : f32
    %63 = vector.broadcast %cst_28 : f32 to vector<8x8xf32>
    %64 = arith.mulf %62, %63 : vector<8x8xf32>
    %65 = vector.broadcast %1 : vector<1x8xf32> to vector<8x8xf32>
    %66 = arith.addf %64, %65 : vector<8x8xf32>
    %cst_29 = arith.constant dense<0xFF800000> : vector<8xf32>
    %67 = vector.multi_reduction <maximumf>, %66, %cst_29 [1] : vector<8x8xf32> to vector<8xf32>
    %68 = vector.shape_cast %67 : vector<8xf32> to vector<8x1xf32>
    %69 = vector.broadcast %68 : vector<8x1xf32> to vector<8x8xf32>
    %70 = arith.subf %66, %69 : vector<8x8xf32>
    %71 = math.exp %70 : vector<8x8xf32>
    %cst_30 = arith.constant dense<0.000000e+00> : vector<8xf32>
    %72 = vector.multi_reduction <add>, %71, %cst_30 [1] : vector<8x8xf32> to vector<8xf32>
    %73 = vector.shape_cast %72 : vector<8xf32> to vector<8x1xf32>
    %74 = vector.broadcast %73 : vector<8x1xf32> to vector<8x8xf32>
    %75 = arith.divf %71, %74 : vector<8x8xf32>
    %76 = arith.truncf %75 : vector<8x8xf32> to vector<8x8xbf16>
    %77 = arith.truncf %59 : vector<8x64xf32> to vector<8x64xbf16>
    %cst_31 = arith.constant dense<0.000000e+00> : vector<8x64xf32>
    %78 = tpu.matmul %76, %77, %cst_31 {dimension_numbers = #tpu.dot_dimension_numbers<[1], [0], [0], [1], [0, 0, 1, 1], [], []>} : vector<8x8xbf16>, vector<8x64xbf16>, vector<8x64xf32> -> vector<8x64xf32>
    %c0_32 = arith.constant 0 : index
    %c64 = arith.constant 64 : index
    %79 = vector.load %arg22[%c0_32, %c64] : memref<8x128xf32, #tpu.memory_space<vmem>>, vector<8x64xf32>
    tpu.vector_store %arg22[%c0_32, %c64], %78 {strides = array<i32>} : memref<8x128xf32, #tpu.memory_space<vmem>>, vector<8x64xf32>,
    %c0_33 = arith.constant 0 : index
    %c0_34 = arith.constant 0 : index
    %80 = vector.load %arg22[%c0_33, %c0_34] : memref<8x128xf32, #tpu.memory_space<vmem>>, vector<8x128xf32>
    %81 = arith.truncf %80 : vector<8x128xf32> to vector<8x128xbf16>
    %c0_35 = arith.constant 0 : index
    %c0_36 = arith.constant 0 : index
    %c0_37 = arith.constant 0 : index
    %82 = vector.load %arg7[%c0_35, %c0_36, %c0_37] : memref<2x128x128xbf16, #tpu.memory_space<vmem>>, vector<1x128x128xbf16>
    %83 = vector.shape_cast %82 : vector<1x128x128xbf16> to vector<128x128xbf16>
    %cst_38 = arith.constant dense<0.000000e+00> : vector<8x128xf32>
    %84 = tpu.matmul %81, %83, %cst_38 {dimension_numbers = #tpu.dot_dimension_numbers<[1], [0], [0], [1], [0, 0, 1, 1], [], []>} : vector<8x128xbf16>, vector<128x128xbf16>, vector<8x128xf32> -> vector<8x128xf32>
    %c0_39 = arith.constant 0 : index
    %c0_40 = arith.constant 0 : index
    %c0_41 = arith.constant 0 : index
    %85 = vector.load %arg8[%c0_39, %c0_40, %c0_41] : memref<2x1x128xf32, #tpu.memory_space<vmem>>, vector<1x1x128xf32>
    %86 = vector.shape_cast %85 : vector<1x1x128xf32> to vector<1x128xf32>
    %87 = vector.broadcast %86 : vector<1x128xf32> to vector<8x128xf32>
    %88 = arith.addf %84, %87 : vector<8x128xf32>
    %89 = arith.addf %88, %25 : vector<8x128xf32>
    %c0_42 = arith.constant 0 : index
    %c0_43 = arith.constant 0 : index
    %c0_44 = arith.constant 0 : index
    %90 = vector.load %arg9[%c0_42, %c0_43, %c0_44] : memref<2x1x128xf32, #tpu.memory_space<vmem>>, vector<1x1x128xf32>
    %91 = vector.shape_cast %90 : vector<1x1x128xf32> to vector<1x128xf32>
    %c0_45 = arith.constant 0 : index
    %c0_46 = arith.constant 0 : index
    %c0_47 = arith.constant 0 : index
    %92 = vector.load %arg10[%c0_45, %c0_46, %c0_47] : memref<2x1x128xf32, #tpu.memory_space<vmem>>, vector<1x1x128xf32>
    %93 = vector.shape_cast %92 : vector<1x1x128xf32> to vector<1x128xf32>
    %cst_48 = arith.constant dense<0.000000e+00> : vector<8xf32>
    %94 = vector.multi_reduction <add>, %89, %cst_48 [1] : vector<8x128xf32> to vector<8xf32>
    %95 = vector.shape_cast %94 : vector<8xf32> to vector<8x1xf32>
    %cst_49 = arith.constant 1.280000e+02 : f32
    %96 = vector.broadcast %cst_49 : f32 to vector<8x1xf32>
    %97 = arith.divf %95, %96 : vector<8x1xf32>
    %98 = vector.broadcast %97 : vector<8x1xf32> to vector<8x128xf32>
    %99 = arith.subf %89, %98 : vector<8x128xf32>
    %100 = arith.mulf %99, %99 : vector<8x128xf32>
    %cst_50 = arith.constant dense<0.000000e+00> : vector<8xf32>
    %101 = vector.multi_reduction <add>, %100, %cst_50 [1] : vector<8x128xf32> to vector<8xf32>
    %102 = vector.shape_cast %101 : vector<8xf32> to vector<8x1xf32>
    %cst_51 = arith.constant 1.280000e+02 : f32
    %103 = vector.broadcast %cst_51 : f32 to vector<8x1xf32>
    %104 = arith.divf %102, %103 : vector<8x1xf32>
    %cst_52 = arith.constant 9.99999996E-13 : f32
    %105 = vector.broadcast %cst_52 : f32 to vector<8x1xf32>
    %106 = arith.addf %104, %105 : vector<8x1xf32>
    %107 = math.rsqrt %106 : vector<8x1xf32>
    %108 = vector.broadcast %107 : vector<8x1xf32> to vector<8x128xf32>
    %109 = arith.mulf %99, %108 : vector<8x128xf32>
    %110 = vector.broadcast %91 : vector<1x128xf32> to vector<8x128xf32>
    %111 = arith.mulf %109, %110 : vector<8x128xf32>
    %112 = vector.broadcast %93 : vector<1x128xf32> to vector<8x128xf32>
    %113 = arith.addf %111, %112 : vector<8x128xf32>
    %114 = arith.truncf %113 : vector<8x128xf32> to vector<8x128xbf16>
    %c0_53 = arith.constant 0 : index
    %c0_54 = arith.constant 0 : index
    %c0_55 = arith.constant 0 : index
    %115 = vector.load %arg11[%c0_53, %c0_54, %c0_55] : memref<2x128x512xbf16, #tpu.memory_space<vmem>>, vector<1x128x512xbf16>
    %116 = vector.shape_cast %115 : vector<1x128x512xbf16> to vector<128x512xbf16>
    %cst_56 = arith.constant dense<0.000000e+00> : vector<8x512xf32>
    %117 = tpu.matmul %114, %116, %cst_56 {dimension_numbers = #tpu.dot_dimension_numbers<[1], [0], [0], [1], [0, 0, 1, 1], [], []>} : vector<8x128xbf16>, vector<128x512xbf16>, vector<8x512xf32> -> vector<8x512xf32>
    %c0_57 = arith.constant 0 : index
    %c0_58 = arith.constant 0 : index
    %c0_59 = arith.constant 0 : index
    %118 = vector.load %arg12[%c0_57, %c0_58, %c0_59] : memref<2x1x512xf32, #tpu.memory_space<vmem>>, vector<1x1x512xf32>
    %119 = vector.shape_cast %118 : vector<1x1x512xf32> to vector<1x512xf32>
    %120 = vector.broadcast %119 : vector<1x512xf32> to vector<8x512xf32>
    %121 = arith.addf %117, %120 : vector<8x512xf32>
    %cst_60 = arith.constant 0.636619746 : f32
    %122 = math.sqrt %cst_60 : f32
    %cst_61 = arith.constant 5.000000e-01 : f32
    %123 = vector.broadcast %cst_61 : f32 to vector<8x512xf32>
    %124 = arith.mulf %123, %121 : vector<8x512xf32>
    %cst_62 = arith.constant 4.471500e-02 : f32
    %125 = vector.broadcast %cst_62 : f32 to vector<8x512xf32>
    %126 = arith.mulf %125, %121 : vector<8x512xf32>
    %127 = arith.mulf %126, %121 : vector<8x512xf32>
    %128 = arith.mulf %127, %121 : vector<8x512xf32>
    %129 = arith.addf %121, %128 : vector<8x512xf32>
    %130 = vector.broadcast %122 : f32 to vector<8x512xf32>
    %131 = arith.mulf %130, %129 : vector<8x512xf32>
    %132 = math.tanh %131 : vector<8x512xf32>
    %cst_63 = arith.constant 1.000000e+00 : f32
    %133 = vector.broadcast %cst_63 : f32 to vector<8x512xf32>
    %134 = arith.addf %133, %132 : vector<8x512xf32>
    %135 = arith.mulf %124, %134 : vector<8x512xf32>
    %136 = arith.truncf %135 : vector<8x512xf32> to vector<8x512xbf16>
    %c0_64 = arith.constant 0 : index
    %c0_65 = arith.constant 0 : index
    %c0_66 = arith.constant 0 : index
    %137 = vector.load %arg13[%c0_64, %c0_65, %c0_66] : memref<2x512x128xbf16, #tpu.memory_space<vmem>>, vector<1x512x128xbf16>
    %138 = vector.shape_cast %137 : vector<1x512x128xbf16> to vector<512x128xbf16>
    %cst_67 = arith.constant dense<0.000000e+00> : vector<8x128xf32>
    %139 = tpu.matmul %136, %138, %cst_67 {dimension_numbers = #tpu.dot_dimension_numbers<[1], [0], [0], [1], [0, 0, 1, 1], [], []>} : vector<8x512xbf16>, vector<512x128xbf16>, vector<8x128xf32> -> vector<8x128xf32>
    %c0_68 = arith.constant 0 : index
    %c0_69 = arith.constant 0 : index
    %c0_70 = arith.constant 0 : index
    %140 = vector.load %arg14[%c0_68, %c0_69, %c0_70] : memref<2x1x128xf32, #tpu.memory_space<vmem>>, vector<1x1x128xf32>
    %141 = vector.shape_cast %140 : vector<1x1x128xf32> to vector<1x128xf32>
    %142 = vector.broadcast %141 : vector<1x128xf32> to vector<8x128xf32>
    %143 = arith.addf %139, %142 : vector<8x128xf32>
    %144 = arith.addf %143, %113 : vector<8x128xf32>
    %c0_71 = arith.constant 0 : index
    %c0_72 = arith.constant 0 : index
    %c0_73 = arith.constant 0 : index
    %145 = vector.load %arg15[%c0_71, %c0_72, %c0_73] : memref<2x1x128xf32, #tpu.memory_space<vmem>>, vector<1x1x128xf32>
    %146 = vector.shape_cast %145 : vector<1x1x128xf32> to vector<1x128xf32>
    %c0_74 = arith.constant 0 : index
    %c0_75 = arith.constant 0 : index
    %c0_76 = arith.constant 0 : index
    %147 = vector.load %arg16[%c0_74, %c0_75, %c0_76] : memref<2x1x128xf32, #tpu.memory_space<vmem>>, vector<1x1x128xf32>
    %148 = vector.shape_cast %147 : vector<1x1x128xf32> to vector<1x128xf32>
    %cst_77 = arith.constant dense<0.000000e+00> : vector<8xf32>
    %149 = vector.multi_reduction <add>, %144, %cst_77 [1] : vector<8x128xf32> to vector<8xf32>
    %150 = vector.shape_cast %149 : vector<8xf32> to vector<8x1xf32>
    %cst_78 = arith.constant 1.280000e+02 : f32
    %151 = vector.broadcast %cst_78 : f32 to vector<8x1xf32>
    %152 = arith.divf %150, %151 : vector<8x1xf32>
    %153 = vector.broadcast %152 : vector<8x1xf32> to vector<8x128xf32>
    %154 = arith.subf %144, %153 : vector<8x128xf32>
    %155 = arith.mulf %154, %154 : vector<8x128xf32>
    %cst_79 = arith.constant dense<0.000000e+00> : vector<8xf32>
    %156 = vector.multi_reduction <add>, %155, %cst_79 [1] : vector<8x128xf32> to vector<8xf32>
    %157 = vector.shape_cast %156 : vector<8xf32> to vector<8x1xf32>
    %cst_80 = arith.constant 1.280000e+02 : f32
    %158 = vector.broadcast %cst_80 : f32 to vector<8x1xf32>
    %159 = arith.divf %157, %158 : vector<8x1xf32>
    %cst_81 = arith.constant 9.99999996E-13 : f32
    %160 = vector.broadcast %cst_81 : f32 to vector<8x1xf32>
    %161 = arith.addf %159, %160 : vector<8x1xf32>
    %162 = math.rsqrt %161 : vector<8x1xf32>
    %163 = vector.broadcast %162 : vector<8x1xf32> to vector<8x128xf32>
    %164 = arith.mulf %154, %163 : vector<8x128xf32>
    %165 = vector.broadcast %146 : vector<1x128xf32> to vector<8x128xf32>
    %166 = arith.mulf %164, %165 : vector<8x128xf32>
    %167 = vector.broadcast %148 : vector<1x128xf32> to vector<8x128xf32>
    %168 = arith.addf %166, %167 : vector<8x128xf32>
    %169 = arith.truncf %168 : vector<8x128xf32> to vector<8x128xbf16>
    %c1 = arith.constant 1 : index
    %c0_82 = arith.constant 0 : index
    %c0_83 = arith.constant 0 : index
    %170 = vector.load %arg5[%c1, %c0_82, %c0_83] : memref<2x128x384xbf16, #tpu.memory_space<vmem>>, vector<1x128x384xbf16>
    %171 = vector.shape_cast %170 : vector<1x128x384xbf16> to vector<128x384xbf16>
    %cst_84 = arith.constant dense<0.000000e+00> : vector<8x384xf32>
    %172 = tpu.matmul %169, %171, %cst_84 {dimension_numbers = #tpu.dot_dimension_numbers<[1], [0], [0], [1], [0, 0, 1, 1], [], []>} : vector<8x128xbf16>, vector<128x384xbf16>, vector<8x384xf32> -> vector<8x384xf32>
    %c1_85 = arith.constant 1 : index
    %c0_86 = arith.constant 0 : index
    %c0_87 = arith.constant 0 : index
    %173 = vector.load %arg6[%c1_85, %c0_86, %c0_87] : memref<2x1x384xf32, #tpu.memory_space<vmem>>, vector<1x1x384xf32>
    %174 = vector.shape_cast %173 : vector<1x1x384xf32> to vector<1x384xf32>
    %175 = vector.broadcast %174 : vector<1x384xf32> to vector<8x384xf32>
    %176 = arith.addf %172, %175 : vector<8x384xf32>
    %177 = vector.extract_strided_slice %176 {offsets = [0, 0], sizes = [8, 64], strides = [1, 1]} : vector<8x384xf32> to vector<8x64xf32>
    %178 = vector.extract_strided_slice %176 {offsets = [0, 128], sizes = [8, 64], strides = [1, 1]} : vector<8x384xf32> to vector<8x64xf32>
    %179 = vector.extract_strided_slice %176 {offsets = [0, 256], sizes = [8, 64], strides = [1, 1]} : vector<8x384xf32> to vector<8x64xf32>
    %180 = arith.truncf %177 : vector<8x64xf32> to vector<8x64xbf16>
    %181 = arith.truncf %178 : vector<8x64xf32> to vector<8x64xbf16>
    %cst_88 = arith.constant dense<0.000000e+00> : vector<8x8xf32>
    %182 = tpu.matmul %180, %181, %cst_88 {dimension_numbers = #tpu.dot_dimension_numbers<[1], [1], [0], [0], [0, 0, 1, 0], [], []>} : vector<8x64xbf16>, vector<8x64xbf16>, vector<8x8xf32> -> vector<8x8xf32>
    %cst_89 = arith.constant 1.250000e-01 : f32
    %183 = vector.broadcast %cst_89 : f32 to vector<8x8xf32>
    %184 = arith.mulf %182, %183 : vector<8x8xf32>
    %185 = vector.broadcast %1 : vector<1x8xf32> to vector<8x8xf32>
    %186 = arith.addf %184, %185 : vector<8x8xf32>
    %cst_90 = arith.constant dense<0xFF800000> : vector<8xf32>
    %187 = vector.multi_reduction <maximumf>, %186, %cst_90 [1] : vector<8x8xf32> to vector<8xf32>
    %188 = vector.shape_cast %187 : vector<8xf32> to vector<8x1xf32>
    %189 = vector.broadcast %188 : vector<8x1xf32> to vector<8x8xf32>
    %190 = arith.subf %186, %189 : vector<8x8xf32>
    %191 = math.exp %190 : vector<8x8xf32>
    %cst_91 = arith.constant dense<0.000000e+00> : vector<8xf32>
    %192 = vector.multi_reduction <add>, %191, %cst_91 [1] : vector<8x8xf32> to vector<8xf32>
    %193 = vector.shape_cast %192 : vector<8xf32> to vector<8x1xf32>
    %194 = vector.broadcast %193 : vector<8x1xf32> to vector<8x8xf32>
    %195 = arith.divf %191, %194 : vector<8x8xf32>
    %196 = arith.truncf %195 : vector<8x8xf32> to vector<8x8xbf16>
    %197 = arith.truncf %179 : vector<8x64xf32> to vector<8x64xbf16>
    %cst_92 = arith.constant dense<0.000000e+00> : vector<8x64xf32>
    %198 = tpu.matmul %196, %197, %cst_92 {dimension_numbers = #tpu.dot_dimension_numbers<[1], [0], [0], [1], [0, 0, 1, 1], [], []>} : vector<8x8xbf16>, vector<8x64xbf16>, vector<8x64xf32> -> vector<8x64xf32>
    %c0_93 = arith.constant 0 : index
    %c0_94 = arith.constant 0 : index
    %199 = vector.load %arg22[%c0_93, %c0_94] : memref<8x128xf32, #tpu.memory_space<vmem>>, vector<8x64xf32>
    tpu.vector_store %arg22[%c0_93, %c0_94], %198 {strides = array<i32>} : memref<8x128xf32, #tpu.memory_space<vmem>>, vector<8x64xf32>,
    %200 = vector.extract_strided_slice %176 {offsets = [0, 64], sizes = [8, 64], strides = [1, 1]} : vector<8x384xf32> to vector<8x64xf32>
    %201 = vector.extract_strided_slice %176 {offsets = [0, 192], sizes = [8, 64], strides = [1, 1]} : vector<8x384xf32> to vector<8x64xf32>
    %202 = vector.extract_strided_slice %176 {offsets = [0, 320], sizes = [8, 64], strides = [1, 1]} : vector<8x384xf32> to vector<8x64xf32>
    %203 = arith.truncf %200 : vector<8x64xf32> to vector<8x64xbf16>
    %204 = arith.truncf %201 : vector<8x64xf32> to vector<8x64xbf16>
    %cst_95 = arith.constant dense<0.000000e+00> : vector<8x8xf32>
    %205 = tpu.matmul %203, %204, %cst_95 {dimension_numbers = #tpu.dot_dimension_numbers<[1], [1], [0], [0], [0, 0, 1, 0], [], []>} : vector<8x64xbf16>, vector<8x64xbf16>, vector<8x8xf32> -> vector<8x8xf32>
    %cst_96 = arith.constant 1.250000e-01 : f32
    %206 = vector.broadcast %cst_96 : f32 to vector<8x8xf32>
    %207 = arith.mulf %205, %206 : vector<8x8xf32>
    %208 = vector.broadcast %1 : vector<1x8xf32> to vector<8x8xf32>
    %209 = arith.addf %207, %208 : vector<8x8xf32>
    %cst_97 = arith.constant dense<0xFF800000> : vector<8xf32>
    %210 = vector.multi_reduction <maximumf>, %209, %cst_97 [1] : vector<8x8xf32> to vector<8xf32>
    %211 = vector.shape_cast %210 : vector<8xf32> to vector<8x1xf32>
    %212 = vector.broadcast %211 : vector<8x1xf32> to vector<8x8xf32>
    %213 = arith.subf %209, %212 : vector<8x8xf32>
    %214 = math.exp %213 : vector<8x8xf32>
    %cst_98 = arith.constant dense<0.000000e+00> : vector<8xf32>
    %215 = vector.multi_reduction <add>, %214, %cst_98 [1] : vector<8x8xf32> to vector<8xf32>
    %216 = vector.shape_cast %215 : vector<8xf32> to vector<8x1xf32>
    %217 = vector.broadcast %216 : vector<8x1xf32> to vector<8x8xf32>
    %218 = arith.divf %214, %217 : vector<8x8xf32>
    %219 = arith.truncf %218 : vector<8x8xf32> to vector<8x8xbf16>
    %220 = arith.truncf %202 : vector<8x64xf32> to vector<8x64xbf16>
    %cst_99 = arith.constant dense<0.000000e+00> : vector<8x64xf32>
    %221 = tpu.matmul %219, %220, %cst_99 {dimension_numbers = #tpu.dot_dimension_numbers<[1], [0], [0], [1], [0, 0, 1, 1], [], []>} : vector<8x8xbf16>, vector<8x64xbf16>, vector<8x64xf32> -> vector<8x64xf32>
    %c0_100 = arith.constant 0 : index
    %c64_101 = arith.constant 64 : index
    %222 = vector.load %arg22[%c0_100, %c64_101] : memref<8x128xf32, #tpu.memory_space<vmem>>, vector<8x64xf32>
    tpu.vector_store %arg22[%c0_100, %c64_101], %221 {strides = array<i32>} : memref<8x128xf32, #tpu.memory_space<vmem>>, vector<8x64xf32>,
    %c0_102 = arith.constant 0 : index
    %c0_103 = arith.constant 0 : index
    %223 = vector.load %arg22[%c0_102, %c0_103] : memref<8x128xf32, #tpu.memory_space<vmem>>, vector<8x128xf32>
    %224 = arith.truncf %223 : vector<8x128xf32> to vector<8x128xbf16>
    %c1_104 = arith.constant 1 : index
    %c0_105 = arith.constant 0 : index
    %c0_106 = arith.constant 0 : index
    %225 = vector.load %arg7[%c1_104, %c0_105, %c0_106] : memref<2x128x128xbf16, #tpu.memory_space<vmem>>, vector<1x128x128xbf16>
    %226 = vector.shape_cast %225 : vector<1x128x128xbf16> to vector<128x128xbf16>
    %cst_107 = arith.constant dense<0.000000e+00> : vector<8x128xf32>
    %227 = tpu.matmul %224, %226, %cst_107 {dimension_numbers = #tpu.dot_dimension_numbers<[1], [0], [0], [1], [0, 0, 1, 1], [], []>} : vector<8x128xbf16>, vector<128x128xbf16>, vector<8x128xf32> -> vector<8x128xf32>
    %c1_108 = arith.constant 1 : index
    %c0_109 = arith.constant 0 : index
    %c0_110 = arith.constant 0 : index
    %228 = vector.load %arg8[%c1_108, %c0_109, %c0_110] : memref<2x1x128xf32, #tpu.memory_space<vmem>>, vector<1x1x128xf32>
    %229 = vector.shape_cast %228 : vector<1x1x128xf32> to vector<1x128xf32>
    %230 = vector.broadcast %229 : vector<1x128xf32> to vector<8x128xf32>
    %231 = arith.addf %227, %230 : vector<8x128xf32>
    %232 = arith.addf %231, %168 : vector<8x128xf32>
    %c1_111 = arith.constant 1 : index
    %c0_112 = arith.constant 0 : index
    %c0_113 = arith.constant 0 : index
    %233 = vector.load %arg9[%c1_111, %c0_112, %c0_113] : memref<2x1x128xf32, #tpu.memory_space<vmem>>, vector<1x1x128xf32>
    %234 = vector.shape_cast %233 : vector<1x1x128xf32> to vector<1x128xf32>
    %c1_114 = arith.constant 1 : index
    %c0_115 = arith.constant 0 : index
    %c0_116 = arith.constant 0 : index
    %235 = vector.load %arg10[%c1_114, %c0_115, %c0_116] : memref<2x1x128xf32, #tpu.memory_space<vmem>>, vector<1x1x128xf32>
    %236 = vector.shape_cast %235 : vector<1x1x128xf32> to vector<1x128xf32>
    %cst_117 = arith.constant dense<0.000000e+00> : vector<8xf32>
    %237 = vector.multi_reduction <add>, %232, %cst_117 [1] : vector<8x128xf32> to vector<8xf32>
    %238 = vector.shape_cast %237 : vector<8xf32> to vector<8x1xf32>
    %cst_118 = arith.constant 1.280000e+02 : f32
    %239 = vector.broadcast %cst_118 : f32 to vector<8x1xf32>
    %240 = arith.divf %238, %239 : vector<8x1xf32>
    %241 = vector.broadcast %240 : vector<8x1xf32> to vector<8x128xf32>
    %242 = arith.subf %232, %241 : vector<8x128xf32>
    %243 = arith.mulf %242, %242 : vector<8x128xf32>
    %cst_119 = arith.constant dense<0.000000e+00> : vector<8xf32>
    %244 = vector.multi_reduction <add>, %243, %cst_119 [1] : vector<8x128xf32> to vector<8xf32>
    %245 = vector.shape_cast %244 : vector<8xf32> to vector<8x1xf32>
    %cst_120 = arith.constant 1.280000e+02 : f32
    %246 = vector.broadcast %cst_120 : f32 to vector<8x1xf32>
    %247 = arith.divf %245, %246 : vector<8x1xf32>
    %cst_121 = arith.constant 9.99999996E-13 : f32
    %248 = vector.broadcast %cst_121 : f32 to vector<8x1xf32>
    %249 = arith.addf %247, %248 : vector<8x1xf32>
    %250 = math.rsqrt %249 : vector<8x1xf32>
    %251 = vector.broadcast %250 : vector<8x1xf32> to vector<8x128xf32>
    %252 = arith.mulf %242, %251 : vector<8x128xf32>
    %253 = vector.broadcast %234 : vector<1x128xf32> to vector<8x128xf32>
    %254 = arith.mulf %252, %253 : vector<8x128xf32>
    %255 = vector.broadcast %236 : vector<1x128xf32> to vector<8x128xf32>
    %256 = arith.addf %254, %255 : vector<8x128xf32>
    %257 = arith.truncf %256 : vector<8x128xf32> to vector<8x128xbf16>
    %c1_122 = arith.constant 1 : index
    %c0_123 = arith.constant 0 : index
    %c0_124 = arith.constant 0 : index
    %258 = vector.load %arg11[%c1_122, %c0_123, %c0_124] : memref<2x128x512xbf16, #tpu.memory_space<vmem>>, vector<1x128x512xbf16>
    %259 = vector.shape_cast %258 : vector<1x128x512xbf16> to vector<128x512xbf16>
    %cst_125 = arith.constant dense<0.000000e+00> : vector<8x512xf32>
    %260 = tpu.matmul %257, %259, %cst_125 {dimension_numbers = #tpu.dot_dimension_numbers<[1], [0], [0], [1], [0, 0, 1, 1], [], []>} : vector<8x128xbf16>, vector<128x512xbf16>, vector<8x512xf32> -> vector<8x512xf32>
    %c1_126 = arith.constant 1 : index
    %c0_127 = arith.constant 0 : index
    %c0_128 = arith.constant 0 : index
    %261 = vector.load %arg12[%c1_126, %c0_127, %c0_128] : memref<2x1x512xf32, #tpu.memory_space<vmem>>, vector<1x1x512xf32>
    %262 = vector.shape_cast %261 : vector<1x1x512xf32> to vector<1x512xf32>
    %263 = vector.broadcast %262 : vector<1x512xf32> to vector<8x512xf32>
    %264 = arith.addf %260, %263 : vector<8x512xf32>
    %cst_129 = arith.constant 0.636619746 : f32
    %265 = math.sqrt %cst_129 : f32
    %cst_130 = arith.constant 5.000000e-01 : f32
    %266 = vector.broadcast %cst_130 : f32 to vector<8x512xf32>
    %267 = arith.mulf %266, %264 : vector<8x512xf32>
    %cst_131 = arith.constant 4.471500e-02 : f32
    %268 = vector.broadcast %cst_131 : f32 to vector<8x512xf32>
    %269 = arith.mulf %268, %264 : vector<8x512xf32>
    %270 = arith.mulf %269, %264 : vector<8x512xf32>
    %271 = arith.mulf %270, %264 : vector<8x512xf32>
    %272 = arith.addf %264, %271 : vector<8x512xf32>
    %273 = vector.broadcast %265 : f32 to vector<8x512xf32>
    %274 = arith.mulf %273, %272 : vector<8x512xf32>
    %275 = math.tanh %274 : vector<8x512xf32>
    %cst_132 = arith.constant 1.000000e+00 : f32
    %276 = vector.broadcast %cst_132 : f32 to vector<8x512xf32>
    %277 = arith.addf %276, %275 : vector<8x512xf32>
    %278 = arith.mulf %267, %277 : vector<8x512xf32>
    %279 = arith.truncf %278 : vector<8x512xf32> to vector<8x512xbf16>
    %c1_133 = arith.constant 1 : index
    %c0_134 = arith.constant 0 : index
    %c0_135 = arith.constant 0 : index
    %280 = vector.load %arg13[%c1_133, %c0_134, %c0_135] : memref<2x512x128xbf16, #tpu.memory_space<vmem>>, vector<1x512x128xbf16>
    %281 = vector.shape_cast %280 : vector<1x512x128xbf16> to vector<512x128xbf16>
    %cst_136 = arith.constant dense<0.000000e+00> : vector<8x128xf32>
    %282 = tpu.matmul %279, %281, %cst_136 {dimension_numbers = #tpu.dot_dimension_numbers<[1], [0], [0], [1], [0, 0, 1, 1], [], []>} : vector<8x512xbf16>, vector<512x128xbf16>, vector<8x128xf32> -> vector<8x128xf32>
    %c1_137 = arith.constant 1 : index
    %c0_138 = arith.constant 0 : index
    %c0_139 = arith.constant 0 : index
    %283 = vector.load %arg14[%c1_137, %c0_138, %c0_139] : memref<2x1x128xf32, #tpu.memory_space<vmem>>, vector<1x1x128xf32>
    %284 = vector.shape_cast %283 : vector<1x1x128xf32> to vector<1x128xf32>
    %285 = vector.broadcast %284 : vector<1x128xf32> to vector<8x128xf32>
    %286 = arith.addf %282, %285 : vector<8x128xf32>
    %287 = arith.addf %286, %256 : vector<8x128xf32>
    %c1_140 = arith.constant 1 : index
    %c0_141 = arith.constant 0 : index
    %c0_142 = arith.constant 0 : index
    %288 = vector.load %arg15[%c1_140, %c0_141, %c0_142] : memref<2x1x128xf32, #tpu.memory_space<vmem>>, vector<1x1x128xf32>
    %289 = vector.shape_cast %288 : vector<1x1x128xf32> to vector<1x128xf32>
    %c1_143 = arith.constant 1 : index
    %c0_144 = arith.constant 0 : index
    %c0_145 = arith.constant 0 : index
    %290 = vector.load %arg16[%c1_143, %c0_144, %c0_145] : memref<2x1x128xf32, #tpu.memory_space<vmem>>, vector<1x1x128xf32>
    %291 = vector.shape_cast %290 : vector<1x1x128xf32> to vector<1x128xf32>
    %cst_146 = arith.constant dense<0.000000e+00> : vector<8xf32>
    %292 = vector.multi_reduction <add>, %287, %cst_146 [1] : vector<8x128xf32> to vector<8xf32>
    %293 = vector.shape_cast %292 : vector<8xf32> to vector<8x1xf32>
    %cst_147 = arith.constant 1.280000e+02 : f32
    %294 = vector.broadcast %cst_147 : f32 to vector<8x1xf32>
    %295 = arith.divf %293, %294 : vector<8x1xf32>
    %296 = vector.broadcast %295 : vector<8x1xf32> to vector<8x128xf32>
    %297 = arith.subf %287, %296 : vector<8x128xf32>
    %298 = arith.mulf %297, %297 : vector<8x128xf32>
    %cst_148 = arith.constant dense<0.000000e+00> : vector<8xf32>
    %299 = vector.multi_reduction <add>, %298, %cst_148 [1] : vector<8x128xf32> to vector<8xf32>
    %300 = vector.shape_cast %299 : vector<8xf32> to vector<8x1xf32>
    %cst_149 = arith.constant 1.280000e+02 : f32
    %301 = vector.broadcast %cst_149 : f32 to vector<8x1xf32>
    %302 = arith.divf %300, %301 : vector<8x1xf32>
    %cst_150 = arith.constant 9.99999996E-13 : f32
    %303 = vector.broadcast %cst_150 : f32 to vector<8x1xf32>
    %304 = arith.addf %302, %303 : vector<8x1xf32>
    %305 = math.rsqrt %304 : vector<8x1xf32>
    %306 = vector.broadcast %305 : vector<8x1xf32> to vector<8x128xf32>
    %307 = arith.mulf %297, %306 : vector<8x128xf32>
    %308 = vector.broadcast %289 : vector<1x128xf32> to vector<8x128xf32>
    %309 = arith.mulf %307, %308 : vector<8x128xf32>
    %310 = vector.broadcast %291 : vector<1x128xf32> to vector<8x128xf32>
    %311 = arith.addf %309, %310 : vector<8x128xf32>
    %312 = vector.extract_strided_slice %311 {offsets = [0, 0], sizes = [1, 128], strides = [1, 1]} : vector<8x128xf32> to vector<1x128xf32>
    %313 = arith.truncf %312 : vector<1x128xf32> to vector<1x128xbf16>
    %c0_151 = arith.constant 0 : index
    %c0_152 = arith.constant 0 : index
    %314 = vector.load %arg17[%c0_151, %c0_152] : memref<128x128xbf16, #tpu.memory_space<vmem>>, vector<128x128xbf16>
    %cst_153 = arith.constant dense<0.000000e+00> : vector<1x128xf32>
    %315 = tpu.matmul %313, %314, %cst_153 {dimension_numbers = #tpu.dot_dimension_numbers<[1], [0], [0], [1], [0, 0, 1, 1], [], []>} : vector<1x128xbf16>, vector<128x128xbf16>, vector<1x128xf32> -> vector<1x128xf32>
    %c0_154 = arith.constant 0 : index
    %c0_155 = arith.constant 0 : index
    %316 = vector.load %arg18[%c0_154, %c0_155] : memref<1x128xf32, #tpu.memory_space<vmem>>, vector<1x128xf32>
    %317 = arith.addf %315, %316 : vector<1x128xf32>
    %318 = math.tanh %317 : vector<1x128xf32>
    %319 = arith.truncf %318 : vector<1x128xf32> to vector<1x128xbf16>
    %c0_156 = arith.constant 0 : index
    %c0_157 = arith.constant 0 : index
    %320 = vector.load %arg19[%c0_156, %c0_157] : memref<128x128xbf16, #tpu.memory_space<vmem>>, vector<128x128xbf16>
    %cst_158 = arith.constant dense<0.000000e+00> : vector<1x128xf32>
    %321 = tpu.matmul %319, %320, %cst_158 {dimension_numbers = #tpu.dot_dimension_numbers<[1], [0], [0], [1], [0, 0, 1, 1], [], []>} : vector<1x128xbf16>, vector<128x128xbf16>, vector<1x128xf32> -> vector<1x128xf32>
    %c0_159 = arith.constant 0 : index
    %c0_160 = arith.constant 0 : index
    %322 = vector.load %arg20[%c0_159, %c0_160] : memref<1x128xf32, #tpu.memory_space<vmem>>, vector<1x128xf32>
    %323 = arith.addf %321, %322 : vector<1x128xf32>
    %c0_161 = arith.constant 0 : index
    %c0_162 = arith.constant 0 : index
    %c0_163 = arith.constant 0 : index
    %324 = vector.load %arg21[%c0_161, %c0_162, %c0_163] : memref<1x1x128xf32, #tpu.memory_space<vmem>>, vector<1x1x128xf32>
    %325 = vector.shape_cast %324 : vector<1x1x128xf32> to vector<1x128xf32>
    %326 = vector.shape_cast %323 : vector<1x128xf32> to vector<1x1x128xf32>
    tpu.vector_store %arg21[%c0_161, %c0_162, %c0_163], %326 {strides = array<i32>} : memref<1x1x128xf32, #tpu.memory_space<vmem>>, vector<1x1x128xf32>,
    return
  }
  func.func @transform_0(%arg0: i32) -> (i32, i32, i32) {
    %c0_i32 = arith.constant 0 : i32
    %c0_i32_0 = arith.constant 0 : i32
    %c0_i32_1 = arith.constant 0 : i32
    return %arg0, %c0_i32, %c0_i32_0 : i32, i32, i32
  }
  func.func @transform_1(%arg0: i32) -> (i32, i32, i32) {
    %c0_i32 = arith.constant 0 : i32
    %c0_i32_0 = arith.constant 0 : i32
    %c0_i32_1 = arith.constant 0 : i32
    return %arg0, %c0_i32, %c0_i32_0 : i32, i32, i32
  }
  func.func @transform_2(%arg0: i32) -> (i32, i32) {
    %c0_i32 = arith.constant 0 : i32
    %c0_i32_0 = arith.constant 0 : i32
    %c0_i32_1 = arith.constant 0 : i32
    return %c0_i32, %c0_i32_0 : i32, i32
  }
  func.func @transform_3(%arg0: i32) -> (i32, i32) {
    %c0_i32 = arith.constant 0 : i32
    %c0_i32_0 = arith.constant 0 : i32
    %c0_i32_1 = arith.constant 0 : i32
    return %c0_i32, %c0_i32_0 : i32, i32
  }
  func.func @transform_4(%arg0: i32) -> (i32, i32, i32) {
    %c0_i32 = arith.constant 0 : i32
    %c0_i32_0 = arith.constant 0 : i32
    %c0_i32_1 = arith.constant 0 : i32
    %c0_i32_2 = arith.constant 0 : i32
    return %c0_i32, %c0_i32_0, %c0_i32_1 : i32, i32, i32
  }
  func.func @transform_5(%arg0: i32) -> (i32, i32, i32) {
    %c0_i32 = arith.constant 0 : i32
    %c0_i32_0 = arith.constant 0 : i32
    %c0_i32_1 = arith.constant 0 : i32
    %c0_i32_2 = arith.constant 0 : i32
    return %c0_i32, %c0_i32_0, %c0_i32_1 : i32, i32, i32
  }
  func.func @transform_6(%arg0: i32) -> (i32, i32, i32) {
    %c0_i32 = arith.constant 0 : i32
    %c0_i32_0 = arith.constant 0 : i32
    %c0_i32_1 = arith.constant 0 : i32
    %c0_i32_2 = arith.constant 0 : i32
    return %c0_i32, %c0_i32_0, %c0_i32_1 : i32, i32, i32
  }
  func.func @transform_7(%arg0: i32) -> (i32, i32, i32) {
    %c0_i32 = arith.constant 0 : i32
    %c0_i32_0 = arith.constant 0 : i32
    %c0_i32_1 = arith.constant 0 : i32
    %c0_i32_2 = arith.constant 0 : i32
    return %c0_i32, %c0_i32_0, %c0_i32_1 : i32, i32, i32
  }
  func.func @transform_8(%arg0: i32) -> (i32, i32, i32) {
    %c0_i32 = arith.constant 0 : i32
    %c0_i32_0 = arith.constant 0 : i32
    %c0_i32_1 = arith.constant 0 : i32
    %c0_i32_2 = arith.constant 0 : i32
    return %c0_i32, %c0_i32_0, %c0_i32_1 : i32, i32, i32
  }
  func.func @transform_9(%arg0: i32) -> (i32, i32, i32) {
    %c0_i32 = arith.constant 0 : i32
    %c0_i32_0 = arith.constant 0 : i32
    %c0_i32_1 = arith.constant 0 : i32
    %c0_i32_2 = arith.constant 0 : i32
    return %c0_i32, %c0_i32_0, %c0_i32_1 : i32, i32, i32
  }
  func.func @transform_10(%arg0: i32) -> (i32, i32, i32) {
    %c0_i32 = arith.constant 0 : i32
    %c0_i32_0 = arith.constant 0 : i32
    %c0_i32_1 = arith.constant 0 : i32
    %c0_i32_2 = arith.constant 0 : i32
    return %c0_i32, %c0_i32_0, %c0_i32_1 : i32, i32, i32
  }
  func.func @transform_11(%arg0: i32) -> (i32, i32, i32) {
    %c0_i32 = arith.constant 0 : i32
    %c0_i32_0 = arith.constant 0 : i32
    %c0_i32_1 = arith.constant 0 : i32
    %c0_i32_2 = arith.constant 0 : i32
    return %c0_i32, %c0_i32_0, %c0_i32_1 : i32, i32, i32
  }
  func.func @transform_12(%arg0: i32) -> (i32, i32, i32) {
    %c0_i32 = arith.constant 0 : i32
    %c0_i32_0 = arith.constant 0 : i32
    %c0_i32_1 = arith.constant 0 : i32
    %c0_i32_2 = arith.constant 0 : i32
    return %c0_i32, %c0_i32_0, %c0_i32_1 : i32, i32, i32
  }
  func.func @transform_13(%arg0: i32) -> (i32, i32, i32) {
    %c0_i32 = arith.constant 0 : i32
    %c0_i32_0 = arith.constant 0 : i32
    %c0_i32_1 = arith.constant 0 : i32
    %c0_i32_2 = arith.constant 0 : i32
    return %c0_i32, %c0_i32_0, %c0_i32_1 : i32, i32, i32
  }
  func.func @transform_14(%arg0: i32) -> (i32, i32, i32) {
    %c0_i32 = arith.constant 0 : i32
    %c0_i32_0 = arith.constant 0 : i32
    %c0_i32_1 = arith.constant 0 : i32
    %c0_i32_2 = arith.constant 0 : i32
    return %c0_i32, %c0_i32_0, %c0_i32_1 : i32, i32, i32
  }
  func.func @transform_15(%arg0: i32) -> (i32, i32, i32) {
    %c0_i32 = arith.constant 0 : i32
    %c0_i32_0 = arith.constant 0 : i32
    %c0_i32_1 = arith.constant 0 : i32
    %c0_i32_2 = arith.constant 0 : i32
    return %c0_i32, %c0_i32_0, %c0_i32_1 : i32, i32, i32
  }
  func.func @transform_16(%arg0: i32) -> (i32, i32) {
    %c0_i32 = arith.constant 0 : i32
    %c0_i32_0 = arith.constant 0 : i32
    %c0_i32_1 = arith.constant 0 : i32
    return %c0_i32, %c0_i32_0 : i32, i32
  }
  func.func @transform_17(%arg0: i32) -> (i32, i32) {
    %c0_i32 = arith.constant 0 : i32
    %c0_i32_0 = arith.constant 0 : i32
    %c0_i32_1 = arith.constant 0 : i32
    return %c0_i32, %c0_i32_0 : i32, i32
  }
  func.func @transform_18(%arg0: i32) -> (i32, i32) {
    %c0_i32 = arith.constant 0 : i32
    %c0_i32_0 = arith.constant 0 : i32
    %c0_i32_1 = arith.constant 0 : i32
    return %c0_i32, %c0_i32_0 : i32, i32
  }
  func.func @transform_19(%arg0: i32) -> (i32, i32) {
    %c0_i32 = arith.constant 0 : i32
    %c0_i32_0 = arith.constant 0 : i32
    %c0_i32_1 = arith.constant 0 : i32
    return %c0_i32, %c0_i32_0 : i32, i32
  }
  func.func @transform_20(%arg0: i32) -> (i32, i32, i32) {
    %c0_i32 = arith.constant 0 : i32
    %c0_i32_0 = arith.constant 0 : i32
    %c0_i32_1 = arith.constant 0 : i32
    return %arg0, %c0_i32, %c0_i32_0 : i32, i32, i32
  }
}

</mosaic_0001>

<llo_original>
// kernel: bert_class_forward.1
$region0: #{bert_class_forward.1}
  #allocation0 [shape = 'u32[]', space=smem, size = 0x4, offset = 0x4, fixed_abs, tag = 'smem constant byte address 0x4 - core index']
  #allocation1 [shape = 'u32[144,128]{1,0:T(1,128)}', space=vmem, size = 0x12000, scoped, tag = 'internal scratch']
  #allocation2 [shape = 'f32[8,128]{1,0:T(8,128)}', space=vmem, size = 0x1000, scoped, tag = 'scratch operand']
  %s0 = inlined_call_operand.vmem [shape: f32[2,8,128], index: 0, kind: input, shape index: {}]
  %s1 = inlined_call_operand.vmem [shape: f32[2,1,8], index: 1, kind: input, shape index: {}]
  %s2 = inlined_call_operand.vmem [shape: f32[1,128], index: 2, kind: input, shape index: {}]
  %s3 = inlined_call_operand.vmem [shape: f32[1,128], index: 3, kind: input, shape index: {}]
  %s4 = inlined_call_operand.vmem [shape: bf16[2,128,384], index: 4, kind: input, shape index: {}]
  %s5 = inlined_call_operand.vmem [shape: f32[2,1,384], index: 5, kind: input, shape index: {}]
  %s6 = inlined_call_operand.vmem [shape: bf16[2,128,128], index: 6, kind: input, shape index: {}]
  %s7 = inlined_call_operand.vmem [shape: f32[2,1,128], index: 7, kind: input, shape index: {}]
  %s8 = inlined_call_operand.vmem [shape: f32[2,1,128], index: 8, kind: input, shape index: {}]
  %s9 = inlined_call_operand.vmem [shape: f32[2,1,128], index: 9, kind: input, shape index: {}]
  %s10 = inlined_call_operand.vmem [shape: bf16[2,128,512], index: 10, kind: input, shape index: {}]
  %s11 = inlined_call_operand.vmem [shape: f32[2,1,512], index: 11, kind: input, shape index: {}]
  %s12 = inlined_call_operand.vmem [shape: bf16[2,512,128], index: 12, kind: input, shape index: {}]
  %s13 = inlined_call_operand.vmem [shape: f32[2,1,128], index: 13, kind: input, shape index: {}]
  %s14 = inlined_call_operand.vmem [shape: f32[2,1,128], index: 14, kind: input, shape index: {}]
  %s15 = inlined_call_operand.vmem [shape: f32[2,1,128], index: 15, kind: input, shape index: {}]
  %s16 = inlined_call_operand.vmem [shape: bf16[128,128], index: 16, kind: input, shape index: {}]
  %s17 = inlined_call_operand.vmem [shape: f32[1,128], index: 17, kind: input, shape index: {}]
  %s18 = inlined_call_operand.vmem [shape: bf16[128,128], index: 18, kind: input, shape index: {}]
  %s19 = inlined_call_operand.vmem [shape: f32[1,128], index: 19, kind: input, shape index: {}]
  %s20 = inlined_call_operand.hbm [shape: f32[2,1,128], index: 20, kind: output, shape index: {}]
  %s21 = sld [smem:[#allocation0]]
  $region113: #{bert_class_forward.1} parent=0
    _
  %s23 = ssub.s32 1, %s21
  %s24 = scalar_select 0, %s23, %s21
  $region1: #{bert_class_forward.1} parent=0
    #allocation3 [shape = 'u8[1024]{0}', space=vmem, size = 0x400, scoped, tag = 'output window, operand 0']
    #allocation4 [shape = 's32[2]{0}', space=sflag, size = 0x8, scoped, tag = 'scoped memory for bert_class_forward.1']
    %25 = vsyncpa [#allocation4], 0
    %s26 = scalar_lea.sflag [#allocation4], 1
    %27 = vsyncpa %s26, 0
    loop: start=0, step=1, limit=4
    $region2: #{bert_class_forward.1} parent=1 // loop_pre_header
      _
    $region3: #{bert_class_forward.1} parent=1 // loop_header
      %s29 = sphi 0, %s33
      %p30 = scmp.ge.s32.totalorder %s29, 4
      %s39 = sphi 0, %s41
      %s42 = sphi 0, %s39
      %s43 = sphi 0, %s42
      %s59 = sphi 0, %s43
      %s65 = sphi 0, %s67
      %s68 = sphi 0, %s65
      %s69 = sphi 0, %s68
      %s85 = sphi 0, %s69
      %s89 = sphi 0, %s89
      %s91 = sphi 0, %s89
      %s92 = sphi 0, %s91
      %s106 = sphi 0, %s92
      %s110 = sphi 0, %s110
      %s112 = sphi 0, %s110
      %s113 = sphi 0, %s112
      %s127 = sphi 0, %s113
      %s131 = sphi 0, %s131
      %s133 = sphi 0, %s131
      %s134 = sphi 0, %s133
      %s148 = sphi 0, %s134
      %s152 = sphi 0, %s152
      %s154 = sphi 0, %s152
      %s155 = sphi 0, %s154
      %s169 = sphi 0, %s155
      %s173 = sphi 0, %s173
      %s175 = sphi 0, %s173
      %s176 = sphi 0, %s175
      %s190 = sphi 0, %s176
      %s194 = sphi 0, %s194
      %s196 = sphi 0, %s194
      %s197 = sphi 0, %s196
      %s211 = sphi 0, %s197
      %s215 = sphi 0, %s215
      %s217 = sphi 0, %s215
      %s218 = sphi 0, %s217
      %s232 = sphi 0, %s218
      %s236 = sphi 0, %s236
      %s238 = sphi 0, %s236
      %s239 = sphi 0, %s238
      %s253 = sphi 0, %s239
      %s257 = sphi 0, %s257
      %s259 = sphi 0, %s257
      %s260 = sphi 0, %s259
      %s274 = sphi 0, %s260
      %s278 = sphi 0, %s278
      %s280 = sphi 0, %s278
      %s281 = sphi 0, %s280
      %s295 = sphi 0, %s281
      %s299 = sphi 0, %s299
      %s301 = sphi 0, %s299
      %s302 = sphi 0, %s301
      %s316 = sphi 0, %s302
      %s320 = sphi 0, %s320
      %s322 = sphi 0, %s320
      %s323 = sphi 0, %s322
      %s337 = sphi 0, %s323
      %s341 = sphi 0, %s341
      %s343 = sphi 0, %s341
      %s344 = sphi 0, %s343
      %s358 = sphi 0, %s344
      %s362 = sphi 0, %s362
      %s364 = sphi 0, %s362
      %s365 = sphi 0, %s364
      %s379 = sphi 0, %s365
      %s383 = sphi 0, %s383
      %s385 = sphi 0, %s383
      %s386 = sphi 0, %s385
      %s400 = sphi 0, %s386
      %s404 = sphi 0, %s404
      %s406 = sphi 0, %s404
      %s407 = sphi 0, %s406
      %s421 = sphi 0, %s407
      %s425 = sphi 0, %s425
      %s427 = sphi 0, %s425
      %s428 = sphi 0, %s427
      %s442 = sphi 0, %s428
      %s446 = sphi 0, %s446
      %s448 = sphi 0, %s446
      %s449 = sphi 0, %s448
      %s463 = sphi 0, %s449
      %s469 = sphi 0, %s471
      %s472 = sphi 0, %s469
      %s473 = sphi 0, %s472
      %s489 = sphi 0, %s473
    $region4: #{bert_class_forward.1} parent=1 // loop_header_branch
      %32 = sbr.rel (%p30) target = $region8
    $region5: #{bert_class_forward.1} parent=1 // loop_body
      %s34 = ssub.s32 %s29, 1
      %s35 = ssub.s32 %s29, 2
      %s36 = sadd.s32 %s29, 1
      %s37 = ssub.s32 %s29, %s36
      %p38 = scmp.eq.s32.totalorder %s37, 0
      %s40 = sadd.s32 %s39, 1
      %s41 = scalar_select %p38, %s39, %s40
      %p44 = pneg %p38
      %p45 = scmp.eq.s32.totalorder %s29, 1
      %p46 = por %p44, %p45
      %p47 = scmp.ne.s32.totalorder %s39, %s42
      %p48 = scmp.eq.s32.totalorder %s29, 0
      %p49 = por %p47, %p48
      %p50 = scmp.ne.s32.totalorder %s39, %s42
      %p51 = scmp.eq.s32.totalorder %s34, 1
      %p52 = por %p50, %p51
      %p53 = scmp.ne.s32.totalorder %s42, %s43
      %p54 = scmp.eq.s32.totalorder %s34, 0
      %p55 = por %p53, %p54
      %p56 = scmp.ne.s32.totalorder %s42, %s43
      %p57 = scmp.eq.s32.totalorder %s35, 1
      %p58 = por %p56, %p57
      %p60 = scmp.ne.s32.totalorder %s43, %s59
      %p61 = scmp.eq.s32.totalorder %s35, 0
      %p62 = por %p60, %p61
      %s63 = ssub.s32 %s29, %s36
      %p64 = scmp.eq.s32.totalorder %s63, 0
      %s66 = sadd.s32 %s65, 1
      %s67 = scalar_select %p64, %s65, %s66
      %p70 = pneg %p64
      %p71 = scmp.eq.s32.totalorder %s29, 1
      %p72 = por %p70, %p71
      %p73 = scmp.ne.s32.totalorder %s65, %s68
      %p74 = scmp.eq.s32.totalorder %s29, 0
      %p75 = por %p73, %p74
      %p76 = scmp.ne.s32.totalorder %s65, %s68
      %p77 = scmp.eq.s32.totalorder %s34, 1
      %p78 = por %p76, %p77
      %p79 = scmp.ne.s32.totalorder %s68, %s69
      %p80 = scmp.eq.s32.totalorder %s34, 0
      %p81 = por %p79, %p80
      %p82 = scmp.ne.s32.totalorder %s68, %s69
      %p83 = scmp.eq.s32.totalorder %s35, 1
      %p84 = por %p82, %p83
      %p86 = scmp.ne.s32.totalorder %s69, %s85
      %p87 = scmp.eq.s32.totalorder %s35, 0
      %p88 = por %p86, %p87
      %s90 = sadd.s32 %s89, 1
      %p93 = scmp.eq.s32.totalorder %s29, 1
      %p94 = scmp.ne.s32.totalorder %s89, %s91
      %p95 = scmp.eq.s32.totalorder %s29, 0
      %p96 = por %p94, %p95
      %p97 = scmp.ne.s32.totalorder %s89, %s91
      %p98 = scmp.eq.s32.totalorder %s34, 1
      %p99 = por %p97, %p98
      %p100 = scmp.ne.s32.totalorder %s91, %s92
      %p101 = scmp.eq.s32.totalorder %s34, 0
      %p102 = por %p100, %p101
      %p103 = scmp.ne.s32.totalorder %s91, %s92
      %p104 = scmp.eq.s32.totalorder %s35, 1
      %p105 = por %p103, %p104
      %p107 = scmp.ne.s32.totalorder %s92, %s106
      %p108 = scmp.eq.s32.totalorder %s35, 0
      %p109 = por %p107, %p108
      %s111 = sadd.s32 %s110, 1
      %p114 = scmp.eq.s32.totalorder %s29, 1
      %p115 = scmp.ne.s32.totalorder %s110, %s112
      %p116 = scmp.eq.s32.totalorder %s29, 0
      %p117 = por %p115, %p116
      %p118 = scmp.ne.s32.totalorder %s110, %s112
      %p119 = scmp.eq.s32.totalorder %s34, 1
      %p120 = por %p118, %p119
      %p121 = scmp.ne.s32.totalorder %s112, %s113
      %p122 = scmp.eq.s32.totalorder %s34, 0
      %p123 = por %p121, %p122
      %p124 = scmp.ne.s32.totalorder %s112, %s113
      %p125 = scmp.eq.s32.totalorder %s35, 1
      %p126 = por %p124, %p125
      %p128 = scmp.ne.s32.totalorder %s113, %s127
      %p129 = scmp.eq.s32.totalorder %s35, 0
      %p130 = por %p128, %p129
      %s132 = sadd.s32 %s131, 1
      %p135 = scmp.eq.s32.totalorder %s29, 1
      %p136 = scmp.ne.s32.totalorder %s131, %s133
      %p137 = scmp.eq.s32.totalorder %s29, 0
      %p138 = por %p136, %p137
      %p139 = scmp.ne.s32.totalorder %s131, %s133
      %p140 = scmp.eq.s32.totalorder %s34, 1
      %p141 = por %p139, %p140
      %p142 = scmp.ne.s32.totalorder %s133, %s134
      %p143 = scmp.eq.s32.totalorder %s34, 0
      %p144 = por %p142, %p143
      %p145 = scmp.ne.s32.totalorder %s133, %s134
      %p146 = scmp.eq.s32.totalorder %s35, 1
      %p147 = por %p145, %p146
      %p149 = scmp.ne.s32.totalorder %s134, %s148
      %p150 = scmp.eq.s32.totalorder %s35, 0
      %p151 = por %p149, %p150
      %s153 = sadd.s32 %s152, 1
      %p156 = scmp.eq.s32.totalorder %s29, 1
      %p157 = scmp.ne.s32.totalorder %s152, %s154
      %p158 = scmp.eq.s32.totalorder %s29, 0
      %p159 = por %p157, %p158
      %p160 = scmp.ne.s32.totalorder %s152, %s154
      %p161 = scmp.eq.s32.totalorder %s34, 1
      %p162 = por %p160, %p161
      %p163 = scmp.ne.s32.totalorder %s154, %s155
      %p164 = scmp.eq.s32.totalorder %s34, 0
      %p165 = por %p163, %p164
      %p166 = scmp.ne.s32.totalorder %s154, %s155
      %p167 = scmp.eq.s32.totalorder %s35, 1
      %p168 = por %p166, %p167
      %p170 = scmp.ne.s32.totalorder %s155, %s169
      %p171 = scmp.eq.s32.totalorder %s35, 0
      %p172 = por %p170, %p171
      %s174 = sadd.s32 %s173, 1
      %p177 = scmp.eq.s32.totalorder %s29, 1
      %p178 = scmp.ne.s32.totalorder %s173, %s175
      %p179 = scmp.eq.s32.totalorder %s29, 0
      %p180 = por %p178, %p179
      %p181 = scmp.ne.s32.totalorder %s173, %s175
      %p182 = scmp.eq.s32.totalorder %s34, 1
      %p183 = por %p181, %p182
      %p184 = scmp.ne.s32.totalorder %s175, %s176
      %p185 = scmp.eq.s32.totalorder %s34, 0
      %p186 = por %p184, %p185
      %p187 = scmp.ne.s32.totalorder %s175, %s176
      %p188 = scmp.eq.s32.totalorder %s35, 1
      %p189 = por %p187, %p188
      %p191 = scmp.ne.s32.totalorder %s176, %s190
      %p192 = scmp.eq.s32.totalorder %s35, 0
      %p193 = por %p191, %p192
      %s195 = sadd.s32 %s194, 1
      %p198 = scmp.eq.s32.totalorder %s29, 1
      %p199 = scmp.ne.s32.totalorder %s194, %s196
      %p200 = scmp.eq.s32.totalorder %s29, 0
      %p201 = por %p199, %p200
      %p202 = scmp.ne.s32.totalorder %s194, %s196
      %p203 = scmp.eq.s32.totalorder %s34, 1
      %p204 = por %p202, %p203
      %p205 = scmp.ne.s32.totalorder %s196, %s197
      %p206 = scmp.eq.s32.totalorder %s34, 0
      %p207 = por %p205, %p206
      %p208 = scmp.ne.s32.totalorder %s196, %s197
      %p209 = scmp.eq.s32.totalorder %s35, 1
      %p210 = por %p208, %p209
      %p212 = scmp.ne.s32.totalorder %s197, %s211
      %p213 = scmp.eq.s32.totalorder %s35, 0
      %p214 = por %p212, %p213
      %s216 = sadd.s32 %s215, 1
      %p219 = scmp.eq.s32.totalorder %s29, 1
      %p220 = scmp.ne.s32.totalorder %s215, %s217
      %p221 = scmp.eq.s32.totalorder %s29, 0
      %p222 = por %p220, %p221
      %p223 = scmp.ne.s32.totalorder %s215, %s217
      %p224 = scmp.eq.s32.totalorder %s34, 1
      %p225 = por %p223, %p224
      %p226 = scmp.ne.s32.totalorder %s217, %s218
      %p227 = scmp.eq.s32.totalorder %s34, 0
      %p228 = por %p226, %p227
      %p229 = scmp.ne.s32.totalorder %s217, %s218
      %p230 = scmp.eq.s32.totalorder %s35, 1
      %p231 = por %p229, %p230
      %p233 = scmp.ne.s32.totalorder %s218, %s232
      %p234 = scmp.eq.s32.totalorder %s35, 0
      %p235 = por %p233, %p234
      %s237 = sadd.s32 %s236, 1
      %p240 = scmp.eq.s32.totalorder %s29, 1
      %p241 = scmp.ne.s32.totalorder %s236, %s238
      %p242 = scmp.eq.s32.totalorder %s29, 0
      %p243 = por %p241, %p242
      %p244 = scmp.ne.s32.totalorder %s236, %s238
      %p245 = scmp.eq.s32.totalorder %s34, 1
      %p246 = por %p244, %p245
      %p247 = scmp.ne.s32.totalorder %s238, %s239
      %p248 = scmp.eq.s32.totalorder %s34, 0
      %p249 = por %p247, %p248
      %p250 = scmp.ne.s32.totalorder %s238, %s239
      %p251 = scmp.eq.s32.totalorder %s35, 1
      %p252 = por %p250, %p251
      %p254 = scmp.ne.s32.totalorder %s239, %s253
      %p255 = scmp.eq.s32.totalorder %s35, 0
      %p256 = por %p254, %p255
      %s258 = sadd.s32 %s257, 1
      %p261 = scmp.eq.s32.totalorder %s29, 1
      %p262 = scmp.ne.s32.totalorder %s257, %s259
      %p263 = scmp.eq.s32.totalorder %s29, 0
      %p264 = por %p262, %p263
      %p265 = scmp.ne.s32.totalorder %s257, %s259
      %p266 = scmp.eq.s32.totalorder %s34, 1
      %p267 = por %p265, %p266
      %p268 = scmp.ne.s32.totalorder %s259, %s260
      %p269 = scmp.eq.s32.totalorder %s34, 0
      %p270 = por %p268, %p269
      %p271 = scmp.ne.s32.totalorder %s259, %s260
      %p272 = scmp.eq.s32.totalorder %s35, 1
      %p273 = por %p271, %p272
      %p275 = scmp.ne.s32.totalorder %s260, %s274
      %p276 = scmp.eq.s32.totalorder %s35, 0
      %p277 = por %p275, %p276
      %s279 = sadd.s32 %s278, 1
      %p282 = scmp.eq.s32.totalorder %s29, 1
      %p283 = scmp.ne.s32.totalorder %s278, %s280
      %p284 = scmp.eq.s32.totalorder %s29, 0
      %p285 = por %p283, %p284
      %p286 = scmp.ne.s32.totalorder %s278, %s280
      %p287 = scmp.eq.s32.totalorder %s34, 1
      %p288 = por %p286, %p287
      %p289 = scmp.ne.s32.totalorder %s280, %s281
      %p290 = scmp.eq.s32.totalorder %s34, 0
      %p291 = por %p289, %p290
      %p292 = scmp.ne.s32.totalorder %s280, %s281
      %p293 = scmp.eq.s32.totalorder %s35, 1
      %p294 = por %p292, %p293
      %p296 = scmp.ne.s32.totalorder %s281, %s295
      %p297 = scmp.eq.s32.totalorder %s35, 0
      %p298 = por %p296, %p297
      %s300 = sadd.s32 %s299, 1
      %p303 = scmp.eq.s32.totalorder %s29, 1
      %p304 = scmp.ne.s32.totalorder %s299, %s301
      %p305 = scmp.eq.s32.totalorder %s29, 0
      %p306 = por %p304, %p305
      %p307 = scmp.ne.s32.totalorder %s299, %s301
      %p308 = scmp.eq.s32.totalorder %s34, 1
      %p309 = por %p307, %p308
      %p310 = scmp.ne.s32.totalorder %s301, %s302
      %p311 = scmp.eq.s32.totalorder %s34, 0
      %p312 = por %p310, %p311
      %p313 = scmp.ne.s32.totalorder %s301, %s302
      %p314 = scmp.eq.s32.totalorder %s35, 1
      %p315 = por %p313, %p314
      %p317 = scmp.ne.s32.totalorder %s302, %s316
      %p318 = scmp.eq.s32.totalorder %s35, 0
      %p319 = por %p317, %p318
      %s321 = sadd.s32 %s320, 1
      %p324 = scmp.eq.s32.totalorder %s29, 1
      %p325 = scmp.ne.s32.totalorder %s320, %s322
      %p326 = scmp.eq.s32.totalorder %s29, 0
      %p327 = por %p325, %p326
      %p328 = scmp.ne.s32.totalorder %s320, %s322
      %p329 = scmp.eq.s32.totalorder %s34, 1
      %p330 = por %p328, %p329
      %p331 = scmp.ne.s32.totalorder %s322, %s323
      %p332 = scmp.eq.s32.totalorder %s34, 0
      %p333 = por %p331, %p332
      %p334 = scmp.ne.s32.totalorder %s322, %s323
      %p335 = scmp.eq.s32.totalorder %s35, 1
      %p336 = por %p334, %p335
      %p338 = scmp.ne.s32.totalorder %s323, %s337
      %p339 = scmp.eq.s32.totalorder %s35, 0
      %p340 = por %p338, %p339
      %s342 = sadd.s32 %s341, 1
      %p345 = scmp.eq.s32.totalorder %s29, 1
      %p346 = scmp.ne.s32.totalorder %s341, %s343
      %p347 = scmp.eq.s32.totalorder %s29, 0
      %p348 = por %p346, %p347
      %p349 = scmp.ne.s32.totalorder %s341, %s343
      %p350 = scmp.eq.s32.totalorder %s34, 1
      %p351 = por %p349, %p350
      %p352 = scmp.ne.s32.totalorder %s343, %s344
      %p353 = scmp.eq.s32.totalorder %s34, 0
      %p354 = por %p352, %p353
      %p355 = scmp.ne.s32.totalorder %s343, %s344
      %p356 = scmp.eq.s32.totalorder %s35, 1
      %p357 = por %p355, %p356
      %p359 = scmp.ne.s32.totalorder %s344, %s358
      %p360 = scmp.eq.s32.totalorder %s35, 0
      %p361 = por %p359, %p360
      %s363 = sadd.s32 %s362, 1
      %p366 = scmp.eq.s32.totalorder %s29, 1
      %p367 = scmp.ne.s32.totalorder %s362, %s364
      %p368 = scmp.eq.s32.totalorder %s29, 0
      %p369 = por %p367, %p368
      %p370 = scmp.ne.s32.totalorder %s362, %s364
      %p371 = scmp.eq.s32.totalorder %s34, 1
      %p372 = por %p370, %p371
      %p373 = scmp.ne.s32.totalorder %s364, %s365
      %p374 = scmp.eq.s32.totalorder %s34, 0
      %p375 = por %p373, %p374
      %p376 = scmp.ne.s32.totalorder %s364, %s365
      %p377 = scmp.eq.s32.totalorder %s35, 1
      %p378 = por %p376, %p377
      %p380 = scmp.ne.s32.totalorder %s365, %s379
      %p381 = scmp.eq.s32.totalorder %s35, 0
      %p382 = por %p380, %p381
      %s384 = sadd.s32 %s383, 1
      %p387 = scmp.eq.s32.totalorder %s29, 1
      %p388 = scmp.ne.s32.totalorder %s383, %s385
      %p389 = scmp.eq.s32.totalorder %s29, 0
      %p390 = por %p388, %p389
      %p391 = scmp.ne.s32.totalorder %s383, %s385
      %p392 = scmp.eq.s32.totalorder %s34, 1
      %p393 = por %p391, %p392
      %p394 = scmp.ne.s32.totalorder %s385, %s386
      %p395 = scmp.eq.s32.totalorder %s34, 0
      %p396 = por %p394, %p395
      %p397 = scmp.ne.s32.totalorder %s385, %s386
      %p398 = scmp.eq.s32.totalorder %s35, 1
      %p399 = por %p397, %p398
      %p401 = scmp.ne.s32.totalorder %s386, %s400
      %p402 = scmp.eq.s32.totalorder %s35, 0
      %p403 = por %p401, %p402
      %s405 = sadd.s32 %s404, 1
      %p408 = scmp.eq.s32.totalorder %s29, 1
      %p409 = scmp.ne.s32.totalorder %s404, %s406
      %p410 = scmp.eq.s32.totalorder %s29, 0
      %p411 = por %p409, %p410
      %p412 = scmp.ne.s32.totalorder %s404, %s406
      %p413 = scmp.eq.s32.totalorder %s34, 1
      %p414 = por %p412, %p413
      %p415 = scmp.ne.s32.totalorder %s406, %s407
      %p416 = scmp.eq.s32.totalorder %s34, 0
      %p417 = por %p415, %p416
      %p418 = scmp.ne.s32.totalorder %s406, %s407
      %p419 = scmp.eq.s32.totalorder %s35, 1
      %p420 = por %p418, %p419
      %p422 = scmp.ne.s32.totalorder %s407, %s421
      %p423 = scmp.eq.s32.totalorder %s35, 0
      %p424 = por %p422, %p423
      %s426 = sadd.s32 %s425, 1
      %p429 = scmp.eq.s32.totalorder %s29, 1
      %p430 = scmp.ne.s32.totalorder %s425, %s427
      %p431 = scmp.eq.s32.totalorder %s29, 0
      %p432 = por %p430, %p431
      %p433 = scmp.ne.s32.totalorder %s425, %s427
      %p434 = scmp.eq.s32.totalorder %s34, 1
      %p435 = por %p433, %p434
      %p436 = scmp.ne.s32.totalorder %s427, %s428
      %p437 = scmp.eq.s32.totalorder %s34, 0
      %p438 = por %p436, %p437
      %p439 = scmp.ne.s32.totalorder %s427, %s428
      %p440 = scmp.eq.s32.totalorder %s35, 1
      %p441 = por %p439, %p440
      %p443 = scmp.ne.s32.totalorder %s428, %s442
      %p444 = scmp.eq.s32.totalorder %s35, 0
      %p445 = por %p443, %p444
      %s447 = sadd.s32 %s446, 1
      %p450 = scmp.eq.s32.totalorder %s29, 1
      %p451 = scmp.ne.s32.totalorder %s446, %s448
      %p452 = scmp.eq.s32.totalorder %s29, 0
      %p453 = por %p451, %p452
      %p454 = scmp.ne.s32.totalorder %s446, %s448
      %p455 = scmp.eq.s32.totalorder %s34, 1
      %p456 = por %p454, %p455
      %p457 = scmp.ne.s32.totalorder %s448, %s449
      %p458 = scmp.eq.s32.totalorder %s34, 0
      %p459 = por %p457, %p458
      %p460 = scmp.ne.s32.totalorder %s448, %s449
      %p461 = scmp.eq.s32.totalorder %s35, 1
      %p462 = por %p460, %p461
      %p464 = scmp.ne.s32.totalorder %s449, %s463
      %p465 = scmp.eq.s32.totalorder %s35, 0
      %p466 = por %p464, %p465
      %s467 = ssub.s32 %s29, %s36
      %p468 = scmp.eq.s32.totalorder %s467, 0
      %s470 = sadd.s32 %s469, 1
      %s471 = scalar_select %p468, %s469, %s470
      %p474 = pneg %p468
      %p475 = scmp.eq.s32.totalorder %s29, 1
      %p476 = por %p474, %p475
      %p477 = scmp.ne.s32.totalorder %s469, %s472
      %p478 = scmp.eq.s32.totalorder %s29, 0
      %p479 = por %p477, %p478
      %p480 = scmp.ne.s32.totalorder %s469, %s472
      %p481 = scmp.eq.s32.totalorder %s34, 1
      %p482 = por %p480, %p481
      %p483 = scmp.ne.s32.totalorder %s472, %s473
      %p484 = scmp.eq.s32.totalorder %s34, 0
      %p485 = por %p483, %p484
      %p486 = scmp.ne.s32.totalorder %s472, %s473
      %p487 = scmp.eq.s32.totalorder %s35, 1
      %p488 = por %p486, %p487
      %p490 = scmp.ne.s32.totalorder %s473, %s489
      %p491 = scmp.eq.s32.totalorder %s35, 0
      %p492 = por %p490, %p491
      %p493 = scmp.le.s32.totalorder 1, %s29
      %p494 = scmp.lt.s32.totalorder %s29, 3
      %p495 = pnand %p493, %p494
      %p496 = pneg %p495
      // Predicated region
      $region9: #{bert_class_forward.1} parent=5 // pred_check
        _
      $region10: #{bert_class_forward.1} parent=5 // pred_check_branch
        %498 = sbr.rel (%p495) target = $region12
      $region11: #{bert_class_forward.1} parent=5 // pred_region
        %s499 = ssub.s32 %s29, 1
        // Predicated region
        $region13: #{bert_class_forward.1} parent=11 // pred_check
          %p500 = pneg %p102
        $region14: #{bert_class_forward.1} parent=11 // pred_check_branch
          %502 = sbr.rel (%p500) target = $region16
        $region15: #{bert_class_forward.1} parent=11 // pred_region
          _
        $region16: #{bert_class_forward.1} parent=11 // pred_fallthru
          _
        // Predicated region
        $region17: #{bert_class_forward.1} parent=11 // pred_check
          %p503 = pneg %p123
        $region18: #{bert_class_forward.1} parent=11 // pred_check_branch
          %505 = sbr.rel (%p503) target = $region20
        $region19: #{bert_class_forward.1} parent=11 // pred_region
          _
        $region20: #{bert_class_forward.1} parent=11 // pred_fallthru
          _
        // Predicated region
        $region21: #{bert_class_forward.1} parent=11 // pred_check
          %p506 = pneg %p144
        $region22: #{bert_class_forward.1} parent=11 // pred_check_branch
          %508 = sbr.rel (%p506) target = $region24
        $region23: #{bert_class_forward.1} parent=11 // pred_region
          _
        $region24: #{bert_class_forward.1} parent=11 // pred_fallthru
          _
        // Predicated region
        $region25: #{bert_class_forward.1} parent=11 // pred_check
          %p509 = pneg %p165
        $region26: #{bert_class_forward.1} parent=11 // pred_check_branch
          %511 = sbr.rel (%p509) target = $region28
        $region27: #{bert_class_forward.1} parent=11 // pred_region
          _
        $region28: #{bert_class_forward.1} parent=11 // pred_fallthru
          _
        // Predicated region
        $region29: #{bert_class_forward.1} parent=11 // pred_check
          %p512 = pneg %p186
        $region30: #{bert_class_forward.1} parent=11 // pred_check_branch
          %514 = sbr.rel (%p512) target = $region32
        $region31: #{bert_class_forward.1} parent=11 // pred_region
          _
        $region32: #{bert_class_forward.1} parent=11 // pred_fallthru
          _
        // Predicated region
        $region33: #{bert_class_forward.1} parent=11 // pred_check
          %p515 = pneg %p207
        $region34: #{bert_class_forward.1} parent=11 // pred_check_branch
          %517 = sbr.rel (%p515) target = $region36
        $region35: #{bert_class_forward.1} parent=11 // pred_region
          _
        $region36: #{bert_class_forward.1} parent=11 // pred_fallthru
          _
        // Predicated region
        $region37: #{bert_class_forward.1} parent=11 // pred_check
          %p518 = pneg %p228
        $region38: #{bert_class_forward.1} parent=11 // pred_check_branch
          %520 = sbr.rel (%p518) target = $region40
        $region39: #{bert_class_forward.1} parent=11 // pred_region
          _
        $region40: #{bert_class_forward.1} parent=11 // pred_fallthru
          _
        // Predicated region
        $region41: #{bert_class_forward.1} parent=11 // pred_check
          %p521 = pneg %p249
        $region42: #{bert_class_forward.1} parent=11 // pred_check_branch
          %523 = sbr.rel (%p521) target = $region44
        $region43: #{bert_class_forward.1} parent=11 // pred_region
          _
        $region44: #{bert_class_forward.1} parent=11 // pred_fallthru
          _
        // Predicated region
        $region45: #{bert_class_forward.1} parent=11 // pred_check
          %p524 = pneg %p270
        $region46: #{bert_class_forward.1} parent=11 // pred_check_branch
          %526 = sbr.rel (%p524) target = $region48
        $region47: #{bert_class_forward.1} parent=11 // pred_region
          _
        $region48: #{bert_class_forward.1} parent=11 // pred_fallthru
          _
        // Predicated region
        $region49: #{bert_class_forward.1} parent=11 // pred_check
          %p527 = pneg %p291
        $region50: #{bert_class_forward.1} parent=11 // pred_check_branch
          %529 = sbr.rel (%p527) target = $region52
        $region51: #{bert_class_forward.1} parent=11 // pred_region
          _
        $region52: #{bert_class_forward.1} parent=11 // pred_fallthru
          _
        // Predicated region
        $region53: #{bert_class_forward.1} parent=11 // pred_check
          %p530 = pneg %p312
        $region54: #{bert_class_forward.1} parent=11 // pred_check_branch
          %532 = sbr.rel (%p530) target = $region56
        $region55: #{bert_class_forward.1} parent=11 // pred_region
          _
        $region56: #{bert_class_forward.1} parent=11 // pred_fallthru
          _
        // Predicated region
        $region57: #{bert_class_forward.1} parent=11 // pred_check
          %p533 = pneg %p333
        $region58: #{bert_class_forward.1} parent=11 // pred_check_branch
          %535 = sbr.rel (%p533) target = $region60
        $region59: #{bert_class_forward.1} parent=11 // pred_region
          _
        $region60: #{bert_class_forward.1} parent=11 // pred_fallthru
          _
        // Predicated region
        $region61: #{bert_class_forward.1} parent=11 // pred_check
          %p536 = pneg %p354
        $region62: #{bert_class_forward.1} parent=11 // pred_check_branch
          %538 = sbr.rel (%p536) target = $region64
        $region63: #{bert_class_forward.1} parent=11 // pred_region
          _
        $region64: #{bert_class_forward.1} parent=11 // pred_fallthru
          _
        // Predicated region
        $region65: #{bert_class_forward.1} parent=11 // pred_check
          %p539 = pneg %p375
        $region66: #{bert_class_forward.1} parent=11 // pred_check_branch
          %541 = sbr.rel (%p539) target = $region68
        $region67: #{bert_class_forward.1} parent=11 // pred_region
          _
        $region68: #{bert_class_forward.1} parent=11 // pred_fallthru
          _
        // Predicated region
        $region69: #{bert_class_forward.1} parent=11 // pred_check
          %p542 = pneg %p396
        $region70: #{bert_class_forward.1} parent=11 // pred_check_branch
          %544 = sbr.rel (%p542) target = $region72
        $region71: #{bert_class_forward.1} parent=11 // pred_region
          _
        $region72: #{bert_class_forward.1} parent=11 // pred_fallthru
          _
        // Predicated region
        $region73: #{bert_class_forward.1} parent=11 // pred_check
          %p545 = pneg %p417
        $region74: #{bert_class_forward.1} parent=11 // pred_check_branch
          %547 = sbr.rel (%p545) target = $region76
        $region75: #{bert_class_forward.1} parent=11 // pred_region
          _
        $region76: #{bert_class_forward.1} parent=11 // pred_fallthru
          _
        // Predicated region
        $region77: #{bert_class_forward.1} parent=11 // pred_check
          %p548 = pneg %p438
        $region78: #{bert_class_forward.1} parent=11 // pred_check_branch
          %550 = sbr.rel (%p548) target = $region80
        $region79: #{bert_class_forward.1} parent=11 // pred_region
          _
        $region80: #{bert_class_forward.1} parent=11 // pred_fallthru
          _
        // Predicated region
        $region81: #{bert_class_forward.1} parent=11 // pred_check
          %p551 = pneg %p459
        $region82: #{bert_class_forward.1} parent=11 // pred_check_branch
          %553 = sbr.rel (%p551) target = $region84
        $region83: #{bert_class_forward.1} parent=11 // pred_region
          _
        $region84: #{bert_class_forward.1} parent=11 // pred_fallthru
          _
      $region12: #{bert_class_forward.1} parent=5 // pred_fallthru
        _
      %p554 = scmp.lt.s32.totalorder %s29, 2
      // Predicated region
      $region85: #{bert_class_forward.1} parent=5 // pred_check
        %p555 = pneg %p554
      $region86: #{bert_class_forward.1} parent=5 // pred_check_branch
        %557 = sbr.rel (%p555) target = $region88
      $region87: #{bert_class_forward.1} parent=5 // pred_region
        // Predicated region
        $region89: #{bert_class_forward.1} parent=87 // pred_check
          %p558 = pneg %p49
        $region90: #{bert_class_forward.1} parent=87 // pred_check_branch
          %560 = sbr.rel (%p558) target = $region92
        $region91: #{bert_class_forward.1} parent=87 // pred_region
          %p561 = scmp.lt.s32.totalorder %s29, 1
          %s562 = scalar_select %p561, %s29, 1
          %s563 = smul.addr %s562, 8
          %s564 = scalar_lea.vmem %s0, %s563
        $region92: #{bert_class_forward.1} parent=87 // pred_fallthru
          _
        // Predicated region
        $region93: #{bert_class_forward.1} parent=87 // pred_check
          %p565 = pneg %p75
        $region94: #{bert_class_forward.1} parent=87 // pred_check_branch
          %567 = sbr.rel (%p565) target = $region96
        $region95: #{bert_class_forward.1} parent=87 // pred_region
          %p568 = scmp.lt.s32.totalorder %s29, 1
          %s569 = scalar_select %p568, %s29, 1
          %s570 = scalar_lea.vmem %s1, %s569
        $region96: #{bert_class_forward.1} parent=87 // pred_fallthru
          _
      $region88: #{bert_class_forward.1} parent=5 // pred_fallthru
        _
      %p571 = scmp.le.s32.totalorder 1, %s29
      %p572 = scmp.lt.s32.totalorder %s29, 3
      %p573 = pnand %p571, %p572
      %p574 = pneg %p573
      // Predicated region
      $region97: #{bert_class_forward.1} parent=5 // pred_check
        _
      $region98: #{bert_class_forward.1} parent=5 // pred_check_branch
        %576 = sbr.rel (%p573) target = $region100
      $region99: #{bert_class_forward.1} parent=5 // pred_region
        %s577 = ssub.s32 %s29, 1
        %p578 = scmp.lt.s32.totalorder %s34, 1
        %s579 = scalar_select %p578, %s34, 1
        %s580 = smul.addr %s579, 8
        %s581 = scalar_lea.vmem %s0, %s580
        %p582 = pneg %p55
        %p583 = pneg %p52
        %p584 = scmp.lt.s32.totalorder %s34, 1
        %s585 = scalar_select %p584, %s34, 1
        %s586 = scalar_lea.vmem %s1, %s585
        %p587 = pneg %p81
        %p588 = pneg %p78
        %p589 = pneg %p102
        %p590 = pneg %p99
        %p591 = pneg %p123
        %p592 = pneg %p120
        %p593 = pneg %p144
        %p594 = pneg %p141
        %p595 = pneg %p165
        %p596 = pneg %p162
        %p597 = pneg %p186
        %p598 = pneg %p183
        %p599 = pneg %p207
        %p600 = pneg %p204
        %p601 = pneg %p228
        %p602 = pneg %p225
        %p603 = pneg %p249
        %p604 = pneg %p246
        %p605 = pneg %p270
        %p606 = pneg %p267
        %p607 = pneg %p291
        %p608 = pneg %p288
        %p609 = pneg %p312
        %p610 = pneg %p309
        %p611 = pneg %p333
        %p612 = pneg %p330
        %p613 = pneg %p354
        %p614 = pneg %p351
        %p615 = pneg %p375
        %p616 = pneg %p372
        %p617 = pneg %p396
        %p618 = pneg %p393
        %p619 = pneg %p417
        %p620 = pneg %p414
        %p621 = pneg %p438
        %p622 = pneg %p435
        %p623 = pneg %p459
        %p624 = pneg %p456
        %p625 = pneg %p485
        %p626 = pneg %p482
        %s627 = sand.u32 %s472, 1
        %s628 = scalar_lea.sflag [#allocation4], %s627
        %s629 = sand.u32 %s472, 1
        %s630 = scalar_lea.vmem [#allocation3], %s629
        %p631 = scmp.lt.s32.totalorder %s34, 1
        %s632 = scalar_select %p631, %s34, 1
        %s633 = smul.addr %s632, 8
        %s634 = scalar_lea.vmem %s0, %s633
        %p635 = scmp.lt.s32.totalorder %s34, 1
        %s636 = scalar_select %p635, %s34, 1
        %s637 = scalar_lea.vmem %s1, %s636
        %v639 = vld [vmem:[%s637] sm:$0x1]
        %v640 = vld [vmem:[%s634] sm:$0xff]
        %v641 = vld [vmem:[%s2] sm:$0x1]
        %v642 = vld [vmem:[%s3] sm:$0x1]
        %643 = vadd.xlane.f32.xlu0 %v640
        %v644 = vpop.xlane.xlu0 %643
        %v645 = vrcp.pop 128.0
        %v646 = vmul.f32 %v644, %v645
        %v647 = vsub.f32 %v640, %v646
        %v648 = vmul.f32 %v647, %v647
        %649 = vadd.xlane.f32.xlu0 %v648
        %v650 = vpop.xlane.xlu0 %649
        %v651 = vmul.f32 %v650, %v645
        %v652 = vadd.f32 %v651, 1e-12
        %v653 = vrsqrt.pop %v652
        %v654 = vmul.f32 %v647, %v653
        %v656 = vlaneseq
        %v657 = vshrl.u32 %v656, 7
        %v658 = vsub.s32 0, %v657
        %v659 = vrot.slane %v641, %v658
        %v661 = vmul.f32 %v654, %v659
        %v663 = vlaneseq
        %v664 = vshrl.u32 %v663, 7
        %v665 = vsub.s32 0, %v664
        %v666 = vrot.slane %v642, %v665
        %v668 = vadd.f32 %v661, %v666
        %v669 = vpack.c.bf16 %v668, %v668
        %v670 = vld [vmem:[%s4] sm:$0xff]
        %v671 = vld [vmem:[%s4 + $0x8] sm:$0xf]
        %v672 = vld [vmem:[%s4 + $0xc] sm:$0xff]
        %v673 = vld [vmem:[%s4 + $0x14] sm:$0xf]
        %v674 = vld [vmem:[%s4 + $0x18] sm:$0xff]
        %v675 = vld [vmem:[%s4 + $0x20] sm:$0xf]
        %v676 = vld [vmem:[%s4 + $0x24] sm:$0xff]
        %v677 = vld [vmem:[%s4 + $0x2c] sm:$0xf]
        %v678 = vld [vmem:[%s4 + $0x30] sm:$0xff]
        %v679 = vld [vmem:[%s4 + $0x38] sm:$0xf]
        %v680 = vld [vmem:[%s4 + $0x3c] sm:$0xff]
        %v681 = vld [vmem:[%s4 + $0x44] sm:$0xf]
        %v682 = vld [vmem:[%s4 + $0x48] sm:$0xff]
        %v683 = vld [vmem:[%s4 + $0x50] sm:$0xf]
        %v684 = vld [vmem:[%s4 + $0x54] sm:$0xff]
        %v685 = vld [vmem:[%s4 + $0x5c] sm:$0xf]
        %v686 = vld [vmem:[%s4 + $0x60] sm:$0xff]
        %v687 = vld [vmem:[%s4 + $0x68] sm:$0xf]
        %v688 = vld [vmem:[%s4 + $0x6c] sm:$0xff]
        %v689 = vld [vmem:[%s4 + $0x74] sm:$0xf]
        %v690 = vld [vmem:[%s4 + $0x78] sm:$0xff]
        %v691 = vld [vmem:[%s4 + $0x80] sm:$0xf]
        %v692 = vld [vmem:[%s4 + $0x84] sm:$0xff]
        %v693 = vld [vmem:[%s4 + $0x8c] sm:$0xf]
        %v694 = vld [vmem:[%s4 + $0x90] sm:$0xff]
        %v695 = vld [vmem:[%s4 + $0x98] sm:$0xf]
        %v696 = vld [vmem:[%s4 + $0x9c] sm:$0xff]
        %v697 = vld [vmem:[%s4 + $0xa4] sm:$0xf]
        %v698 = vld [vmem:[%s4 + $0xa8] sm:$0xff]
        %v699 = vld [vmem:[%s4 + $0xb0] sm:$0xf]
        %v700 = vld [vmem:[%s4 + $0xb4] sm:$0xff]
        %v701 = vld [vmem:[%s4 + $0xbc] sm:$0xf]
        %v702 = vld [vmem:[%s5] sm:$0x7]
        %v704 = vlaneseq
        %v705 = vshrl.u32 %v704, 7
        %v706 = vsub.s32 0, %v705
        %v707 = vrot.slane %v702, %v706
        %v708 = vlaneseq
        %v709 = vshrl.u32 %v708, 7
        %v710 = vsub.s32 1, %v709
        %v711 = vrot.slane %v702, %v710
        %v712 = vlaneseq
        %v713 = vshrl.u32 %v712, 7
        %v714 = vsub.s32 2, %v713
        %v715 = vrot.slane %v702, %v714
        %v751 = vunpack.c.l.b16 %v670
        %v752 = vunpack.c.h.b16 %v670
        %v753 = vunpack.c.l.b16 %v671
        %v754 = vunpack.c.l.b16 %v672
        %v755 = vunpack.c.h.b16 %v672
        %v756 = vunpack.c.l.b16 %v673
        %v757 = vunpack.c.l.b16 %v674
        %v758 = vunpack.c.h.b16 %v674
        %v759 = vunpack.c.l.b16 %v675
        %v760 = vunpack.c.l.b16 %v676
        %v761 = vunpack.c.h.b16 %v676
        %v762 = vunpack.c.l.b16 %v677
        %v763 = vunpack.c.l.b16 %v678
        %v764 = vunpack.c.h.b16 %v678
        %v765 = vunpack.c.l.b16 %v679
        %v766 = vunpack.c.l.b16 %v680
        %v767 = vunpack.c.h.b16 %v680
        %v768 = vunpack.c.l.b16 %v681
        %v769 = vunpack.c.l.b16 %v682
        %v770 = vunpack.c.h.b16 %v682
        %v771 = vunpack.c.l.b16 %v683
        %v772 = vunpack.c.l.b16 %v684
        %v773 = vunpack.c.h.b16 %v684
        %v774 = vunpack.c.l.b16 %v685
        %v775 = vunpack.c.l.b16 %v686
        %v776 = vunpack.c.h.b16 %v686
        %v777 = vunpack.c.l.b16 %v687
        %v778 = vunpack.c.l.b16 %v688
        %v779 = vunpack.c.h.b16 %v688
        %v780 = vunpack.c.l.b16 %v689
        %v781 = vunpack.c.l.b16 %v690
        %v782 = vunpack.c.h.b16 %v690
        %v783 = vunpack.c.l.b16 %v691
        %v784 = vunpack.c.l.b16 %v692
        %v785 = vunpack.c.h.b16 %v692
        %v786 = vunpack.c.l.b16 %v693
        %v787 = vunpack.c.l.b16 %v694
        %v788 = vunpack.c.h.b16 %v694
        %v789 = vunpack.c.l.b16 %v695
        %v790 = vunpack.c.l.b16 %v696
        %v791 = vunpack.c.h.b16 %v696
        %v792 = vunpack.c.l.b16 %v697
        %v793 = vunpack.c.l.b16 %v698
        %v794 = vunpack.c.h.b16 %v698
        %v795 = vunpack.c.l.b16 %v699
        %v796 = vunpack.c.l.b16 %v700
        %v797 = vunpack.c.h.b16 %v700
        %v798 = vunpack.c.l.b16 %v701
        %v799 = vpack.c.b16 %v754, %v751
        %v800 = vpack.c.b16 %v755, %v752
        %v801 = vpack.c.b16 %v756, %v753
        %v802 = vpack.c.b16 %v760, %v757
        %v803 = vpack.c.b16 %v761, %v758
        %v804 = vpack.c.b16 %v762, %v759
        %v805 = vpack.c.b16 %v766, %v763
        %v806 = vpack.c.b16 %v767, %v764
        %v807 = vpack.c.b16 %v768, %v765
        %v808 = vpack.c.b16 %v772, %v769
        %v809 = vpack.c.b16 %v773, %v770
        %v810 = vpack.c.b16 %v774, %v771
        %v811 = vpack.c.b16 %v778, %v775
        %v812 = vpack.c.b16 %v779, %v776
        %v813 = vpack.c.b16 %v780, %v777
        %v814 = vpack.c.b16 %v784, %v781
        %v815 = vpack.c.b16 %v785, %v782
        %v816 = vpack.c.b16 %v786, %v783
        %v817 = vpack.c.b16 %v790, %v787
        %v818 = vpack.c.b16 %v791, %v788
        %v819 = vpack.c.b16 %v792, %v789
        %v820 = vpack.c.b16 %v796, %v793
        %v821 = vpack.c.b16 %v797, %v794
        %v822 = vpack.c.b16 %v798, %v795
        %847 = vmatprep.subr.bf16.mxu0 %v821
        %848 = vmatpush1.bf16.msra.mxu0 %v820
        %849 = vmatprep.subr.bf16.mxu0 %v818
        %850 = vmatpush1.bf16.msra.mxu0 %v817
        %851 = vmatprep.subr.bf16.mxu0 %v815
        %852 = vmatpush1.bf16.msra.mxu0 %v814
        %853 = vmatprep.subr.bf16.mxu0 %v812
        %854 = vmatpush1.bf16.msra.mxu0 %v811
        %855 = vmatprep.subr.bf16.mxu0 %v809
        %856 = vmatpush1.bf16.msra.mxu0 %v808
        %857 = vmatprep.subr.bf16.mxu0 %v806
        %858 = vmatpush1.bf16.msra.mxu0 %v805
        %859 = vmatprep.subr.bf16.mxu0 %v803
        %860 = vmatpush1.bf16.msra.mxu0 %v802
        %861 = vmatprep.subr.bf16.mxu0 %v800
        %862 = vmatpush1.bf16.msra.mxu0 %v799
        %863 = vmatprep.subr.bf16.mxu0 0
        %864 = vmatpush2.bf16.msra.mxu0 0
        %865 = vmatprep.subr.bf16.mxu0 0
        %866 = vmatpush2.bf16.msra.mxu0 0
        %867 = vmatprep.subr.bf16.mxu0 0
        %868 = vmatpush2.bf16.msra.mxu0 0
        %869 = vmatprep.subr.bf16.mxu0 0
        %870 = vmatpush2.bf16.msra.mxu0 0
        %871 = vmatprep.subr.bf16.mxu0 0
        %872 = vmatpush2.bf16.msra.mxu0 0
        %873 = vmatprep.subr.bf16.mxu0 0
        %874 = vmatpush2.bf16.msra.mxu0 0
        %875 = vmatprep.subr.bf16.mxu0 0
        %876 = vmatpush2.bf16.msra.mxu0 0
        %877 = vmatprep.subr.bf16.mxu0 0
        %878 = vmatpush2.bf16.msra.mxu0 0
        %879 = vmatprep.mubr.bf16.mxu0 0
        %880 = vmatmul.mubr.bf16.gmra.mxu0 %v669
        %v881 = vpop.f32.mrf.mxu0
        %v882 = vadd.f32 %v707, %v881
        %v883 = vpop.f32.mrf.mxu0
        %v884 = vadd.f32 %v711, %v883
        %v885 = vpop.f32.mrf.mxu0
        %v886 = vpop.f32.mrf.mxu0
        %887 = vdwg.mxu0
        %888 = vmatprep.subr.bf16.mxu0 0
        %889 = vmatpush1.bf16.msra.mxu0 %v822
        %890 = vmatprep.subr.bf16.mxu0 0
        %891 = vmatpush1.bf16.msra.mxu0 %v819
        %892 = vmatprep.subr.bf16.mxu0 0
        %893 = vmatpush1.bf16.msra.mxu0 %v816
        %894 = vmatprep.subr.bf16.mxu0 0
        %895 = vmatpush1.bf16.msra.mxu0 %v813
        %896 = vmatprep.subr.bf16.mxu0 0
        %897 = vmatpush1.bf16.msra.mxu0 %v810
        %898 = vmatprep.subr.bf16.mxu0 0
        %899 = vmatpush1.bf16.msra.mxu0 %v807
        %900 = vmatprep.subr.bf16.mxu0 0
        %901 = vmatpush1.bf16.msra.mxu0 %v804
        %902 = vmatprep.subr.bf16.mxu0 0
        %903 = vmatpush1.bf16.msra.mxu0 %v801
        %904 = vmatprep.subr.bf16.mxu0 0
        %905 = vmatpush2.bf16.msra.mxu0 0
        %906 = vmatprep.subr.bf16.mxu0 0
        %907 = vmatpush2.bf16.msra.mxu0 0
        %908 = vmatprep.subr.bf16.mxu0 0
        %909 = vmatpush2.bf16.msra.mxu0 0
        %910 = vmatprep.subr.bf16.mxu0 0
        %911 = vmatpush2.bf16.msra.mxu0 0
        %912 = vmatprep.subr.bf16.mxu0 0
        %913 = vmatpush2.bf16.msra.mxu0 0
        %914 = vmatprep.subr.bf16.mxu0 0
        %915 = vmatpush2.bf16.msra.mxu0 0
        %916 = vmatprep.subr.bf16.mxu0 0
        %917 = vmatpush2.bf16.msra.mxu0 0
        %918 = vmatprep.subr.bf16.mxu0 0
        %919 = vmatpush2.bf16.msra.mxu0 0
        %920 = vmatprep.mubr.bf16.mxu0 0
        %921 = vmatmul.mubr.bf16.gmra.mxu0 %v669
        %v922 = vpop.f32.mrf.mxu0
        %v923 = vadd.f32 %v715, %v922
        %v924 = vpop.f32.mrf.mxu0
        %v925 = vpop.f32.mrf.mxu0
        %v926 = vpop.f32.mrf.mxu0
        %927 = vdwg.mxu0
        %v928 = vpack.c.bf16 %v882, %v882
        %v929 = vpack.c.bf16 %v884, %v884
        %vm930 = vcmask 523264
        %v932 = vsel %vm930, %v928, 0
        %v935 = vsel %vm930, %v929, 0
        %937 = vmatprep.subr.bf16.mxu0 0
        %938 = vmatpush1.bf16.xpose.msra.mxu0 0
        %939 = vmatprep.subr.bf16.mxu0 0
        %940 = vmatpush1.bf16.xpose.msra.mxu0 0
        %941 = vmatprep.subr.bf16.mxu0 0
        %942 = vmatpush1.bf16.xpose.msra.mxu0 0
        %943 = vmatprep.subr.bf16.mxu0 0
        %944 = vmatpush1.bf16.xpose.msra.mxu0 0
        %945 = vmatprep.subr.bf16.mxu0 0
        %946 = vmatpush1.bf16.xpose.msra.mxu0 0
        %947 = vmatprep.subr.bf16.mxu0 0
        %948 = vmatpush1.bf16.xpose.msra.mxu0 0
        %949 = vmatprep.subr.bf16.mxu0 0
        %950 = vmatpush1.bf16.xpose.msra.mxu0 0
        %951 = vmatprep.subr.bf16.mxu0 0
        %952 = vmatpush1.bf16.xpose.msra.mxu0 %v935
        %953 = vmatprep.subr.bf16.mxu0 0
        %954 = vmatpush2.bf16.xpose.msra.mxu0 0
        %955 = vmatprep.subr.bf16.mxu0 0
        %956 = vmatpush2.bf16.xpose.msra.mxu0 0
        %957 = vmatprep.subr.bf16.mxu0 0
        %958 = vmatpush2.bf16.xpose.msra.mxu0 0
        %959 = vmatprep.subr.bf16.mxu0 0
        %960 = vmatpush2.bf16.xpose.msra.mxu0 0
        %961 = vmatprep.subr.bf16.mxu0 0
        %962 = vmatpush2.bf16.xpose.msra.mxu0 0
        %963 = vmatprep.subr.bf16.mxu0 0
        %964 = vmatpush2.bf16.xpose.msra.mxu0 0
        %965 = vmatprep.subr.bf16.mxu0 0
        %966 = vmatpush2.bf16.xpose.msra.mxu0 0
        %967 = vmatprep.subr.bf16.mxu0 0
        %968 = vmatpush2.bf16.xpose.msra.mxu0 0
        %969 = vmatprep.mubr.bf16.mxu0 0
        %970 = vmatmul.mubr.bf16.gmra.mxu0 %v932
        %v971 = vpop.f32.mrf.mxu0
        %v972 = vadd.f32 0.0, %v971
        %v973 = vpop.f32.mrf.mxu0
        %v974 = vpop.f32.mrf.mxu0
        %v975 = vpop.f32.mrf.mxu0
        %976 = vdwg.mxu0
        %v977 = vmul.f32 %v972, 0.125
        %v979 = vlaneseq
        %v980 = vshrl.u32 %v979, 7
        %v981 = vsub.s32 0, %v980
        %v982 = vrot.slane %v639, %v981
        %v984 = vadd.f32 %v977, %v982
        %vm985 = vcmask 64512
        %v986 = vsel %vm985, %v984, -inf
        %987 = vmax.xlane.f32.xlu0 %v986
        %v988 = vpop.xlane.xlu0 %987
        %v989 = vsub.f32 %v984, %v988
        %v990 = vmul.f32 %v989, 1.442695
        %v991 = vpow.pop %v990
        %v992 = vsel %vm985, %v991, 0.0
        %993 = vadd.xlane.f32.xlu0 %v992
        %v994 = vpop.xlane.xlu0 %993
        %v995 = vrcp.pop %v994
        %v996 = vmul.f32 %v991, %v995
        %v997 = vpack.c.bf16 %v996, %v996
        %v998 = vpack.c.bf16 %v923, %v923
        %v1000 = vsel %vm985, %v997, 0
        %vm1002 = vcmask 1043456
        %v1004 = vsel %vm1002, %v998, 0
        %1006 = vmatprep.subr.bf16.mxu0 0
        %1007 = vmatpush1.bf16.msra.mxu0 0
        %1008 = vmatprep.subr.bf16.mxu0 0
        %1009 = vmatpush1.bf16.msra.mxu0 0
        %1010 = vmatprep.subr.bf16.mxu0 0
        %1011 = vmatpush1.bf16.msra.mxu0 0
        %1012 = vmatprep.subr.bf16.mxu0 0
        %1013 = vmatpush1.bf16.msra.mxu0 0
        %1014 = vmatprep.subr.bf16.mxu0 0
        %1015 = vmatpush1.bf16.msra.mxu0 0
        %1016 = vmatprep.subr.bf16.mxu0 0
        %1017 = vmatpush1.bf16.msra.mxu0 0
        %1018 = vmatprep.subr.bf16.mxu0 0
        %1019 = vmatpush1.bf16.msra.mxu0 0
        %1020 = vmatprep.subr.bf16.mxu0 0
        %1021 = vmatpush1.bf16.msra.mxu0 %v1004
        %1022 = vmatprep.subr.bf16.mxu0 0
        %1023 = vmatpush2.bf16.msra.mxu0 0
        %1024 = vmatprep.subr.bf16.mxu0 0
        %1025 = vmatpush2.bf16.msra.mxu0 0
        %1026 = vmatprep.subr.bf16.mxu0 0
        %1027 = vmatpush2.bf16.msra.mxu0 0
        %1028 = vmatprep.subr.bf16.mxu0 0
        %1029 = vmatpush2.bf16.msra.mxu0 0
        %1030 = vmatprep.subr.bf16.mxu0 0
        %1031 = vmatpush2.bf16.msra.mxu0 0
        %1032 = vmatprep.subr.bf16.mxu0 0
        %1033 = vmatpush2.bf16.msra.mxu0 0
        %1034 = vmatprep.subr.bf16.mxu0 0
        %1035 = vmatpush2.bf16.msra.mxu0 0
        %1036 = vmatprep.subr.bf16.mxu0 0
        %1037 = vmatpush2.bf16.msra.mxu0 0
        %1038 = vmatprep.mubr.bf16.mxu0 0
        %1039 = vmatmul.mubr.bf16.gmra.mxu0 %v1000
        %v1040 = vpop.f32.mrf.mxu0
        %v1041 = vadd.f32 0.0, %v1040
        %v1042 = vpop.f32.mrf.mxu0
        %v1043 = vpop.f32.mrf.mxu0
        %v1044 = vpop.f32.mrf.mxu0
        %1045 = vdwg.mxu0
        %1046 = vst.msk [vmem:[#allocation2] sm:$0xff] %vm930, %v1041
        %1048 = vrot.lane.b32.xlu0 %v928, 64
        %v1049 = vpop.permute.xlu0 %1048
        %1051 = vrot.lane.b32.xlu0 %v929, 64
        %v1052 = vpop.permute.xlu0 %1051
        %v1054 = vsel %vm930, %v1049, 0
        %v1057 = vsel %vm930, %v1052, 0
        %1059 = vmatprep.subr.bf16.mxu0 0
        %1060 = vmatpush1.bf16.xpose.msra.mxu0 0
        %1061 = vmatprep.subr.bf16.mxu0 0
        %1062 = vmatpush1.bf16.xpose.msra.mxu0 0
        %1063 = vmatprep.subr.bf16.mxu0 0
        %1064 = vmatpush1.bf16.xpose.msra.mxu0 0
        %1065 = vmatprep.subr.bf16.mxu0 0
        %1066 = vmatpush1.bf16.xpose.msra.mxu0 0
        %1067 = vmatprep.subr.bf16.mxu0 0
        %1068 = vmatpush1.bf16.xpose.msra.mxu0 0
        %1069 = vmatprep.subr.bf16.mxu0 0
        %1070 = vmatpush1.bf16.xpose.msra.mxu0 0
        %1071 = vmatprep.subr.bf16.mxu0 0
        %1072 = vmatpush1.bf16.xpose.msra.mxu0 0
        %1073 = vmatprep.subr.bf16.mxu0 0
        %1074 = vmatpush1.bf16.xpose.msra.mxu0 %v1057
        %1075 = vmatprep.subr.bf16.mxu0 0
        %1076 = vmatpush2.bf16.xpose.msra.mxu0 0
        %1077 = vmatprep.subr.bf16.mxu0 0
        %1078 = vmatpush2.bf16.xpose.msra.mxu0 0
        %1079 = vmatprep.subr.bf16.mxu0 0
        %1080 = vmatpush2.bf16.xpose.msra.mxu0 0
        %1081 = vmatprep.subr.bf16.mxu0 0
        %1082 = vmatpush2.bf16.xpose.msra.mxu0 0
        %1083 = vmatprep.subr.bf16.mxu0 0
        %1084 = vmatpush2.bf16.xpose.msra.mxu0 0
        %1085 = vmatprep.subr.bf16.mxu0 0
        %1086 = vmatpush2.bf16.xpose.msra.mxu0 0
        %1087 = vmatprep.subr.bf16.mxu0 0
        %1088 = vmatpush2.bf16.xpose.msra.mxu0 0
        %1089 = vmatprep.subr.bf16.mxu0 0
        %1090 = vmatpush2.bf16.xpose.msra.mxu0 0
        %1091 = vmatprep.mubr.bf16.mxu0 0
        %1092 = vmatmul.mubr.bf16.gmra.mxu0 %v1054
        %v1093 = vpop.f32.mrf.mxu0
        %v1094 = vadd.f32 0.0, %v1093
        %v1095 = vpop.f32.mrf.mxu0
        %v1096 = vpop.f32.mrf.mxu0
        %v1097 = vpop.f32.mrf.mxu0
        %1098 = vdwg.mxu0
        %v1099 = vmul.f32 %v1094, 0.125
        %v1100 = vadd.f32 %v1099, %v982
        %v1101 = vsel %vm985, %v1100, -inf
        %1102 = vmax.xlane.f32.xlu0 %v1101
        %v1103 = vpop.xlane.xlu0 %1102
        %v1104 = vsub.f32 %v1100, %v1103
        %v1105 = vmul.f32 %v1104, 1.442695
        %v1106 = vpow.pop %v1105
        %v1107 = vsel %vm985, %v1106, 0.0
        %1108 = vadd.xlane.f32.xlu0 %v1107
        %v1109 = vpop.xlane.xlu0 %1108
        %v1110 = vrcp.pop %v1109
        %v1111 = vmul.f32 %v1106, %v1110
        %v1112 = vpack.c.bf16 %v1111, %v1111
        %1114 = vrot.lane.b32.xlu0 %v998, 64
        %v1115 = vpop.permute.xlu0 %1114
        %v1117 = vsel %vm985, %v1112, 0
        %v1120 = vsel %vm1002, %v1115, 0
        %1122 = vmatprep.subr.bf16.mxu0 0
        %1123 = vmatpush1.bf16.msra.mxu0 0
        %1124 = vmatprep.subr.bf16.mxu0 0
        %1125 = vmatpush1.bf16.msra.mxu0 0
        %1126 = vmatprep.subr.bf16.mxu0 0
        %1127 = vmatpush1.bf16.msra.mxu0 0
        %1128 = vmatprep.subr.bf16.mxu0 0
        %1129 = vmatpush1.bf16.msra.mxu0 0
        %1130 = vmatprep.subr.bf16.mxu0 0
        %1131 = vmatpush1.bf16.msra.mxu0 0
        %1132 = vmatprep.subr.bf16.mxu0 0
        %1133 = vmatpush1.bf16.msra.mxu0 0
        %1134 = vmatprep.subr.bf16.mxu0 0
        %1135 = vmatpush1.bf16.msra.mxu0 0
        %1136 = vmatprep.subr.bf16.mxu0 0
        %1137 = vmatpush1.bf16.msra.mxu0 %v1120
        %1138 = vmatprep.subr.bf16.mxu0 0
        %1139 = vmatpush2.bf16.msra.mxu0 0
        %1140 = vmatprep.subr.bf16.mxu0 0
        %1141 = vmatpush2.bf16.msra.mxu0 0
        %1142 = vmatprep.subr.bf16.mxu0 0
        %1143 = vmatpush2.bf16.msra.mxu0 0
        %1144 = vmatprep.subr.bf16.mxu0 0
        %1145 = vmatpush2.bf16.msra.mxu0 0
        %1146 = vmatprep.subr.bf16.mxu0 0
        %1147 = vmatpush2.bf16.msra.mxu0 0
        %1148 = vmatprep.subr.bf16.mxu0 0
        %1149 = vmatpush2.bf16.msra.mxu0 0
        %1150 = vmatprep.subr.bf16.mxu0 0
        %1151 = vmatpush2.bf16.msra.mxu0 0
        %1152 = vmatprep.subr.bf16.mxu0 0
        %1153 = vmatpush2.bf16.msra.mxu0 0
        %1154 = vmatprep.mubr.bf16.mxu0 0
        %1155 = vmatmul.mubr.bf16.gmra.mxu0 %v1117
        %v1156 = vpop.f32.mrf.mxu0
        %v1157 = vadd.f32 0.0, %v1156
        %v1158 = vpop.f32.mrf.mxu0
        %v1159 = vpop.f32.mrf.mxu0
        %v1160 = vpop.f32.mrf.mxu0
        %1161 = vdwg.mxu0
        %1163 = vrot.lane.b32.xlu0 %v1157, 64
        %v1164 = vpop.permute.xlu0 %1163
        %vm1166 = vcmask 1048064
        %1167 = vst.msk [vmem:[#allocation2] sm:$0xff] %vm1166, %v1164
        %v1168 = vld [vmem:[#allocation2] sm:$0xff]
        %v1169 = vpack.c.bf16 %v1168, %v1168
        %v1170 = vld [vmem:[%s6] sm:$0xf]
        %v1171 = vld [vmem:[%s6 + $0x4] sm:$0xf]
        %v1172 = vld [vmem:[%s6 + $0x8] sm:$0xf]
        %v1173 = vld [vmem:[%s6 + $0xc] sm:$0xf]
        %v1174 = vld [vmem:[%s6 + $0x10] sm:$0xf]
        %v1175 = vld [vmem:[%s6 + $0x14] sm:$0xf]
        %v1176 = vld [vmem:[%s6 + $0x18] sm:$0xf]
        %v1177 = vld [vmem:[%s6 + $0x1c] sm:$0xf]
        %v1178 = vld [vmem:[%s6 + $0x20] sm:$0xf]
        %v1179 = vld [vmem:[%s6 + $0x24] sm:$0xf]
        %v1180 = vld [vmem:[%s6 + $0x28] sm:$0xf]
        %v1181 = vld [vmem:[%s6 + $0x2c] sm:$0xf]
        %v1182 = vld [vmem:[%s6 + $0x30] sm:$0xf]
        %v1183 = vld [vmem:[%s6 + $0x34] sm:$0xf]
        %v1184 = vld [vmem:[%s6 + $0x38] sm:$0xf]
        %v1185 = vld [vmem:[%s6 + $0x3c] sm:$0xf]
        %v1186 = vld [vmem:[%s7] sm:$0x1]
        %v1188 = vlaneseq
        %v1189 = vshrl.u32 %v1188, 7
        %v1190 = vsub.s32 0, %v1189
        %v1191 = vrot.slane %v1186, %v1190
        %v1209 = vunpack.c.l.b16 %v1170
        %v1210 = vunpack.c.l.b16 %v1171
        %v1211 = vunpack.c.l.b16 %v1172
        %v1212 = vunpack.c.l.b16 %v1173
        %v1213 = vunpack.c.l.b16 %v1174
        %v1214 = vunpack.c.l.b16 %v1175
        %v1215 = vunpack.c.l.b16 %v1176
        %v1216 = vunpack.c.l.b16 %v1177
        %v1217 = vunpack.c.l.b16 %v1178
        %v1218 = vunpack.c.l.b16 %v1179
        %v1219 = vunpack.c.l.b16 %v1180
        %v1220 = vunpack.c.l.b16 %v1181
        %v1221 = vunpack.c.l.b16 %v1182
        %v1222 = vunpack.c.l.b16 %v1183
        %v1223 = vunpack.c.l.b16 %v1184
        %v1224 = vunpack.c.l.b16 %v1185
        %v1225 = vpack.c.b16 %v1210, %v1209
        %v1226 = vpack.c.b16 %v1212, %v1211
        %v1227 = vpack.c.b16 %v1214, %v1213
        %v1228 = vpack.c.b16 %v1216, %v1215
        %v1229 = vpack.c.b16 %v1218, %v1217
        %v1230 = vpack.c.b16 %v1220, %v1219
        %v1231 = vpack.c.b16 %v1222, %v1221
        %v1232 = vpack.c.b16 %v1224, %v1223
        %1241 = vmatprep.subr.bf16.mxu0 0
        %1242 = vmatpush1.bf16.msra.mxu0 %v1232
        %1243 = vmatprep.subr.bf16.mxu0 0
        %1244 = vmatpush1.bf16.msra.mxu0 %v1231
        %1245 = vmatprep.subr.bf16.mxu0 0
        %1246 = vmatpush1.bf16.msra.mxu0 %v1230
        %1247 = vmatprep.subr.bf16.mxu0 0
        %1248 = vmatpush1.bf16.msra.mxu0 %v1229
        %1249 = vmatprep.subr.bf16.mxu0 0
        %1250 = vmatpush1.bf16.msra.mxu0 %v1228
        %1251 = vmatprep.subr.bf16.mxu0 0
        %1252 = vmatpush1.bf16.msra.mxu0 %v1227
        %1253 = vmatprep.subr.bf16.mxu0 0
        %1254 = vmatpush1.bf16.msra.mxu0 %v1226
        %1255 = vmatprep.subr.bf16.mxu0 0
        %1256 = vmatpush1.bf16.msra.mxu0 %v1225
        %1257 = vmatprep.subr.bf16.mxu0 0
        %1258 = vmatpush2.bf16.msra.mxu0 0
        %1259 = vmatprep.subr.bf16.mxu0 0
        %1260 = vmatpush2.bf16.msra.mxu0 0
        %1261 = vmatprep.subr.bf16.mxu0 0
        %1262 = vmatpush2.bf16.msra.mxu0 0
        %1263 = vmatprep.subr.bf16.mxu0 0
        %1264 = vmatpush2.bf16.msra.mxu0 0
        %1265 = vmatprep.subr.bf16.mxu0 0
        %1266 = vmatpush2.bf16.msra.mxu0 0
        %1267 = vmatprep.subr.bf16.mxu0 0
        %1268 = vmatpush2.bf16.msra.mxu0 0
        %1269 = vmatprep.subr.bf16.mxu0 0
        %1270 = vmatpush2.bf16.msra.mxu0 0
        %1271 = vmatprep.subr.bf16.mxu0 0
        %1272 = vmatpush2.bf16.msra.mxu0 0
        %1273 = vmatprep.mubr.bf16.mxu0 0
        %1274 = vmatmul.mubr.bf16.gmra.mxu0 %v1169
        %v1275 = vpop.f32.mrf.mxu0
        %v1276 = vadd.f32 %v1191, %v1275
        %v1277 = vpop.f32.mrf.mxu0
        %v1278 = vpop.f32.mrf.mxu0
        %v1279 = vpop.f32.mrf.mxu0
        %1280 = vdwg.mxu0
        %v1281 = vadd.f32 %v1276, %v668
        %v1282 = vld [vmem:[%s8] sm:$0x1]
        %v1283 = vld [vmem:[%s9] sm:$0x1]
        %1284 = vadd.xlane.f32.xlu0 %v1281
        %v1285 = vpop.xlane.xlu0 %1284
        %v1286 = vmul.f32 %v1285, %v645
        %v1287 = vsub.f32 %v1281, %v1286
        %v1288 = vmul.f32 %v1287, %v1287
        %1289 = vadd.xlane.f32.xlu0 %v1288
        %v1290 = vpop.xlane.xlu0 %1289
        %v1291 = vmul.f32 %v1290, %v645
        %v1292 = vadd.f32 %v1291, 1e-12
        %v1293 = vrsqrt.pop %v1292
        %v1294 = vmul.f32 %v1287, %v1293
        %v1296 = vlaneseq
        %v1297 = vshrl.u32 %v1296, 7
        %v1298 = vsub.s32 0, %v1297
        %v1299 = vrot.slane %v1282, %v1298
        %v1301 = vmul.f32 %v1294, %v1299
        %v1303 = vlaneseq
        %v1304 = vshrl.u32 %v1303, 7
        %v1305 = vsub.s32 0, %v1304
        %v1306 = vrot.slane %v1283, %v1305
        %v1308 = vadd.f32 %v1301, %v1306
        %v1309 = vpack.c.bf16 %v1308, %v1308
        %v1310 = vld [vmem:[%s10] sm:$0xff]
        %v1311 = vld [vmem:[%s10 + $0x8] sm:$0xff]
        %v1312 = vld [vmem:[%s10 + $0x10] sm:$0xff]
        %v1313 = vld [vmem:[%s10 + $0x18] sm:$0xff]
        %v1314 = vld [vmem:[%s10 + $0x20] sm:$0xff]
        %v1315 = vld [vmem:[%s10 + $0x28] sm:$0xff]
        %v1316 = vld [vmem:[%s10 + $0x30] sm:$0xff]
        %v1317 = vld [vmem:[%s10 + $0x38] sm:$0xff]
        %v1318 = vld [vmem:[%s10 + $0x40] sm:$0xff]
        %v1319 = vld [vmem:[%s10 + $0x48] sm:$0xff]
        %v1320 = vld [vmem:[%s10 + $0x50] sm:$0xff]
        %v1321 = vld [vmem:[%s10 + $0x58] sm:$0xff]
        %v1322 = vld [vmem:[%s10 + $0x60] sm:$0xff]
        %v1323 = vld [vmem:[%s10 + $0x68] sm:$0xff]
        %v1324 = vld [vmem:[%s10 + $0x70] sm:$0xff]
        %v1325 = vld [vmem:[%s10 + $0x78] sm:$0xff]
        %v1326 = vld [vmem:[%s10 + $0x80] sm:$0xff]
        %v1327 = vld [vmem:[%s10 + $0x88] sm:$0xff]
        %v1328 = vld [vmem:[%s10 + $0x90] sm:$0xff]
        %v1329 = vld [vmem:[%s10 + $0x98] sm:$0xff]
        %v1330 = vld [vmem:[%s10 + $0xa0] sm:$0xff]
        %v1331 = vld [vmem:[%s10 + $0xa8] sm:$0xff]
        %v1332 = vld [vmem:[%s10 + $0xb0] sm:$0xff]
        %v1333 = vld [vmem:[%s10 + $0xb8] sm:$0xff]
        %v1334 = vld [vmem:[%s10 + $0xc0] sm:$0xff]
        %v1335 = vld [vmem:[%s10 + $0xc8] sm:$0xff]
        %v1336 = vld [vmem:[%s10 + $0xd0] sm:$0xff]
        %v1337 = vld [vmem:[%s10 + $0xd8] sm:$0xff]
        %v1338 = vld [vmem:[%s10 + $0xe0] sm:$0xff]
        %v1339 = vld [vmem:[%s10 + $0xe8] sm:$0xff]
        %v1340 = vld [vmem:[%s10 + $0xf0] sm:$0xff]
        %v1341 = vld [vmem:[%s10 + $0xf8] sm:$0xff]
        %v1342 = vld [vmem:[%s11] sm:$0xf]
        %v1344 = vlaneseq
        %v1345 = vshrl.u32 %v1344, 7
        %v1346 = vsub.s32 0, %v1345
        %v1347 = vrot.slane %v1342, %v1346
        %v1348 = vlaneseq
        %v1349 = vshrl.u32 %v1348, 7
        %v1350 = vsub.s32 1, %v1349
        %v1351 = vrot.slane %v1342, %v1350
        %v1352 = vlaneseq
        %v1353 = vshrl.u32 %v1352, 7
        %v1354 = vsub.s32 2, %v1353
        %v1355 = vrot.slane %v1342, %v1354
        %v1356 = vlaneseq
        %v1357 = vshrl.u32 %v1356, 7
        %v1358 = vsub.s32 3, %v1357
        %v1359 = vrot.slane %v1342, %v1358
        %v1396 = vunpack.c.l.b16 %v1310
        %v1397 = vunpack.c.h.b16 %v1310
        %v1398 = vunpack.c.l.b16 %v1311
        %v1399 = vunpack.c.h.b16 %v1311
        %v1400 = vunpack.c.l.b16 %v1312
        %v1401 = vunpack.c.h.b16 %v1312
        %v1402 = vunpack.c.l.b16 %v1313
        %v1403 = vunpack.c.h.b16 %v1313
        %v1404 = vunpack.c.l.b16 %v1314
        %v1405 = vunpack.c.h.b16 %v1314
        %v1406 = vunpack.c.l.b16 %v1315
        %v1407 = vunpack.c.h.b16 %v1315
        %v1408 = vunpack.c.l.b16 %v1316
        %v1409 = vunpack.c.h.b16 %v1316
        %v1410 = vunpack.c.l.b16 %v1317
        %v1411 = vunpack.c.h.b16 %v1317
        %v1412 = vunpack.c.l.b16 %v1318
        %v1413 = vunpack.c.h.b16 %v1318
        %v1414 = vunpack.c.l.b16 %v1319
        %v1415 = vunpack.c.h.b16 %v1319
        %v1416 = vunpack.c.l.b16 %v1320
        %v1417 = vunpack.c.h.b16 %v1320
        %v1418 = vunpack.c.l.b16 %v1321
        %v1419 = vunpack.c.h.b16 %v1321
        %v1420 = vunpack.c.l.b16 %v1322
        %v1421 = vunpack.c.h.b16 %v1322
        %v1422 = vunpack.c.l.b16 %v1323
        %v1423 = vunpack.c.h.b16 %v1323
        %v1424 = vunpack.c.l.b16 %v1324
        %v1425 = vunpack.c.h.b16 %v1324
        %v1426 = vunpack.c.l.b16 %v1325
        %v1427 = vunpack.c.h.b16 %v1325
        %v1428 = vunpack.c.l.b16 %v1326
        %v1429 = vunpack.c.h.b16 %v1326
        %v1430 = vunpack.c.l.b16 %v1327
        %v1431 = vunpack.c.h.b16 %v1327
        %v1432 = vunpack.c.l.b16 %v1328
        %v1433 = vunpack.c.h.b16 %v1328
        %v1434 = vunpack.c.l.b16 %v1329
        %v1435 = vunpack.c.h.b16 %v1329
        %v1436 = vunpack.c.l.b16 %v1330
        %v1437 = vunpack.c.h.b16 %v1330
        %v1438 = vunpack.c.l.b16 %v1331
        %v1439 = vunpack.c.h.b16 %v1331
        %v1440 = vunpack.c.l.b16 %v1332
        %v1441 = vunpack.c.h.b16 %v1332
        %v1442 = vunpack.c.l.b16 %v1333
        %v1443 = vunpack.c.h.b16 %v1333
        %v1444 = vunpack.c.l.b16 %v1334
        %v1445 = vunpack.c.h.b16 %v1334
        %v1446 = vunpack.c.l.b16 %v1335
        %v1447 = vunpack.c.h.b16 %v1335
        %v1448 = vunpack.c.l.b16 %v1336
        %v1449 = vunpack.c.h.b16 %v1336
        %v1450 = vunpack.c.l.b16 %v1337
        %v1451 = vunpack.c.h.b16 %v1337
        %v1452 = vunpack.c.l.b16 %v1338
        %v1453 = vunpack.c.h.b16 %v1338
        %v1454 = vunpack.c.l.b16 %v1339
        %v1455 = vunpack.c.h.b16 %v1339
        %v1456 = vunpack.c.l.b16 %v1340
        %v1457 = vunpack.c.h.b16 %v1340
        %v1458 = vunpack.c.l.b16 %v1341
        %v1459 = vunpack.c.h.b16 %v1341
        %v1460 = vpack.c.b16 %v1400, %v1396
        %v1461 = vpack.c.b16 %v1401, %v1397
        %v1462 = vpack.c.b16 %v1402, %v1398
        %v1463 = vpack.c.b16 %v1403, %v1399
        %v1464 = vpack.c.b16 %v1408, %v1404
        %v1465 = vpack.c.b16 %v1409, %v1405
        %v1466 = vpack.c.b16 %v1410, %v1406
        %v1467 = vpack.c.b16 %v1411, %v1407
        %v1468 = vpack.c.b16 %v1416, %v1412
        %v1469 = vpack.c.b16 %v1417, %v1413
        %v1470 = vpack.c.b16 %v1418, %v1414
        %v1471 = vpack.c.b16 %v1419, %v1415
        %v1472 = vpack.c.b16 %v1424, %v1420
        %v1473 = vpack.c.b16 %v1425, %v1421
        %v1474 = vpack.c.b16 %v1426, %v1422
        %v1475 = vpack.c.b16 %v1427, %v1423
        %v1476 = vpack.c.b16 %v1432, %v1428
        %v1477 = vpack.c.b16 %v1433, %v1429
        %v1478 = vpack.c.b16 %v1434, %v1430
        %v1479 = vpack.c.b16 %v1435, %v1431
        %v1480 = vpack.c.b16 %v1440, %v1436
        %v1481 = vpack.c.b16 %v1441, %v1437
        %v1482 = vpack.c.b16 %v1442, %v1438
        %v1483 = vpack.c.b16 %v1443, %v1439
        %v1484 = vpack.c.b16 %v1448, %v1444
        %v1485 = vpack.c.b16 %v1449, %v1445
        %v1486 = vpack.c.b16 %v1450, %v1446
        %v1487 = vpack.c.b16 %v1451, %v1447
        %v1488 = vpack.c.b16 %v1456, %v1452
        %v1489 = vpack.c.b16 %v1457, %v1453
        %v1490 = vpack.c.b16 %v1458, %v1454
        %v1491 = vpack.c.b16 %v1459, %v1455
        %1524 = vmatprep.subr.bf16.mxu0 %v1489
        %1525 = vmatpush1.bf16.msra.mxu0 %v1488
        %1526 = vmatprep.subr.bf16.mxu0 %v1485
        %1527 = vmatpush1.bf16.msra.mxu0 %v1484
        %1528 = vmatprep.subr.bf16.mxu0 %v1481
        %1529 = vmatpush1.bf16.msra.mxu0 %v1480
        %1530 = vmatprep.subr.bf16.mxu0 %v1477
        %1531 = vmatpush1.bf16.msra.mxu0 %v1476
        %1532 = vmatprep.subr.bf16.mxu0 %v1473
        %1533 = vmatpush1.bf16.msra.mxu0 %v1472
        %1534 = vmatprep.subr.bf16.mxu0 %v1469
        %1535 = vmatpush1.bf16.msra.mxu0 %v1468
        %1536 = vmatprep.subr.bf16.mxu0 %v1465
        %1537 = vmatpush1.bf16.msra.mxu0 %v1464
        %1538 = vmatprep.subr.bf16.mxu0 %v1461
        %1539 = vmatpush1.bf16.msra.mxu0 %v1460
        %1540 = vmatprep.subr.bf16.mxu0 0
        %1541 = vmatpush2.bf16.msra.mxu0 0
        %1542 = vmatprep.subr.bf16.mxu0 0
        %1543 = vmatpush2.bf16.msra.mxu0 0
        %1544 = vmatprep.subr.bf16.mxu0 0
        %1545 = vmatpush2.bf16.msra.mxu0 0
        %1546 = vmatprep.subr.bf16.mxu0 0
        %1547 = vmatpush2.bf16.msra.mxu0 0
        %1548 = vmatprep.subr.bf16.mxu0 0
        %1549 = vmatpush2.bf16.msra.mxu0 0
        %1550 = vmatprep.subr.bf16.mxu0 0
        %1551 = vmatpush2.bf16.msra.mxu0 0
        %1552 = vmatprep.subr.bf16.mxu0 0
        %1553 = vmatpush2.bf16.msra.mxu0 0
        %1554 = vmatprep.subr.bf16.mxu0 0
        %1555 = vmatpush2.bf16.msra.mxu0 0
        %1556 = vmatprep.mubr.bf16.mxu0 0
        %1557 = vmatmul.mubr.bf16.gmra.mxu0 %v1309
        %v1558 = vpop.f32.mrf.mxu0
        %v1559 = vadd.f32 %v1347, %v1558
        %v1560 = vpop.f32.mrf.mxu0
        %v1561 = vadd.f32 %v1351, %v1560
        %v1562 = vpop.f32.mrf.mxu0
        %v1563 = vpop.f32.mrf.mxu0
        %1564 = vdwg.mxu0
        %1565 = vmatprep.subr.bf16.mxu0 %v1491
        %1566 = vmatpush1.bf16.msra.mxu0 %v1490
        %1567 = vmatprep.subr.bf16.mxu0 %v1487
        %1568 = vmatpush1.bf16.msra.mxu0 %v1486
        %1569 = vmatprep.subr.bf16.mxu0 %v1483
        %1570 = vmatpush1.bf16.msra.mxu0 %v1482
        %1571 = vmatprep.subr.bf16.mxu0 %v1479
        %1572 = vmatpush1.bf16.msra.mxu0 %v1478
        %1573 = vmatprep.subr.bf16.mxu0 %v1475
        %1574 = vmatpush1.bf16.msra.mxu0 %v1474
        %1575 = vmatprep.subr.bf16.mxu0 %v1471
        %1576 = vmatpush1.bf16.msra.mxu0 %v1470
        %1577 = vmatprep.subr.bf16.mxu0 %v1467
        %1578 = vmatpush1.bf16.msra.mxu0 %v1466
        %1579 = vmatprep.subr.bf16.mxu0 %v1463
        %1580 = vmatpush1.bf16.msra.mxu0 %v1462
        %1581 = vmatprep.subr.bf16.mxu0 0
        %1582 = vmatpush2.bf16.msra.mxu0 0
        %1583 = vmatprep.subr.bf16.mxu0 0
        %1584 = vmatpush2.bf16.msra.mxu0 0
        %1585 = vmatprep.subr.bf16.mxu0 0
        %1586 = vmatpush2.bf16.msra.mxu0 0
        %1587 = vmatprep.subr.bf16.mxu0 0
        %1588 = vmatpush2.bf16.msra.mxu0 0
        %1589 = vmatprep.subr.bf16.mxu0 0
        %1590 = vmatpush2.bf16.msra.mxu0 0
        %1591 = vmatprep.subr.bf16.mxu0 0
        %1592 = vmatpush2.bf16.msra.mxu0 0
        %1593 = vmatprep.subr.bf16.mxu0 0
        %1594 = vmatpush2.bf16.msra.mxu0 0
        %1595 = vmatprep.subr.bf16.mxu0 0
        %1596 = vmatpush2.bf16.msra.mxu0 0
        %1597 = vmatprep.mubr.bf16.mxu0 0
        %1598 = vmatmul.mubr.bf16.gmra.mxu0 %v1309
        %v1599 = vpop.f32.mrf.mxu0
        %v1600 = vadd.f32 %v1355, %v1599
        %v1601 = vpop.f32.mrf.mxu0
        %v1602 = vadd.f32 %v1359, %v1601
        %v1603 = vpop.f32.mrf.mxu0
        %v1604 = vpop.f32.mrf.mxu0
        %1605 = vdwg.mxu0
        %v1606 = vmul.f32 %v1559, 0.5
        %v1607 = vmul.f32 %v1561, 0.5
        %v1608 = vmul.f32 %v1600, 0.5
        %v1609 = vmul.f32 %v1602, 0.5
        %v1610 = vmul.f32 %v1559, 0.044715
        %v1611 = vmul.f32 %v1561, 0.044715
        %v1612 = vmul.f32 %v1600, 0.044715
        %v1613 = vmul.f32 %v1602, 0.044715
        %v1614 = vmul.f32 %v1610, %v1559
        %v1615 = vmul.f32 %v1611, %v1561
        %v1616 = vmul.f32 %v1612, %v1600
        %v1617 = vmul.f32 %v1613, %v1602
        %v1618 = vmul.f32 %v1614, %v1559
        %v1619 = vmul.f32 %v1615, %v1561
        %v1620 = vmul.f32 %v1616, %v1600
        %v1621 = vmul.f32 %v1617, %v1602
        %v1622 = vadd.f32 %v1559, %v1618
        %v1623 = vadd.f32 %v1561, %v1619
        %v1624 = vadd.f32 %v1600, %v1620
        %v1625 = vadd.f32 %v1602, %v1621
        %v1626 = vmul.f32 %v1622, 0.7978845
        %v1627 = vmul.f32 %v1623, 0.7978845
        %v1628 = vmul.f32 %v1624, 0.7978845
        %v1629 = vmul.f32 %v1625, 0.7978845
        %v1630 = vtanh.pop %v1626
        %v1631 = vtanh.pop %v1627
        %v1632 = vtanh.pop %v1628
        %v1633 = vtanh.pop %v1629
        %v1634 = vadd.f32 %v1630, 1.0
        %v1635 = vadd.f32 %v1631, 1.0
        %v1636 = vadd.f32 %v1632, 1.0
        %v1637 = vadd.f32 %v1633, 1.0
        %v1638 = vmul.f32 %v1606, %v1634
        %v1639 = vmul.f32 %v1607, %v1635
        %v1640 = vmul.f32 %v1608, %v1636
        %v1641 = vmul.f32 %v1609, %v1637
        %v1642 = vpack.c.bf16 %v1638, %v1638
        %v1643 = vpack.c.bf16 %v1639, %v1639
        %v1644 = vpack.c.bf16 %v1640, %v1640
        %v1645 = vpack.c.bf16 %v1641, %v1641
        %v1646 = vld [vmem:[%s12] sm:$0xf]
        %v1647 = vld [vmem:[%s12 + $0x4] sm:$0xf]
        %v1648 = vld [vmem:[%s12 + $0x8] sm:$0xf]
        %v1649 = vld [vmem:[%s12 + $0xc] sm:$0xf]
        %v1650 = vld [vmem:[%s12 + $0x10] sm:$0xf]
        %v1651 = vld [vmem:[%s12 + $0x14] sm:$0xf]
        %v1652 = vld [vmem:[%s12 + $0x18] sm:$0xf]
        %v1653 = vld [vmem:[%s12 + $0x1c] sm:$0xf]
        %v1654 = vld [vmem:[%s12 + $0x20] sm:$0xf]
        %v1655 = vld [vmem:[%s12 + $0x24] sm:$0xf]
        %v1656 = vld [vmem:[%s12 + $0x28] sm:$0xf]
        %v1657 = vld [vmem:[%s12 + $0x2c] sm:$0xf]
        %v1658 = vld [vmem:[%s12 + $0x30] sm:$0xf]
        %v1659 = vld [vmem:[%s12 + $0x34] sm:$0xf]
        %v1660 = vld [vmem:[%s12 + $0x38] sm:$0xf]
        %v1661 = vld [vmem:[%s12 + $0x3c] sm:$0xf]
        %v1662 = vld [vmem:[%s12 + $0x40] sm:$0xf]
        %v1663 = vld [vmem:[%s12 + $0x44] sm:$0xf]
        %v1664 = vld [vmem:[%s12 + $0x48] sm:$0xf]
        %v1665 = vld [vmem:[%s12 + $0x4c] sm:$0xf]
        %v1666 = vld [vmem:[%s12 + $0x50] sm:$0xf]
        %v1667 = vld [vmem:[%s12 + $0x54] sm:$0xf]
        %v1668 = vld [vmem:[%s12 + $0x58] sm:$0xf]
        %v1669 = vld [vmem:[%s12 + $0x5c] sm:$0xf]
        %v1670 = vld [vmem:[%s12 + $0x60] sm:$0xf]
        %v1671 = vld [vmem:[%s12 + $0x64] sm:$0xf]
        %v1672 = vld [vmem:[%s12 + $0x68] sm:$0xf]
        %v1673 = vld [vmem:[%s12 + $0x6c] sm:$0xf]
        %v1674 = vld [vmem:[%s12 + $0x70] sm:$0xf]
        %v1675 = vld [vmem:[%s12 + $0x74] sm:$0xf]
        %v1676 = vld [vmem:[%s12 + $0x78] sm:$0xf]
        %v1677 = vld [vmem:[%s12 + $0x7c] sm:$0xf]
        %v1678 = vld [vmem:[%s12 + $0x80] sm:$0xf]
        %v1679 = vld [vmem:[%s12 + $0x84] sm:$0xf]
        %v1680 = vld [vmem:[%s12 + $0x88] sm:$0xf]
        %v1681 = vld [vmem:[%s12 + $0x8c] sm:$0xf]
        %v1682 = vld [vmem:[%s12 + $0x90] sm:$0xf]
        %v1683 = vld [vmem:[%s12 + $0x94] sm:$0xf]
        %v1684 = vld [vmem:[%s12 + $0x98] sm:$0xf]
        %v1685 = vld [vmem:[%s12 + $0x9c] sm:$0xf]
        %v1686 = vld [vmem:[%s12 + $0xa0] sm:$0xf]
        %v1687 = vld [vmem:[%s12 + $0xa4] sm:$0xf]
        %v1688 = vld [vmem:[%s12 + $0xa8] sm:$0xf]
        %v1689 = vld [vmem:[%s12 + $0xac] sm:$0xf]
        %v1690 = vld [vmem:[%s12 + $0xb0] sm:$0xf]
        %v1691 = vld [vmem:[%s12 + $0xb4] sm:$0xf]
        %v1692 = vld [vmem:[%s12 + $0xb8] sm:$0xf]
        %v1693 = vld [vmem:[%s12 + $0xbc] sm:$0xf]
        %v1694 = vld [vmem:[%s12 + $0xc0] sm:$0xf]
        %v1695 = vld [vmem:[%s12 + $0xc4] sm:$0xf]
        %v1696 = vld [vmem:[%s12 + $0xc8] sm:$0xf]
        %v1697 = vld [vmem:[%s12 + $0xcc] sm:$0xf]
        %v1698 = vld [vmem:[%s12 + $0xd0] sm:$0xf]
        %v1699 = vld [vmem:[%s12 + $0xd4] sm:$0xf]
        %v1700 = vld [vmem:[%s12 + $0xd8] sm:$0xf]
        %v1701 = vld [vmem:[%s12 + $0xdc] sm:$0xf]
        %v1702 = vld [vmem:[%s12 + $0xe0] sm:$0xf]
        %v1703 = vld [vmem:[%s12 + $0xe4] sm:$0xf]
        %v1704 = vld [vmem:[%s12 + $0xe8] sm:$0xf]
        %v1705 = vld [vmem:[%s12 + $0xec] sm:$0xf]
        %v1706 = vld [vmem:[%s12 + $0xf0] sm:$0xf]
        %v1707 = vld [vmem:[%s12 + $0xf4] sm:$0xf]
        %v1708 = vld [vmem:[%s12 + $0xf8] sm:$0xf]
        %v1709 = vld [vmem:[%s12 + $0xfc] sm:$0xf]
        %v1710 = vld [vmem:[%s13] sm:$0x1]
        %v1712 = vlaneseq
        %v1713 = vshrl.u32 %v1712, 7
        %v1714 = vsub.s32 0, %v1713
        %v1715 = vrot.slane %v1710, %v1714
        %v1781 = vunpack.c.l.b16 %v1646
        %v1782 = vunpack.c.l.b16 %v1647
        %v1783 = vunpack.c.l.b16 %v1648
        %v1784 = vunpack.c.l.b16 %v1649
        %v1785 = vunpack.c.l.b16 %v1650
        %v1786 = vunpack.c.l.b16 %v1651
        %v1787 = vunpack.c.l.b16 %v1652
        %v1788 = vunpack.c.l.b16 %v1653
        %v1789 = vunpack.c.l.b16 %v1654
        %v1790 = vunpack.c.l.b16 %v1655
        %v1791 = vunpack.c.l.b16 %v1656
        %v1792 = vunpack.c.l.b16 %v1657
        %v1793 = vunpack.c.l.b16 %v1658
        %v1794 = vunpack.c.l.b16 %v1659
        %v1795 = vunpack.c.l.b16 %v1660
        %v1796 = vunpack.c.l.b16 %v1661
        %v1797 = vunpack.c.l.b16 %v1662
        %v1798 = vunpack.c.l.b16 %v1663
        %v1799 = vunpack.c.l.b16 %v1664
        %v1800 = vunpack.c.l.b16 %v1665
        %v1801 = vunpack.c.l.b16 %v1666
        %v1802 = vunpack.c.l.b16 %v1667
        %v1803 = vunpack.c.l.b16 %v1668
        %v1804 = vunpack.c.l.b16 %v1669
        %v1805 = vunpack.c.l.b16 %v1670
        %v1806 = vunpack.c.l.b16 %v1671
        %v1807 = vunpack.c.l.b16 %v1672
        %v1808 = vunpack.c.l.b16 %v1673
        %v1809 = vunpack.c.l.b16 %v1674
        %v1810 = vunpack.c.l.b16 %v1675
        %v1811 = vunpack.c.l.b16 %v1676
        %v1812 = vunpack.c.l.b16 %v1677
        %v1813 = vunpack.c.l.b16 %v1678
        %v1814 = vunpack.c.l.b16 %v1679
        %v1815 = vunpack.c.l.b16 %v1680
        %v1816 = vunpack.c.l.b16 %v1681
        %v1817 = vunpack.c.l.b16 %v1682
        %v1818 = vunpack.c.l.b16 %v1683
        %v1819 = vunpack.c.l.b16 %v1684
        %v1820 = vunpack.c.l.b16 %v1685
        %v1821 = vunpack.c.l.b16 %v1686
        %v1822 = vunpack.c.l.b16 %v1687
        %v1823 = vunpack.c.l.b16 %v1688
        %v1824 = vunpack.c.l.b16 %v1689
        %v1825 = vunpack.c.l.b16 %v1690
        %v1826 = vunpack.c.l.b16 %v1691
        %v1827 = vunpack.c.l.b16 %v1692
        %v1828 = vunpack.c.l.b16 %v1693
        %v1829 = vunpack.c.l.b16 %v1694
        %v1830 = vunpack.c.l.b16 %v1695
        %v1831 = vunpack.c.l.b16 %v1696
        %v1832 = vunpack.c.l.b16 %v1697
        %v1833 = vunpack.c.l.b16 %v1698
        %v1834 = vunpack.c.l.b16 %v1699
        %v1835 = vunpack.c.l.b16 %v1700
        %v1836 = vunpack.c.l.b16 %v1701
        %v1837 = vunpack.c.l.b16 %v1702
        %v1838 = vunpack.c.l.b16 %v1703
        %v1839 = vunpack.c.l.b16 %v1704
        %v1840 = vunpack.c.l.b16 %v1705
        %v1841 = vunpack.c.l.b16 %v1706
        %v1842 = vunpack.c.l.b16 %v1707
        %v1843 = vunpack.c.l.b16 %v1708
        %v1844 = vunpack.c.l.b16 %v1709
        %v1845 = vpack.c.b16 %v1782, %v1781
        %v1846 = vpack.c.b16 %v1784, %v1783
        %v1847 = vpack.c.b16 %v1786, %v1785
        %v1848 = vpack.c.b16 %v1788, %v1787
        %v1849 = vpack.c.b16 %v1790, %v1789
        %v1850 = vpack.c.b16 %v1792, %v1791
        %v1851 = vpack.c.b16 %v1794, %v1793
        %v1852 = vpack.c.b16 %v1796, %v1795
        %v1853 = vpack.c.b16 %v1798, %v1797
        %v1854 = vpack.c.b16 %v1800, %v1799
        %v1855 = vpack.c.b16 %v1802, %v1801
        %v1856 = vpack.c.b16 %v1804, %v1803
        %v1857 = vpack.c.b16 %v1806, %v1805
        %v1858 = vpack.c.b16 %v1808, %v1807
        %v1859 = vpack.c.b16 %v1810, %v1809
        %v1860 = vpack.c.b16 %v1812, %v1811
        %v1861 = vpack.c.b16 %v1814, %v1813
        %v1862 = vpack.c.b16 %v1816, %v1815
        %v1863 = vpack.c.b16 %v1818, %v1817
        %v1864 = vpack.c.b16 %v1820, %v1819
        %v1865 = vpack.c.b16 %v1822, %v1821
        %v1866 = vpack.c.b16 %v1824, %v1823
        %v1867 = vpack.c.b16 %v1826, %v1825
        %v1868 = vpack.c.b16 %v1828, %v1827
        %v1869 = vpack.c.b16 %v1830, %v1829
        %v1870 = vpack.c.b16 %v1832, %v1831
        %v1871 = vpack.c.b16 %v1834, %v1833
        %v1872 = vpack.c.b16 %v1836, %v1835
        %v1873 = vpack.c.b16 %v1838, %v1837
        %v1874 = vpack.c.b16 %v1840, %v1839
        %v1875 = vpack.c.b16 %v1842, %v1841
        %v1876 = vpack.c.b16 %v1844, %v1843
        %1909 = vmatprep.subr.bf16.mxu0 0
        %1910 = vmatpush1.bf16.msra.mxu0 %v1852
        %1911 = vmatprep.subr.bf16.mxu0 0
        %1912 = vmatpush1.bf16.msra.mxu0 %v1851
        %1913 = vmatprep.subr.bf16.mxu0 0
        %1914 = vmatpush1.bf16.msra.mxu0 %v1850
        %1915 = vmatprep.subr.bf16.mxu0 0
        %1916 = vmatpush1.bf16.msra.mxu0 %v1849
        %1917 = vmatprep.subr.bf16.mxu0 0
        %1918 = vmatpush1.bf16.msra.mxu0 %v1848
        %1919 = vmatprep.subr.bf16.mxu0 0
        %1920 = vmatpush1.bf16.msra.mxu0 %v1847
        %1921 = vmatprep.subr.bf16.mxu0 0
        %1922 = vmatpush1.bf16.msra.mxu0 %v1846
        %1923 = vmatprep.subr.bf16.mxu0 0
        %1924 = vmatpush1.bf16.msra.mxu0 %v1845
        %1925 = vmatprep.subr.bf16.mxu0 0
        %1926 = vmatpush2.bf16.msra.mxu0 %v1860
        %1927 = vmatprep.subr.bf16.mxu0 0
        %1928 = vmatpush2.bf16.msra.mxu0 %v1859
        %1929 = vmatprep.subr.bf16.mxu0 0
        %1930 = vmatpush2.bf16.msra.mxu0 %v1858
        %1931 = vmatprep.subr.bf16.mxu0 0
        %1932 = vmatpush2.bf16.msra.mxu0 %v1857
        %1933 = vmatprep.subr.bf16.mxu0 0
        %1934 = vmatpush2.bf16.msra.mxu0 %v1856
        %1935 = vmatprep.subr.bf16.mxu0 0
        %1936 = vmatpush2.bf16.msra.mxu0 %v1855
        %1937 = vmatprep.subr.bf16.mxu0 0
        %1938 = vmatpush2.bf16.msra.mxu0 %v1854
        %1939 = vmatprep.subr.bf16.mxu0 0
        %1940 = vmatpush2.bf16.msra.mxu0 %v1853
        %1941 = vmatprep.mubr.bf16.mxu0 %v1643
        %1942 = vmatmul.mubr.bf16.gmra.mxu0 %v1642
        %v1943 = vpop.f32.mrf.mxu0
        %v1944 = vadd.f32 %v1715, %v1943
        %v1945 = vpop.f32.mrf.mxu0
        %v1946 = vpop.f32.mrf.mxu0
        %v1947 = vpop.f32.mrf.mxu0
        %1948 = vdwg.mxu0
        %1949 = vmatprep.subr.bf16.mxu0 0
        %1950 = vmatpush1.bf16.msra.mxu0 %v1868
        %1951 = vmatprep.subr.bf16.mxu0 0
        %1952 = vmatpush1.bf16.msra.mxu0 %v1867
        %1953 = vmatprep.subr.bf16.mxu0 0
        %1954 = vmatpush1.bf16.msra.mxu0 %v1866
        %1955 = vmatprep.subr.bf16.mxu0 0
        %1956 = vmatpush1.bf16.msra.mxu0 %v1865
        %1957 = vmatprep.subr.bf16.mxu0 0
        %1958 = vmatpush1.bf16.msra.mxu0 %v1864
        %1959 = vmatprep.subr.bf16.mxu0 0
        %1960 = vmatpush1.bf16.msra.mxu0 %v1863
        %1961 = vmatprep.subr.bf16.mxu0 0
        %1962 = vmatpush1.bf16.msra.mxu0 %v1862
        %1963 = vmatprep.subr.bf16.mxu0 0
        %1964 = vmatpush1.bf16.msra.mxu0 %v1861
        %1965 = vmatprep.subr.bf16.mxu0 0
        %1966 = vmatpush2.bf16.msra.mxu0 %v1876
        %1967 = vmatprep.subr.bf16.mxu0 0
        %1968 = vmatpush2.bf16.msra.mxu0 %v1875
        %1969 = vmatprep.subr.bf16.mxu0 0
        %1970 = vmatpush2.bf16.msra.mxu0 %v1874
        %1971 = vmatprep.subr.bf16.mxu0 0
        %1972 = vmatpush2.bf16.msra.mxu0 %v1873
        %1973 = vmatprep.subr.bf16.mxu0 0
        %1974 = vmatpush2.bf16.msra.mxu0 %v1872
        %1975 = vmatprep.subr.bf16.mxu0 0
        %1976 = vmatpush2.bf16.msra.mxu0 %v1871
        %1977 = vmatprep.subr.bf16.mxu0 0
        %1978 = vmatpush2.bf16.msra.mxu0 %v1870
        %1979 = vmatprep.subr.bf16.mxu0 0
        %1980 = vmatpush2.bf16.msra.mxu0 %v1869
        %1981 = vmatprep.mubr.bf16.mxu0 %v1645
        %1982 = vmatmul.mubr.bf16.gmra.mxu0 %v1644
        %v1983 = vpop.f32.mrf.mxu0
        %v1984 = vadd.f32 %v1944, %v1983
        %v1985 = vpop.f32.mrf.mxu0
        %v1986 = vpop.f32.mrf.mxu0
        %v1987 = vpop.f32.mrf.mxu0
        %1988 = vdwg.mxu0
        %v1989 = vadd.f32 %v1984, %v1308
        %v1990 = vld [vmem:[%s14] sm:$0x1]
        %v1991 = vld [vmem:[%s15] sm:$0x1]
        %1992 = vadd.xlane.f32.xlu0 %v1989
        %v1993 = vpop.xlane.xlu0 %1992
        %v1994 = vmul.f32 %v1993, %v645
        %v1995 = vsub.f32 %v1989, %v1994
        %v1996 = vmul.f32 %v1995, %v1995
        %1997 = vadd.xlane.f32.xlu0 %v1996
        %v1998 = vpop.xlane.xlu0 %1997
        %v1999 = vmul.f32 %v1998, %v645
        %v2000 = vadd.f32 %v1999, 1e-12
        %v2001 = vrsqrt.pop %v2000
        %v2002 = vmul.f32 %v1995, %v2001
        %v2004 = vlaneseq
        %v2005 = vshrl.u32 %v2004, 7
        %v2006 = vsub.s32 0, %v2005
        %v2007 = vrot.slane %v1990, %v2006
        %v2009 = vmul.f32 %v2002, %v2007
        %v2011 = vlaneseq
        %v2012 = vshrl.u32 %v2011, 7
        %v2013 = vsub.s32 0, %v2012
        %v2014 = vrot.slane %v1991, %v2013
        %v2016 = vadd.f32 %v2009, %v2014
        %v2017 = vpack.c.bf16 %v2016, %v2016
        %s2018 = scalar_lea.vmem %s4, 192
        %v2019 = vld [vmem:[%s2018] sm:$0xff]
        %v2020 = vld [vmem:[%s2018 + $0x8] sm:$0xf]
        %v2021 = vld [vmem:[%s2018 + $0xc] sm:$0xff]
        %v2022 = vld [vmem:[%s2018 + $0x14] sm:$0xf]
        %v2023 = vld [vmem:[%s2018 + $0x18] sm:$0xff]
        %v2024 = vld [vmem:[%s2018 + $0x20] sm:$0xf]
        %v2025 = vld [vmem:[%s2018 + $0x24] sm:$0xff]
        %v2026 = vld [vmem:[%s2018 + $0x2c] sm:$0xf]
        %v2027 = vld [vmem:[%s2018 + $0x30] sm:$0xff]
        %v2028 = vld [vmem:[%s2018 + $0x38] sm:$0xf]
        %v2029 = vld [vmem:[%s2018 + $0x3c] sm:$0xff]
        %v2030 = vld [vmem:[%s2018 + $0x44] sm:$0xf]
        %v2031 = vld [vmem:[%s2018 + $0x48] sm:$0xff]
        %v2032 = vld [vmem:[%s2018 + $0x50] sm:$0xf]
        %v2033 = vld [vmem:[%s2018 + $0x54] sm:$0xff]
        %v2034 = vld [vmem:[%s2018 + $0x5c] sm:$0xf]
        %v2035 = vld [vmem:[%s2018 + $0x60] sm:$0xff]
        %v2036 = vld [vmem:[%s2018 + $0x68] sm:$0xf]
        %v2037 = vld [vmem:[%s2018 + $0x6c] sm:$0xff]
        %v2038 = vld [vmem:[%s2018 + $0x74] sm:$0xf]
        %v2039 = vld [vmem:[%s2018 + $0x78] sm:$0xff]
        %v2040 = vld [vmem:[%s2018 + $0x80] sm:$0xf]
        %v2041 = vld [vmem:[%s2018 + $0x84] sm:$0xff]
        %v2042 = vld [vmem:[%s2018 + $0x8c] sm:$0xf]
        %v2043 = vld [vmem:[%s2018 + $0x90] sm:$0xff]
        %v2044 = vld [vmem:[%s2018 + $0x98] sm:$0xf]
        %v2045 = vld [vmem:[%s2018 + $0x9c] sm:$0xff]
        %v2046 = vld [vmem:[%s2018 + $0xa4] sm:$0xf]
        %v2047 = vld [vmem:[%s2018 + $0xa8] sm:$0xff]
        %v2048 = vld [vmem:[%s2018 + $0xb0] sm:$0xf]
        %v2049 = vld [vmem:[%s2018 + $0xb4] sm:$0xff]
        %v2050 = vld [vmem:[%s2018 + $0xbc] sm:$0xf]
        %s2051 = scalar_lea.vmem %s5, 3
        %v2052 = vld [vmem:[%s2051] sm:$0x7]
        %v2054 = vlaneseq
        %v2055 = vshrl.u32 %v2054, 7
        %v2056 = vsub.s32 0, %v2055
        %v2057 = vrot.slane %v2052, %v2056
        %v2058 = vlaneseq
        %v2059 = vshrl.u32 %v2058, 7
        %v2060 = vsub.s32 1, %v2059
        %v2061 = vrot.slane %v2052, %v2060
        %v2062 = vlaneseq
        %v2063 = vshrl.u32 %v2062, 7
        %v2064 = vsub.s32 2, %v2063
        %v2065 = vrot.slane %v2052, %v2064
        %v2101 = vunpack.c.l.b16 %v2019
        %v2102 = vunpack.c.h.b16 %v2019
        %v2103 = vunpack.c.l.b16 %v2020
        %v2104 = vunpack.c.l.b16 %v2021
        %v2105 = vunpack.c.h.b16 %v2021
        %v2106 = vunpack.c.l.b16 %v2022
        %v2107 = vunpack.c.l.b16 %v2023
        %v2108 = vunpack.c.h.b16 %v2023
        %v2109 = vunpack.c.l.b16 %v2024
        %v2110 = vunpack.c.l.b16 %v2025
        %v2111 = vunpack.c.h.b16 %v2025
        %v2112 = vunpack.c.l.b16 %v2026
        %v2113 = vunpack.c.l.b16 %v2027
        %v2114 = vunpack.c.h.b16 %v2027
        %v2115 = vunpack.c.l.b16 %v2028
        %v2116 = vunpack.c.l.b16 %v2029
        %v2117 = vunpack.c.h.b16 %v2029
        %v2118 = vunpack.c.l.b16 %v2030
        %v2119 = vunpack.c.l.b16 %v2031
        %v2120 = vunpack.c.h.b16 %v2031
        %v2121 = vunpack.c.l.b16 %v2032
        %v2122 = vunpack.c.l.b16 %v2033
        %v2123 = vunpack.c.h.b16 %v2033
        %v2124 = vunpack.c.l.b16 %v2034
        %v2125 = vunpack.c.l.b16 %v2035
        %v2126 = vunpack.c.h.b16 %v2035
        %v2127 = vunpack.c.l.b16 %v2036
        %v2128 = vunpack.c.l.b16 %v2037
        %v2129 = vunpack.c.h.b16 %v2037
        %v2130 = vunpack.c.l.b16 %v2038
        %v2131 = vunpack.c.l.b16 %v2039
        %v2132 = vunpack.c.h.b16 %v2039
        %v2133 = vunpack.c.l.b16 %v2040
        %v2134 = vunpack.c.l.b16 %v2041
        %v2135 = vunpack.c.h.b16 %v2041
        %v2136 = vunpack.c.l.b16 %v2042
        %v2137 = vunpack.c.l.b16 %v2043
        %v2138 = vunpack.c.h.b16 %v2043
        %v2139 = vunpack.c.l.b16 %v2044
        %v2140 = vunpack.c.l.b16 %v2045
        %v2141 = vunpack.c.h.b16 %v2045
        %v2142 = vunpack.c.l.b16 %v2046
        %v2143 = vunpack.c.l.b16 %v2047
        %v2144 = vunpack.c.h.b16 %v2047
        %v2145 = vunpack.c.l.b16 %v2048
        %v2146 = vunpack.c.l.b16 %v2049
        %v2147 = vunpack.c.h.b16 %v2049
        %v2148 = vunpack.c.l.b16 %v2050
        %v2149 = vpack.c.b16 %v2104, %v2101
        %v2150 = vpack.c.b16 %v2105, %v2102
        %v2151 = vpack.c.b16 %v2106, %v2103
        %v2152 = vpack.c.b16 %v2110, %v2107
        %v2153 = vpack.c.b16 %v2111, %v2108
        %v2154 = vpack.c.b16 %v2112, %v2109
        %v2155 = vpack.c.b16 %v2116, %v2113
        %v2156 = vpack.c.b16 %v2117, %v2114
        %v2157 = vpack.c.b16 %v2118, %v2115
        %v2158 = vpack.c.b16 %v2122, %v2119
        %v2159 = vpack.c.b16 %v2123, %v2120
        %v2160 = vpack.c.b16 %v2124, %v2121
        %v2161 = vpack.c.b16 %v2128, %v2125
        %v2162 = vpack.c.b16 %v2129, %v2126
        %v2163 = vpack.c.b16 %v2130, %v2127
        %v2164 = vpack.c.b16 %v2134, %v2131
        %v2165 = vpack.c.b16 %v2135, %v2132
        %v2166 = vpack.c.b16 %v2136, %v2133
        %v2167 = vpack.c.b16 %v2140, %v2137
        %v2168 = vpack.c.b16 %v2141, %v2138
        %v2169 = vpack.c.b16 %v2142, %v2139
        %v2170 = vpack.c.b16 %v2146, %v2143
        %v2171 = vpack.c.b16 %v2147, %v2144
        %v2172 = vpack.c.b16 %v2148, %v2145
        %2197 = vmatprep.subr.bf16.mxu0 %v2171
        %2198 = vmatpush1.bf16.msra.mxu0 %v2170
        %2199 = vmatprep.subr.bf16.mxu0 %v2168
        %2200 = vmatpush1.bf16.msra.mxu0 %v2167
        %2201 = vmatprep.subr.bf16.mxu0 %v2165
        %2202 = vmatpush1.bf16.msra.mxu0 %v2164
        %2203 = vmatprep.subr.bf16.mxu0 %v2162
        %2204 = vmatpush1.bf16.msra.mxu0 %v2161
        %2205 = vmatprep.subr.bf16.mxu0 %v2159
        %2206 = vmatpush1.bf16.msra.mxu0 %v2158
        %2207 = vmatprep.subr.bf16.mxu0 %v2156
        %2208 = vmatpush1.bf16.msra.mxu0 %v2155
        %2209 = vmatprep.subr.bf16.mxu0 %v2153
        %2210 = vmatpush1.bf16.msra.mxu0 %v2152
        %2211 = vmatprep.subr.bf16.mxu0 %v2150
        %2212 = vmatpush1.bf16.msra.mxu0 %v2149
        %2213 = vmatprep.subr.bf16.mxu0 0
        %2214 = vmatpush2.bf16.msra.mxu0 0
        %2215 = vmatprep.subr.bf16.mxu0 0
        %2216 = vmatpush2.bf16.msra.mxu0 0
        %2217 = vmatprep.subr.bf16.mxu0 0
        %2218 = vmatpush2.bf16.msra.mxu0 0
        %2219 = vmatprep.subr.bf16.mxu0 0
        %2220 = vmatpush2.bf16.msra.mxu0 0
        %2221 = vmatprep.subr.bf16.mxu0 0
        %2222 = vmatpush2.bf16.msra.mxu0 0
        %2223 = vmatprep.subr.bf16.mxu0 0
        %2224 = vmatpush2.bf16.msra.mxu0 0
        %2225 = vmatprep.subr.bf16.mxu0 0
        %2226 = vmatpush2.bf16.msra.mxu0 0
        %2227 = vmatprep.subr.bf16.mxu0 0
        %2228 = vmatpush2.bf16.msra.mxu0 0
        %2229 = vmatprep.mubr.bf16.mxu0 0
        %2230 = vmatmul.mubr.bf16.gmra.mxu0 %v2017
        %v2231 = vpop.f32.mrf.mxu0
        %v2232 = vadd.f32 %v2057, %v2231
        %v2233 = vpop.f32.mrf.mxu0
        %v2234 = vadd.f32 %v2061, %v2233
        %v2235 = vpop.f32.mrf.mxu0
        %v2236 = vpop.f32.mrf.mxu0
        %2237 = vdwg.mxu0
        %2238 = vmatprep.subr.bf16.mxu0 0
        %2239 = vmatpush1.bf16.msra.mxu0 %v2172
        %2240 = vmatprep.subr.bf16.mxu0 0
        %2241 = vmatpush1.bf16.msra.mxu0 %v2169
        %2242 = vmatprep.subr.bf16.mxu0 0
        %2243 = vmatpush1.bf16.msra.mxu0 %v2166
        %2244 = vmatprep.subr.bf16.mxu0 0
        %2245 = vmatpush1.bf16.msra.mxu0 %v2163
        %2246 = vmatprep.subr.bf16.mxu0 0
        %2247 = vmatpush1.bf16.msra.mxu0 %v2160
        %2248 = vmatprep.subr.bf16.mxu0 0
        %2249 = vmatpush1.bf16.msra.mxu0 %v2157
        %2250 = vmatprep.subr.bf16.mxu0 0
        %2251 = vmatpush1.bf16.msra.mxu0 %v2154
        %2252 = vmatprep.subr.bf16.mxu0 0
        %2253 = vmatpush1.bf16.msra.mxu0 %v2151
        %2254 = vmatprep.subr.bf16.mxu0 0
        %2255 = vmatpush2.bf16.msra.mxu0 0
        %2256 = vmatprep.subr.bf16.mxu0 0
        %2257 = vmatpush2.bf16.msra.mxu0 0
        %2258 = vmatprep.subr.bf16.mxu0 0
        %2259 = vmatpush2.bf16.msra.mxu0 0
        %2260 = vmatprep.subr.bf16.mxu0 0
        %2261 = vmatpush2.bf16.msra.mxu0 0
        %2262 = vmatprep.subr.bf16.mxu0 0
        %2263 = vmatpush2.bf16.msra.mxu0 0
        %2264 = vmatprep.subr.bf16.mxu0 0
        %2265 = vmatpush2.bf16.msra.mxu0 0
        %2266 = vmatprep.subr.bf16.mxu0 0
        %2267 = vmatpush2.bf16.msra.mxu0 0
        %2268 = vmatprep.subr.bf16.mxu0 0
        %2269 = vmatpush2.bf16.msra.mxu0 0
        %2270 = vmatprep.mubr.bf16.mxu0 0
        %2271 = vmatmul.mubr.bf16.gmra.mxu0 %v2017
        %v2272 = vpop.f32.mrf.mxu0
        %v2273 = vadd.f32 %v2065, %v2272
        %v2274 = vpop.f32.mrf.mxu0
        %v2275 = vpop.f32.mrf.mxu0
        %v2276 = vpop.f32.mrf.mxu0
        %2277 = vdwg.mxu0
        %v2278 = vpack.c.bf16 %v2232, %v2232
        %v2279 = vpack.c.bf16 %v2234, %v2234
        %v2281 = vsel %vm930, %v2278, 0
        %v2284 = vsel %vm930, %v2279, 0
        %2286 = vmatprep.subr.bf16.mxu0 0
        %2287 = vmatpush1.bf16.xpose.msra.mxu0 0
        %2288 = vmatprep.subr.bf16.mxu0 0
        %2289 = vmatpush1.bf16.xpose.msra.mxu0 0
        %2290 = vmatprep.subr.bf16.mxu0 0
        %2291 = vmatpush1.bf16.xpose.msra.mxu0 0
        %2292 = vmatprep.subr.bf16.mxu0 0
        %2293 = vmatpush1.bf16.xpose.msra.mxu0 0
        %2294 = vmatprep.subr.bf16.mxu0 0
        %2295 = vmatpush1.bf16.xpose.msra.mxu0 0
        %2296 = vmatprep.subr.bf16.mxu0 0
        %2297 = vmatpush1.bf16.xpose.msra.mxu0 0
        %2298 = vmatprep.subr.bf16.mxu0 0
        %2299 = vmatpush1.bf16.xpose.msra.mxu0 0
        %2300 = vmatprep.subr.bf16.mxu0 0
        %2301 = vmatpush1.bf16.xpose.msra.mxu0 %v2284
        %2302 = vmatprep.subr.bf16.mxu0 0
        %2303 = vmatpush2.bf16.xpose.msra.mxu0 0
        %2304 = vmatprep.subr.bf16.mxu0 0
        %2305 = vmatpush2.bf16.xpose.msra.mxu0 0
        %2306 = vmatprep.subr.bf16.mxu0 0
        %2307 = vmatpush2.bf16.xpose.msra.mxu0 0
        %2308 = vmatprep.subr.bf16.mxu0 0
        %2309 = vmatpush2.bf16.xpose.msra.mxu0 0
        %2310 = vmatprep.subr.bf16.mxu0 0
        %2311 = vmatpush2.bf16.xpose.msra.mxu0 0
        %2312 = vmatprep.subr.bf16.mxu0 0
        %2313 = vmatpush2.bf16.xpose.msra.mxu0 0
        %2314 = vmatprep.subr.bf16.mxu0 0
        %2315 = vmatpush2.bf16.xpose.msra.mxu0 0
        %2316 = vmatprep.subr.bf16.mxu0 0
        %2317 = vmatpush2.bf16.xpose.msra.mxu0 0
        %2318 = vmatprep.mubr.bf16.mxu0 0
        %2319 = vmatmul.mubr.bf16.gmra.mxu0 %v2281
        %v2320 = vpop.f32.mrf.mxu0
        %v2321 = vadd.f32 0.0, %v2320
        %v2322 = vpop.f32.mrf.mxu0
        %v2323 = vpop.f32.mrf.mxu0
        %v2324 = vpop.f32.mrf.mxu0
        %2325 = vdwg.mxu0
        %v2326 = vmul.f32 %v2321, 0.125
        %v2327 = vadd.f32 %v2326, %v982
        %v2328 = vsel %vm985, %v2327, -inf
        %2329 = vmax.xlane.f32.xlu0 %v2328
        %v2330 = vpop.xlane.xlu0 %2329
        %v2331 = vsub.f32 %v2327, %v2330
        %v2332 = vmul.f32 %v2331, 1.442695
        %v2333 = vpow.pop %v2332
        %v2334 = vsel %vm985, %v2333, 0.0
        %2335 = vadd.xlane.f32.xlu0 %v2334
        %v2336 = vpop.xlane.xlu0 %2335
        %v2337 = vrcp.pop %v2336
        %v2338 = vmul.f32 %v2333, %v2337
        %v2339 = vpack.c.bf16 %v2338, %v2338
        %v2340 = vpack.c.bf16 %v2273, %v2273
        %v2342 = vsel %vm985, %v2339, 0
        %v2345 = vsel %vm1002, %v2340, 0
        %2347 = vmatprep.subr.bf16.mxu0 0
        %2348 = vmatpush1.bf16.msra.mxu0 0
        %2349 = vmatprep.subr.bf16.mxu0 0
        %2350 = vmatpush1.bf16.msra.mxu0 0
        %2351 = vmatprep.subr.bf16.mxu0 0
        %2352 = vmatpush1.bf16.msra.mxu0 0
        %2353 = vmatprep.subr.bf16.mxu0 0
        %2354 = vmatpush1.bf16.msra.mxu0 0
        %2355 = vmatprep.subr.bf16.mxu0 0
        %2356 = vmatpush1.bf16.msra.mxu0 0
        %2357 = vmatprep.subr.bf16.mxu0 0
        %2358 = vmatpush1.bf16.msra.mxu0 0
        %2359 = vmatprep.subr.bf16.mxu0 0
        %2360 = vmatpush1.bf16.msra.mxu0 0
        %2361 = vmatprep.subr.bf16.mxu0 0
        %2362 = vmatpush1.bf16.msra.mxu0 %v2345
        %2363 = vmatprep.subr.bf16.mxu0 0
        %2364 = vmatpush2.bf16.msra.mxu0 0
        %2365 = vmatprep.subr.bf16.mxu0 0
        %2366 = vmatpush2.bf16.msra.mxu0 0
        %2367 = vmatprep.subr.bf16.mxu0 0
        %2368 = vmatpush2.bf16.msra.mxu0 0
        %2369 = vmatprep.subr.bf16.mxu0 0
        %2370 = vmatpush2.bf16.msra.mxu0 0
        %2371 = vmatprep.subr.bf16.mxu0 0
        %2372 = vmatpush2.bf16.msra.mxu0 0
        %2373 = vmatprep.subr.bf16.mxu0 0
        %2374 = vmatpush2.bf16.msra.mxu0 0
        %2375 = vmatprep.subr.bf16.mxu0 0
        %2376 = vmatpush2.bf16.msra.mxu0 0
        %2377 = vmatprep.subr.bf16.mxu0 0
        %2378 = vmatpush2.bf16.msra.mxu0 0
        %2379 = vmatprep.mubr.bf16.mxu0 0
        %2380 = vmatmul.mubr.bf16.gmra.mxu0 %v2342
        %v2381 = vpop.f32.mrf.mxu0
        %v2382 = vadd.f32 0.0, %v2381
        %v2383 = vpop.f32.mrf.mxu0
        %v2384 = vpop.f32.mrf.mxu0
        %v2385 = vpop.f32.mrf.mxu0
        %2386 = vdwg.mxu0
        %2387 = vst.msk [vmem:[#allocation2] sm:$0xff] %vm930, %v2382
        %2389 = vrot.lane.b32.xlu0 %v2278, 64
        %v2390 = vpop.permute.xlu0 %2389
        %2392 = vrot.lane.b32.xlu0 %v2279, 64
        %v2393 = vpop.permute.xlu0 %2392
        %v2395 = vsel %vm930, %v2390, 0
        %v2398 = vsel %vm930, %v2393, 0
        %2400 = vmatprep.subr.bf16.mxu0 0
        %2401 = vmatpush1.bf16.xpose.msra.mxu0 0
        %2402 = vmatprep.subr.bf16.mxu0 0
        %2403 = vmatpush1.bf16.xpose.msra.mxu0 0
        %2404 = vmatprep.subr.bf16.mxu0 0
        %2405 = vmatpush1.bf16.xpose.msra.mxu0 0
        %2406 = vmatprep.subr.bf16.mxu0 0
        %2407 = vmatpush1.bf16.xpose.msra.mxu0 0
        %2408 = vmatprep.subr.bf16.mxu0 0
        %2409 = vmatpush1.bf16.xpose.msra.mxu0 0
        %2410 = vmatprep.subr.bf16.mxu0 0
        %2411 = vmatpush1.bf16.xpose.msra.mxu0 0
        %2412 = vmatprep.subr.bf16.mxu0 0
        %2413 = vmatpush1.bf16.xpose.msra.mxu0 0
        %2414 = vmatprep.subr.bf16.mxu0 0
        %2415 = vmatpush1.bf16.xpose.msra.mxu0 %v2398
        %2416 = vmatprep.subr.bf16.mxu0 0
        %2417 = vmatpush2.bf16.xpose.msra.mxu0 0
        %2418 = vmatprep.subr.bf16.mxu0 0
        %2419 = vmatpush2.bf16.xpose.msra.mxu0 0
        %2420 = vmatprep.subr.bf16.mxu0 0
        %2421 = vmatpush2.bf16.xpose.msra.mxu0 0
        %2422 = vmatprep.subr.bf16.mxu0 0
        %2423 = vmatpush2.bf16.xpose.msra.mxu0 0
        %2424 = vmatprep.subr.bf16.mxu0 0
        %2425 = vmatpush2.bf16.xpose.msra.mxu0 0
        %2426 = vmatprep.subr.bf16.mxu0 0
        %2427 = vmatpush2.bf16.xpose.msra.mxu0 0
        %2428 = vmatprep.subr.bf16.mxu0 0
        %2429 = vmatpush2.bf16.xpose.msra.mxu0 0
        %2430 = vmatprep.subr.bf16.mxu0 0
        %2431 = vmatpush2.bf16.xpose.msra.mxu0 0
        %2432 = vmatprep.mubr.bf16.mxu0 0
        %2433 = vmatmul.mubr.bf16.gmra.mxu0 %v2395
        %v2434 = vpop.f32.mrf.mxu0
        %v2435 = vadd.f32 0.0, %v2434
        %v2436 = vpop.f32.mrf.mxu0
        %v2437 = vpop.f32.mrf.mxu0
        %v2438 = vpop.f32.mrf.mxu0
        %2439 = vdwg.mxu0
        %v2440 = vmul.f32 %v2435, 0.125
        %v2441 = vadd.f32 %v2440, %v982
        %v2442 = vsel %vm985, %v2441, -inf
        %2443 = vmax.xlane.f32.xlu0 %v2442
        %v2444 = vpop.xlane.xlu0 %2443
        %v2445 = vsub.f32 %v2441, %v2444
        %v2446 = vmul.f32 %v2445, 1.442695
        %v2447 = vpow.pop %v2446
        %v2448 = vsel %vm985, %v2447, 0.0
        %2449 = vadd.xlane.f32.xlu0 %v2448
        %v2450 = vpop.xlane.xlu0 %2449
        %v2451 = vrcp.pop %v2450
        %v2452 = vmul.f32 %v2447, %v2451
        %v2453 = vpack.c.bf16 %v2452, %v2452
        %2455 = vrot.lane.b32.xlu0 %v2340, 64
        %v2456 = vpop.permute.xlu0 %2455
        %v2458 = vsel %vm985, %v2453, 0
        %v2461 = vsel %vm1002, %v2456, 0
        %2463 = vmatprep.subr.bf16.mxu0 0
        %2464 = vmatpush1.bf16.msra.mxu0 0
        %2465 = vmatprep.subr.bf16.mxu0 0
        %2466 = vmatpush1.bf16.msra.mxu0 0
        %2467 = vmatprep.subr.bf16.mxu0 0
        %2468 = vmatpush1.bf16.msra.mxu0 0
        %2469 = vmatprep.subr.bf16.mxu0 0
        %2470 = vmatpush1.bf16.msra.mxu0 0
        %2471 = vmatprep.subr.bf16.mxu0 0
        %2472 = vmatpush1.bf16.msra.mxu0 0
        %2473 = vmatprep.subr.bf16.mxu0 0
        %2474 = vmatpush1.bf16.msra.mxu0 0
        %2475 = vmatprep.subr.bf16.mxu0 0
        %2476 = vmatpush1.bf16.msra.mxu0 0
        %2477 = vmatprep.subr.bf16.mxu0 0
        %2478 = vmatpush1.bf16.msra.mxu0 %v2461
        %2479 = vmatprep.subr.bf16.mxu0 0
        %2480 = vmatpush2.bf16.msra.mxu0 0
        %2481 = vmatprep.subr.bf16.mxu0 0
        %2482 = vmatpush2.bf16.msra.mxu0 0
        %2483 = vmatprep.subr.bf16.mxu0 0
        %2484 = vmatpush2.bf16.msra.mxu0 0
        %2485 = vmatprep.subr.bf16.mxu0 0
        %2486 = vmatpush2.bf16.msra.mxu0 0
        %2487 = vmatprep.subr.bf16.mxu0 0
        %2488 = vmatpush2.bf16.msra.mxu0 0
        %2489 = vmatprep.subr.bf16.mxu0 0
        %2490 = vmatpush2.bf16.msra.mxu0 0
        %2491 = vmatprep.subr.bf16.mxu0 0
        %2492 = vmatpush2.bf16.msra.mxu0 0
        %2493 = vmatprep.subr.bf16.mxu0 0
        %2494 = vmatpush2.bf16.msra.mxu0 0
        %2495 = vmatprep.mubr.bf16.mxu0 0
        %2496 = vmatmul.mubr.bf16.gmra.mxu0 %v2458
        %v2497 = vpop.f32.mrf.mxu0
        %v2498 = vadd.f32 0.0, %v2497
        %v2499 = vpop.f32.mrf.mxu0
        %v2500 = vpop.f32.mrf.mxu0
        %v2501 = vpop.f32.mrf.mxu0
        %2502 = vdwg.mxu0
        %2504 = vrot.lane.b32.xlu0 %v2498, 64
        %v2505 = vpop.permute.xlu0 %2504
        %2507 = vst.msk [vmem:[#allocation2] sm:$0xff] %vm1166, %v2505
        %v2508 = vld [vmem:[#allocation2] sm:$0xff]
        %v2509 = vpack.c.bf16 %v2508, %v2508
        %s2510 = scalar_lea.vmem %s6, 64
        %v2511 = vld [vmem:[%s2510] sm:$0xf]
        %v2512 = vld [vmem:[%s2510 + $0x4] sm:$0xf]
        %v2513 = vld [vmem:[%s2510 + $0x8] sm:$0xf]
        %v2514 = vld [vmem:[%s2510 + $0xc] sm:$0xf]
        %v2515 = vld [vmem:[%s2510 + $0x10] sm:$0xf]
        %v2516 = vld [vmem:[%s2510 + $0x14] sm:$0xf]
        %v2517 = vld [vmem:[%s2510 + $0x18] sm:$0xf]
        %v2518 = vld [vmem:[%s2510 + $0x1c] sm:$0xf]
        %v2519 = vld [vmem:[%s2510 + $0x20] sm:$0xf]
        %v2520 = vld [vmem:[%s2510 + $0x24] sm:$0xf]
        %v2521 = vld [vmem:[%s2510 + $0x28] sm:$0xf]
        %v2522 = vld [vmem:[%s2510 + $0x2c] sm:$0xf]
        %v2523 = vld [vmem:[%s2510 + $0x30] sm:$0xf]
        %v2524 = vld [vmem:[%s2510 + $0x34] sm:$0xf]
        %v2525 = vld [vmem:[%s2510 + $0x38] sm:$0xf]
        %v2526 = vld [vmem:[%s2510 + $0x3c] sm:$0xf]
        %s2527 = scalar_lea.vmem %s7, 1
        %v2528 = vld [vmem:[%s2527] sm:$0x1]
        %v2530 = vlaneseq
        %v2531 = vshrl.u32 %v2530, 7
        %v2532 = vsub.s32 0, %v2531
        %v2533 = vrot.slane %v2528, %v2532
        %v2551 = vunpack.c.l.b16 %v2511
        %v2552 = vunpack.c.l.b16 %v2512
        %v2553 = vunpack.c.l.b16 %v2513
        %v2554 = vunpack.c.l.b16 %v2514
        %v2555 = vunpack.c.l.b16 %v2515
        %v2556 = vunpack.c.l.b16 %v2516
        %v2557 = vunpack.c.l.b16 %v2517
        %v2558 = vunpack.c.l.b16 %v2518
        %v2559 = vunpack.c.l.b16 %v2519
        %v2560 = vunpack.c.l.b16 %v2520
        %v2561 = vunpack.c.l.b16 %v2521
        %v2562 = vunpack.c.l.b16 %v2522
        %v2563 = vunpack.c.l.b16 %v2523
        %v2564 = vunpack.c.l.b16 %v2524
        %v2565 = vunpack.c.l.b16 %v2525
        %v2566 = vunpack.c.l.b16 %v2526
        %v2567 = vpack.c.b16 %v2552, %v2551
        %v2568 = vpack.c.b16 %v2554, %v2553
        %v2569 = vpack.c.b16 %v2556, %v2555
        %v2570 = vpack.c.b16 %v2558, %v2557
        %v2571 = vpack.c.b16 %v2560, %v2559
        %v2572 = vpack.c.b16 %v2562, %v2561
        %v2573 = vpack.c.b16 %v2564, %v2563
        %v2574 = vpack.c.b16 %v2566, %v2565
        %2583 = vmatprep.subr.bf16.mxu0 0
        %2584 = vmatpush1.bf16.msra.mxu0 %v2574
        %2585 = vmatprep.subr.bf16.mxu0 0
        %2586 = vmatpush1.bf16.msra.mxu0 %v2573
        %2587 = vmatprep.subr.bf16.mxu0 0
        %2588 = vmatpush1.bf16.msra.mxu0 %v2572
        %2589 = vmatprep.subr.bf16.mxu0 0
        %2590 = vmatpush1.bf16.msra.mxu0 %v2571
        %2591 = vmatprep.subr.bf16.mxu0 0
        %2592 = vmatpush1.bf16.msra.mxu0 %v2570
        %2593 = vmatprep.subr.bf16.mxu0 0
        %2594 = vmatpush1.bf16.msra.mxu0 %v2569
        %2595 = vmatprep.subr.bf16.mxu0 0
        %2596 = vmatpush1.bf16.msra.mxu0 %v2568
        %2597 = vmatprep.subr.bf16.mxu0 0
        %2598 = vmatpush1.bf16.msra.mxu0 %v2567
        %2599 = vmatprep.subr.bf16.mxu0 0
        %2600 = vmatpush2.bf16.msra.mxu0 0
        %2601 = vmatprep.subr.bf16.mxu0 0
        %2602 = vmatpush2.bf16.msra.mxu0 0
        %2603 = vmatprep.subr.bf16.mxu0 0
        %2604 = vmatpush2.bf16.msra.mxu0 0
        %2605 = vmatprep.subr.bf16.mxu0 0
        %2606 = vmatpush2.bf16.msra.mxu0 0
        %2607 = vmatprep.subr.bf16.mxu0 0
        %2608 = vmatpush2.bf16.msra.mxu0 0
        %2609 = vmatprep.subr.bf16.mxu0 0
        %2610 = vmatpush2.bf16.msra.mxu0 0
        %2611 = vmatprep.subr.bf16.mxu0 0
        %2612 = vmatpush2.bf16.msra.mxu0 0
        %2613 = vmatprep.subr.bf16.mxu0 0
        %2614 = vmatpush2.bf16.msra.mxu0 0
        %2615 = vmatprep.mubr.bf16.mxu0 0
        %2616 = vmatmul.mubr.bf16.gmra.mxu0 %v2509
        %v2617 = vpop.f32.mrf.mxu0
        %v2618 = vadd.f32 %v2533, %v2617
        %v2619 = vpop.f32.mrf.mxu0
        %v2620 = vpop.f32.mrf.mxu0
        %v2621 = vpop.f32.mrf.mxu0
        %2622 = vdwg.mxu0
        %v2623 = vadd.f32 %v2618, %v2016
        %s2624 = scalar_lea.vmem %s8, 1
        %v2625 = vld [vmem:[%s2624] sm:$0x1]
        %s2626 = scalar_lea.vmem %s9, 1
        %v2627 = vld [vmem:[%s2626] sm:$0x1]
        %2628 = vadd.xlane.f32.xlu0 %v2623
        %v2629 = vpop.xlane.xlu0 %2628
        %v2630 = vmul.f32 %v2629, %v645
        %v2631 = vsub.f32 %v2623, %v2630
        %v2632 = vmul.f32 %v2631, %v2631
        %2633 = vadd.xlane.f32.xlu0 %v2632
        %v2634 = vpop.xlane.xlu0 %2633
        %v2635 = vmul.f32 %v2634, %v645
        %v2636 = vadd.f32 %v2635, 1e-12
        %v2637 = vrsqrt.pop %v2636
        %v2638 = vmul.f32 %v2631, %v2637
        %v2640 = vlaneseq
        %v2641 = vshrl.u32 %v2640, 7
        %v2642 = vsub.s32 0, %v2641
        %v2643 = vrot.slane %v2625, %v2642
        %v2645 = vmul.f32 %v2638, %v2643
        %v2647 = vlaneseq
        %v2648 = vshrl.u32 %v2647, 7
        %v2649 = vsub.s32 0, %v2648
        %v2650 = vrot.slane %v2627, %v2649
        %v2652 = vadd.f32 %v2645, %v2650
        %v2653 = vpack.c.bf16 %v2652, %v2652
        %s2654 = scalar_lea.vmem %s10, 256
        %v2655 = vld [vmem:[%s2654] sm:$0xff]
        %v2656 = vld [vmem:[%s2654 + $0x8] sm:$0xff]
        %v2657 = vld [vmem:[%s2654 + $0x10] sm:$0xff]
        %v2658 = vld [vmem:[%s2654 + $0x18] sm:$0xff]
        %v2659 = vld [vmem:[%s2654 + $0x20] sm:$0xff]
        %v2660 = vld [vmem:[%s2654 + $0x28] sm:$0xff]
        %v2661 = vld [vmem:[%s2654 + $0x30] sm:$0xff]
        %v2662 = vld [vmem:[%s2654 + $0x38] sm:$0xff]
        %v2663 = vld [vmem:[%s2654 + $0x40] sm:$0xff]
        %v2664 = vld [vmem:[%s2654 + $0x48] sm:$0xff]
        %v2665 = vld [vmem:[%s2654 + $0x50] sm:$0xff]
        %v2666 = vld [vmem:[%s2654 + $0x58] sm:$0xff]
        %v2667 = vld [vmem:[%s2654 + $0x60] sm:$0xff]
        %v2668 = vld [vmem:[%s2654 + $0x68] sm:$0xff]
        %v2669 = vld [vmem:[%s2654 + $0x70] sm:$0xff]
        %v2670 = vld [vmem:[%s2654 + $0x78] sm:$0xff]
        %v2671 = vld [vmem:[%s2654 + $0x80] sm:$0xff]
        %v2672 = vld [vmem:[%s2654 + $0x88] sm:$0xff]
        %v2673 = vld [vmem:[%s2654 + $0x90] sm:$0xff]
        %v2674 = vld [vmem:[%s2654 + $0x98] sm:$0xff]
        %v2675 = vld [vmem:[%s2654 + $0xa0] sm:$0xff]
        %v2676 = vld [vmem:[%s2654 + $0xa8] sm:$0xff]
        %v2677 = vld [vmem:[%s2654 + $0xb0] sm:$0xff]
        %v2678 = vld [vmem:[%s2654 + $0xb8] sm:$0xff]
        %v2679 = vld [vmem:[%s2654 + $0xc0] sm:$0xff]
        %v2680 = vld [vmem:[%s2654 + $0xc8] sm:$0xff]
        %v2681 = vld [vmem:[%s2654 + $0xd0] sm:$0xff]
        %v2682 = vld [vmem:[%s2654 + $0xd8] sm:$0xff]
        %v2683 = vld [vmem:[%s2654 + $0xe0] sm:$0xff]
        %v2684 = vld [vmem:[%s2654 + $0xe8] sm:$0xff]
        %v2685 = vld [vmem:[%s2654 + $0xf0] sm:$0xff]
        %v2686 = vld [vmem:[%s2654 + $0xf8] sm:$0xff]
        %s2687 = scalar_lea.vmem %s11, 4
        %v2688 = vld [vmem:[%s2687] sm:$0xf]
        %v2690 = vlaneseq
        %v2691 = vshrl.u32 %v2690, 7
        %v2692 = vsub.s32 0, %v2691
        %v2693 = vrot.slane %v2688, %v2692
        %v2694 = vlaneseq
        %v2695 = vshrl.u32 %v2694, 7
        %v2696 = vsub.s32 1, %v2695
        %v2697 = vrot.slane %v2688, %v2696
        %v2698 = vlaneseq
        %v2699 = vshrl.u32 %v2698, 7
        %v2700 = vsub.s32 2, %v2699
        %v2701 = vrot.slane %v2688, %v2700
        %v2702 = vlaneseq
        %v2703 = vshrl.u32 %v2702, 7
        %v2704 = vsub.s32 3, %v2703
        %v2705 = vrot.slane %v2688, %v2704
        %v2742 = vunpack.c.l.b16 %v2655
        %v2743 = vunpack.c.h.b16 %v2655
        %v2744 = vunpack.c.l.b16 %v2656
        %v2745 = vunpack.c.h.b16 %v2656
        %v2746 = vunpack.c.l.b16 %v2657
        %v2747 = vunpack.c.h.b16 %v2657
        %v2748 = vunpack.c.l.b16 %v2658
        %v2749 = vunpack.c.h.b16 %v2658
        %v2750 = vunpack.c.l.b16 %v2659
        %v2751 = vunpack.c.h.b16 %v2659
        %v2752 = vunpack.c.l.b16 %v2660
        %v2753 = vunpack.c.h.b16 %v2660
        %v2754 = vunpack.c.l.b16 %v2661
        %v2755 = vunpack.c.h.b16 %v2661
        %v2756 = vunpack.c.l.b16 %v2662
        %v2757 = vunpack.c.h.b16 %v2662
        %v2758 = vunpack.c.l.b16 %v2663
        %v2759 = vunpack.c.h.b16 %v2663
        %v2760 = vunpack.c.l.b16 %v2664
        %v2761 = vunpack.c.h.b16 %v2664
        %v2762 = vunpack.c.l.b16 %v2665
        %v2763 = vunpack.c.h.b16 %v2665
        %v2764 = vunpack.c.l.b16 %v2666
        %v2765 = vunpack.c.h.b16 %v2666
        %v2766 = vunpack.c.l.b16 %v2667
        %v2767 = vunpack.c.h.b16 %v2667
        %v2768 = vunpack.c.l.b16 %v2668
        %v2769 = vunpack.c.h.b16 %v2668
        %v2770 = vunpack.c.l.b16 %v2669
        %v2771 = vunpack.c.h.b16 %v2669
        %v2772 = vunpack.c.l.b16 %v2670
        %v2773 = vunpack.c.h.b16 %v2670
        %v2774 = vunpack.c.l.b16 %v2671
        %v2775 = vunpack.c.h.b16 %v2671
        %v2776 = vunpack.c.l.b16 %v2672
        %v2777 = vunpack.c.h.b16 %v2672
        %v2778 = vunpack.c.l.b16 %v2673
        %v2779 = vunpack.c.h.b16 %v2673
        %v2780 = vunpack.c.l.b16 %v2674
        %v2781 = vunpack.c.h.b16 %v2674
        %v2782 = vunpack.c.l.b16 %v2675
        %v2783 = vunpack.c.h.b16 %v2675
        %v2784 = vunpack.c.l.b16 %v2676
        %v2785 = vunpack.c.h.b16 %v2676
        %v2786 = vunpack.c.l.b16 %v2677
        %v2787 = vunpack.c.h.b16 %v2677
        %v2788 = vunpack.c.l.b16 %v2678
        %v2789 = vunpack.c.h.b16 %v2678
        %v2790 = vunpack.c.l.b16 %v2679
        %v2791 = vunpack.c.h.b16 %v2679
        %v2792 = vunpack.c.l.b16 %v2680
        %v2793 = vunpack.c.h.b16 %v2680
        %v2794 = vunpack.c.l.b16 %v2681
        %v2795 = vunpack.c.h.b16 %v2681
        %v2796 = vunpack.c.l.b16 %v2682
        %v2797 = vunpack.c.h.b16 %v2682
        %v2798 = vunpack.c.l.b16 %v2683
        %v2799 = vunpack.c.h.b16 %v2683
        %v2800 = vunpack.c.l.b16 %v2684
        %v2801 = vunpack.c.h.b16 %v2684
        %v2802 = vunpack.c.l.b16 %v2685
        %v2803 = vunpack.c.h.b16 %v2685
        %v2804 = vunpack.c.l.b16 %v2686
        %v2805 = vunpack.c.h.b16 %v2686
        %v2806 = vpack.c.b16 %v2746, %v2742
        %v2807 = vpack.c.b16 %v2747, %v2743
        %v2808 = vpack.c.b16 %v2748, %v2744
        %v2809 = vpack.c.b16 %v2749, %v2745
        %v2810 = vpack.c.b16 %v2754, %v2750
        %v2811 = vpack.c.b16 %v2755, %v2751
        %v2812 = vpack.c.b16 %v2756, %v2752
        %v2813 = vpack.c.b16 %v2757, %v2753
        %v2814 = vpack.c.b16 %v2762, %v2758
        %v2815 = vpack.c.b16 %v2763, %v2759
        %v2816 = vpack.c.b16 %v2764, %v2760
        %v2817 = vpack.c.b16 %v2765, %v2761
        %v2818 = vpack.c.b16 %v2770, %v2766
        %v2819 = vpack.c.b16 %v2771, %v2767
        %v2820 = vpack.c.b16 %v2772, %v2768
        %v2821 = vpack.c.b16 %v2773, %v2769
        %v2822 = vpack.c.b16 %v2778, %v2774
        %v2823 = vpack.c.b16 %v2779, %v2775
        %v2824 = vpack.c.b16 %v2780, %v2776
        %v2825 = vpack.c.b16 %v2781, %v2777
        %v2826 = vpack.c.b16 %v2786, %v2782
        %v2827 = vpack.c.b16 %v2787, %v2783
        %v2828 = vpack.c.b16 %v2788, %v2784
        %v2829 = vpack.c.b16 %v2789, %v2785
        %v2830 = vpack.c.b16 %v2794, %v2790
        %v2831 = vpack.c.b16 %v2795, %v2791
        %v2832 = vpack.c.b16 %v2796, %v2792
        %v2833 = vpack.c.b16 %v2797, %v2793
        %v2834 = vpack.c.b16 %v2802, %v2798
        %v2835 = vpack.c.b16 %v2803, %v2799
        %v2836 = vpack.c.b16 %v2804, %v2800
        %v2837 = vpack.c.b16 %v2805, %v2801
        %2870 = vmatprep.subr.bf16.mxu0 %v2835
        %2871 = vmatpush1.bf16.msra.mxu0 %v2834
        %2872 = vmatprep.subr.bf16.mxu0 %v2831
        %2873 = vmatpush1.bf16.msra.mxu0 %v2830
        %2874 = vmatprep.subr.bf16.mxu0 %v2827
        %2875 = vmatpush1.bf16.msra.mxu0 %v2826
        %2876 = vmatprep.subr.bf16.mxu0 %v2823
        %2877 = vmatpush1.bf16.msra.mxu0 %v2822
        %2878 = vmatprep.subr.bf16.mxu0 %v2819
        %2879 = vmatpush1.bf16.msra.mxu0 %v2818
        %2880 = vmatprep.subr.bf16.mxu0 %v2815
        %2881 = vmatpush1.bf16.msra.mxu0 %v2814
        %2882 = vmatprep.subr.bf16.mxu0 %v2811
        %2883 = vmatpush1.bf16.msra.mxu0 %v2810
        %2884 = vmatprep.subr.bf16.mxu0 %v2807
        %2885 = vmatpush1.bf16.msra.mxu0 %v2806
        %2886 = vmatprep.subr.bf16.mxu0 0
        %2887 = vmatpush2.bf16.msra.mxu0 0
        %2888 = vmatprep.subr.bf16.mxu0 0
        %2889 = vmatpush2.bf16.msra.mxu0 0
        %2890 = vmatprep.subr.bf16.mxu0 0
        %2891 = vmatpush2.bf16.msra.mxu0 0
        %2892 = vmatprep.subr.bf16.mxu0 0
        %2893 = vmatpush2.bf16.msra.mxu0 0
        %2894 = vmatprep.subr.bf16.mxu0 0
        %2895 = vmatpush2.bf16.msra.mxu0 0
        %2896 = vmatprep.subr.bf16.mxu0 0
        %2897 = vmatpush2.bf16.msra.mxu0 0
        %2898 = vmatprep.subr.bf16.mxu0 0
        %2899 = vmatpush2.bf16.msra.mxu0 0
        %2900 = vmatprep.subr.bf16.mxu0 0
        %2901 = vmatpush2.bf16.msra.mxu0 0
        %2902 = vmatprep.mubr.bf16.mxu0 0
        %2903 = vmatmul.mubr.bf16.gmra.mxu0 %v2653
        %v2904 = vpop.f32.mrf.mxu0
        %v2905 = vadd.f32 %v2693, %v2904
        %v2906 = vpop.f32.mrf.mxu0
        %v2907 = vadd.f32 %v2697, %v2906
        %v2908 = vpop.f32.mrf.mxu0
        %v2909 = vpop.f32.mrf.mxu0
        %2910 = vdwg.mxu0
        %2911 = vmatprep.subr.bf16.mxu0 %v2837
        %2912 = vmatpush1.bf16.msra.mxu0 %v2836
        %2913 = vmatprep.subr.bf16.mxu0 %v2833
        %2914 = vmatpush1.bf16.msra.mxu0 %v2832
        %2915 = vmatprep.subr.bf16.mxu0 %v2829
        %2916 = vmatpush1.bf16.msra.mxu0 %v2828
        %2917 = vmatprep.subr.bf16.mxu0 %v2825
        %2918 = vmatpush1.bf16.msra.mxu0 %v2824
        %2919 = vmatprep.subr.bf16.mxu0 %v2821
        %2920 = vmatpush1.bf16.msra.mxu0 %v2820
        %2921 = vmatprep.subr.bf16.mxu0 %v2817
        %2922 = vmatpush1.bf16.msra.mxu0 %v2816
        %2923 = vmatprep.subr.bf16.mxu0 %v2813
        %2924 = vmatpush1.bf16.msra.mxu0 %v2812
        %2925 = vmatprep.subr.bf16.mxu0 %v2809
        %2926 = vmatpush1.bf16.msra.mxu0 %v2808
        %2927 = vmatprep.subr.bf16.mxu0 0
        %2928 = vmatpush2.bf16.msra.mxu0 0
        %2929 = vmatprep.subr.bf16.mxu0 0
        %2930 = vmatpush2.bf16.msra.mxu0 0
        %2931 = vmatprep.subr.bf16.mxu0 0
        %2932 = vmatpush2.bf16.msra.mxu0 0
        %2933 = vmatprep.subr.bf16.mxu0 0
        %2934 = vmatpush2.bf16.msra.mxu0 0
        %2935 = vmatprep.subr.bf16.mxu0 0
        %2936 = vmatpush2.bf16.msra.mxu0 0
        %2937 = vmatprep.subr.bf16.mxu0 0
        %2938 = vmatpush2.bf16.msra.mxu0 0
        %2939 = vmatprep.subr.bf16.mxu0 0
        %2940 = vmatpush2.bf16.msra.mxu0 0
        %2941 = vmatprep.subr.bf16.mxu0 0
        %2942 = vmatpush2.bf16.msra.mxu0 0
        %2943 = vmatprep.mubr.bf16.mxu0 0
        %2944 = vmatmul.mubr.bf16.gmra.mxu0 %v2653
        %v2945 = vpop.f32.mrf.mxu0
        %v2946 = vadd.f32 %v2701, %v2945
        %v2947 = vpop.f32.mrf.mxu0
        %v2948 = vadd.f32 %v2705, %v2947
        %v2949 = vpop.f32.mrf.mxu0
        %v2950 = vpop.f32.mrf.mxu0
        %2951 = vdwg.mxu0
        %v2952 = vmul.f32 %v2905, 0.5
        %v2953 = vmul.f32 %v2907, 0.5
        %v2954 = vmul.f32 %v2946, 0.5
        %v2955 = vmul.f32 %v2948, 0.5
        %v2956 = vmul.f32 %v2905, 0.044715
        %v2957 = vmul.f32 %v2907, 0.044715
        %v2958 = vmul.f32 %v2946, 0.044715
        %v2959 = vmul.f32 %v2948, 0.044715
        %v2960 = vmul.f32 %v2956, %v2905
        %v2961 = vmul.f32 %v2957, %v2907
        %v2962 = vmul.f32 %v2958, %v2946
        %v2963 = vmul.f32 %v2959, %v2948
        %v2964 = vmul.f32 %v2960, %v2905
        %v2965 = vmul.f32 %v2961, %v2907
        %v2966 = vmul.f32 %v2962, %v2946
        %v2967 = vmul.f32 %v2963, %v2948
        %v2968 = vadd.f32 %v2905, %v2964
        %v2969 = vadd.f32 %v2907, %v2965
        %v2970 = vadd.f32 %v2946, %v2966
        %v2971 = vadd.f32 %v2948, %v2967
        %v2972 = vmul.f32 %v2968, 0.7978845
        %v2973 = vmul.f32 %v2969, 0.7978845
        %v2974 = vmul.f32 %v2970, 0.7978845
        %v2975 = vmul.f32 %v2971, 0.7978845
        %v2976 = vtanh.pop %v2972
        %v2977 = vtanh.pop %v2973
        %v2978 = vtanh.pop %v2974
        %v2979 = vtanh.pop %v2975
        %v2980 = vadd.f32 %v2976, 1.0
        %v2981 = vadd.f32 %v2977, 1.0
        %v2982 = vadd.f32 %v2978, 1.0
        %v2983 = vadd.f32 %v2979, 1.0
        %v2984 = vmul.f32 %v2952, %v2980
        %v2985 = vmul.f32 %v2953, %v2981
        %v2986 = vmul.f32 %v2954, %v2982
        %v2987 = vmul.f32 %v2955, %v2983
        %v2988 = vpack.c.bf16 %v2984, %v2984
        %v2989 = vpack.c.bf16 %v2985, %v2985
        %v2990 = vpack.c.bf16 %v2986, %v2986
        %v2991 = vpack.c.bf16 %v2987, %v2987
        %s2992 = scalar_lea.vmem %s12, 256
        %v2993 = vld [vmem:[%s2992] sm:$0xf]
        %v2994 = vld [vmem:[%s2992 + $0x4] sm:$0xf]
        %v2995 = vld [vmem:[%s2992 + $0x8] sm:$0xf]
        %v2996 = vld [vmem:[%s2992 + $0xc] sm:$0xf]
        %v2997 = vld [vmem:[%s2992 + $0x10] sm:$0xf]
        %v2998 = vld [vmem:[%s2992 + $0x14] sm:$0xf]
        %v2999 = vld [vmem:[%s2992 + $0x18] sm:$0xf]
        %v3000 = vld [vmem:[%s2992 + $0x1c] sm:$0xf]
        %v3001 = vld [vmem:[%s2992 + $0x20] sm:$0xf]
        %v3002 = vld [vmem:[%s2992 + $0x24] sm:$0xf]
        %v3003 = vld [vmem:[%s2992 + $0x28] sm:$0xf]
        %v3004 = vld [vmem:[%s2992 + $0x2c] sm:$0xf]
        %v3005 = vld [vmem:[%s2992 + $0x30] sm:$0xf]
        %v3006 = vld [vmem:[%s2992 + $0x34] sm:$0xf]
        %v3007 = vld [vmem:[%s2992 + $0x38] sm:$0xf]
        %v3008 = vld [vmem:[%s2992 + $0x3c] sm:$0xf]
        %v3009 = vld [vmem:[%s2992 + $0x40] sm:$0xf]
        %v3010 = vld [vmem:[%s2992 + $0x44] sm:$0xf]
        %v3011 = vld [vmem:[%s2992 + $0x48] sm:$0xf]
        %v3012 = vld [vmem:[%s2992 + $0x4c] sm:$0xf]
        %v3013 = vld [vmem:[%s2992 + $0x50] sm:$0xf]
        %v3014 = vld [vmem:[%s2992 + $0x54] sm:$0xf]
        %v3015 = vld [vmem:[%s2992 + $0x58] sm:$0xf]
        %v3016 = vld [vmem:[%s2992 + $0x5c] sm:$0xf]
        %v3017 = vld [vmem:[%s2992 + $0x60] sm:$0xf]
        %v3018 = vld [vmem:[%s2992 + $0x64] sm:$0xf]
        %v3019 = vld [vmem:[%s2992 + $0x68] sm:$0xf]
        %v3020 = vld [vmem:[%s2992 + $0x6c] sm:$0xf]
        %v3021 = vld [vmem:[%s2992 + $0x70] sm:$0xf]
        %v3022 = vld [vmem:[%s2992 + $0x74] sm:$0xf]
        %v3023 = vld [vmem:[%s2992 + $0x78] sm:$0xf]
        %v3024 = vld [vmem:[%s2992 + $0x7c] sm:$0xf]
        %v3025 = vld [vmem:[%s2992 + $0x80] sm:$0xf]
        %v3026 = vld [vmem:[%s2992 + $0x84] sm:$0xf]
        %v3027 = vld [vmem:[%s2992 + $0x88] sm:$0xf]
        %v3028 = vld [vmem:[%s2992 + $0x8c] sm:$0xf]
        %v3029 = vld [vmem:[%s2992 + $0x90] sm:$0xf]
        %v3030 = vld [vmem:[%s2992 + $0x94] sm:$0xf]
        %v3031 = vld [vmem:[%s2992 + $0x98] sm:$0xf]
        %v3032 = vld [vmem:[%s2992 + $0x9c] sm:$0xf]
        %v3033 = vld [vmem:[%s2992 + $0xa0] sm:$0xf]
        %v3034 = vld [vmem:[%s2992 + $0xa4] sm:$0xf]
        %v3035 = vld [vmem:[%s2992 + $0xa8] sm:$0xf]
        %v3036 = vld [vmem:[%s2992 + $0xac] sm:$0xf]
        %v3037 = vld [vmem:[%s2992 + $0xb0] sm:$0xf]
        %v3038 = vld [vmem:[%s2992 + $0xb4] sm:$0xf]
        %v3039 = vld [vmem:[%s2992 + $0xb8] sm:$0xf]
        %v3040 = vld [vmem:[%s2992 + $0xbc] sm:$0xf]
        %v3041 = vld [vmem:[%s2992 + $0xc0] sm:$0xf]
        %v3042 = vld [vmem:[%s2992 + $0xc4] sm:$0xf]
        %v3043 = vld [vmem:[%s2992 + $0xc8] sm:$0xf]
        %v3044 = vld [vmem:[%s2992 + $0xcc] sm:$0xf]
        %v3045 = vld [vmem:[%s2992 + $0xd0] sm:$0xf]
        %v3046 = vld [vmem:[%s2992 + $0xd4] sm:$0xf]
        %v3047 = vld [vmem:[%s2992 + $0xd8] sm:$0xf]
        %v3048 = vld [vmem:[%s2992 + $0xdc] sm:$0xf]
        %v3049 = vld [vmem:[%s2992 + $0xe0] sm:$0xf]
        %v3050 = vld [vmem:[%s2992 + $0xe4] sm:$0xf]
        %v3051 = vld [vmem:[%s2992 + $0xe8] sm:$0xf]
        %v3052 = vld [vmem:[%s2992 + $0xec] sm:$0xf]
        %v3053 = vld [vmem:[%s2992 + $0xf0] sm:$0xf]
        %v3054 = vld [vmem:[%s2992 + $0xf4] sm:$0xf]
        %v3055 = vld [vmem:[%s2992 + $0xf8] sm:$0xf]
        %v3056 = vld [vmem:[%s2992 + $0xfc] sm:$0xf]
        %s3057 = scalar_lea.vmem %s13, 1
        %v3058 = vld [vmem:[%s3057] sm:$0x1]
        %v3060 = vlaneseq
        %v3061 = vshrl.u32 %v3060, 7
        %v3062 = vsub.s32 0, %v3061
        %v3063 = vrot.slane %v3058, %v3062
        %v3129 = vunpack.c.l.b16 %v2993
        %v3130 = vunpack.c.l.b16 %v2994
        %v3131 = vunpack.c.l.b16 %v2995
        %v3132 = vunpack.c.l.b16 %v2996
        %v3133 = vunpack.c.l.b16 %v2997
        %v3134 = vunpack.c.l.b16 %v2998
        %v3135 = vunpack.c.l.b16 %v2999
        %v3136 = vunpack.c.l.b16 %v3000
        %v3137 = vunpack.c.l.b16 %v3001
        %v3138 = vunpack.c.l.b16 %v3002
        %v3139 = vunpack.c.l.b16 %v3003
        %v3140 = vunpack.c.l.b16 %v3004
        %v3141 = vunpack.c.l.b16 %v3005
        %v3142 = vunpack.c.l.b16 %v3006
        %v3143 = vunpack.c.l.b16 %v3007
        %v3144 = vunpack.c.l.b16 %v3008
        %v3145 = vunpack.c.l.b16 %v3009
        %v3146 = vunpack.c.l.b16 %v3010
        %v3147 = vunpack.c.l.b16 %v3011
        %v3148 = vunpack.c.l.b16 %v3012
        %v3149 = vunpack.c.l.b16 %v3013
        %v3150 = vunpack.c.l.b16 %v3014
        %v3151 = vunpack.c.l.b16 %v3015
        %v3152 = vunpack.c.l.b16 %v3016
        %v3153 = vunpack.c.l.b16 %v3017
        %v3154 = vunpack.c.l.b16 %v3018
        %v3155 = vunpack.c.l.b16 %v3019
        %v3156 = vunpack.c.l.b16 %v3020
        %v3157 = vunpack.c.l.b16 %v3021
        %v3158 = vunpack.c.l.b16 %v3022
        %v3159 = vunpack.c.l.b16 %v3023
        %v3160 = vunpack.c.l.b16 %v3024
        %v3161 = vunpack.c.l.b16 %v3025
        %v3162 = vunpack.c.l.b16 %v3026
        %v3163 = vunpack.c.l.b16 %v3027
        %v3164 = vunpack.c.l.b16 %v3028
        %v3165 = vunpack.c.l.b16 %v3029
        %v3166 = vunpack.c.l.b16 %v3030
        %v3167 = vunpack.c.l.b16 %v3031
        %v3168 = vunpack.c.l.b16 %v3032
        %v3169 = vunpack.c.l.b16 %v3033
        %v3170 = vunpack.c.l.b16 %v3034
        %v3171 = vunpack.c.l.b16 %v3035
        %v3172 = vunpack.c.l.b16 %v3036
        %v3173 = vunpack.c.l.b16 %v3037
        %v3174 = vunpack.c.l.b16 %v3038
        %v3175 = vunpack.c.l.b16 %v3039
        %v3176 = vunpack.c.l.b16 %v3040
        %v3177 = vunpack.c.l.b16 %v3041
        %v3178 = vunpack.c.l.b16 %v3042
        %v3179 = vunpack.c.l.b16 %v3043
        %v3180 = vunpack.c.l.b16 %v3044
        %v3181 = vunpack.c.l.b16 %v3045
        %v3182 = vunpack.c.l.b16 %v3046
        %v3183 = vunpack.c.l.b16 %v3047
        %v3184 = vunpack.c.l.b16 %v3048
        %v3185 = vunpack.c.l.b16 %v3049
        %v3186 = vunpack.c.l.b16 %v3050
        %v3187 = vunpack.c.l.b16 %v3051
        %v3188 = vunpack.c.l.b16 %v3052
        %v3189 = vunpack.c.l.b16 %v3053
        %v3190 = vunpack.c.l.b16 %v3054
        %v3191 = vunpack.c.l.b16 %v3055
        %v3192 = vunpack.c.l.b16 %v3056
        %v3193 = vpack.c.b16 %v3130, %v3129
        %v3194 = vpack.c.b16 %v3132, %v3131
        %v3195 = vpack.c.b16 %v3134, %v3133
        %v3196 = vpack.c.b16 %v3136, %v3135
        %v3197 = vpack.c.b16 %v3138, %v3137
        %v3198 = vpack.c.b16 %v3140, %v3139
        %v3199 = vpack.c.b16 %v3142, %v3141
        %v3200 = vpack.c.b16 %v3144, %v3143
        %v3201 = vpack.c.b16 %v3146, %v3145
        %v3202 = vpack.c.b16 %v3148, %v3147
        %v3203 = vpack.c.b16 %v3150, %v3149
        %v3204 = vpack.c.b16 %v3152, %v3151
        %v3205 = vpack.c.b16 %v3154, %v3153
        %v3206 = vpack.c.b16 %v3156, %v3155
        %v3207 = vpack.c.b16 %v3158, %v3157
        %v3208 = vpack.c.b16 %v3160, %v3159
        %v3209 = vpack.c.b16 %v3162, %v3161
        %v3210 = vpack.c.b16 %v3164, %v3163
        %v3211 = vpack.c.b16 %v3166, %v3165
        %v3212 = vpack.c.b16 %v3168, %v3167
        %v3213 = vpack.c.b16 %v3170, %v3169
        %v3214 = vpack.c.b16 %v3172, %v3171
        %v3215 = vpack.c.b16 %v3174, %v3173
        %v3216 = vpack.c.b16 %v3176, %v3175
        %v3217 = vpack.c.b16 %v3178, %v3177
        %v3218 = vpack.c.b16 %v3180, %v3179
        %v3219 = vpack.c.b16 %v3182, %v3181
        %v3220 = vpack.c.b16 %v3184, %v3183
        %v3221 = vpack.c.b16 %v3186, %v3185
        %v3222 = vpack.c.b16 %v3188, %v3187
        %v3223 = vpack.c.b16 %v3190, %v3189
        %v3224 = vpack.c.b16 %v3192, %v3191
        %3257 = vmatprep.subr.bf16.mxu0 0
        %3258 = vmatpush1.bf16.msra.mxu0 %v3200
        %3259 = vmatprep.subr.bf16.mxu0 0
        %3260 = vmatpush1.bf16.msra.mxu0 %v3199
        %3261 = vmatprep.subr.bf16.mxu0 0
        %3262 = vmatpush1.bf16.msra.mxu0 %v3198
        %3263 = vmatprep.subr.bf16.mxu0 0
        %3264 = vmatpush1.bf16.msra.mxu0 %v3197
        %3265 = vmatprep.subr.bf16.mxu0 0
        %3266 = vmatpush1.bf16.msra.mxu0 %v3196
        %3267 = vmatprep.subr.bf16.mxu0 0
        %3268 = vmatpush1.bf16.msra.mxu0 %v3195
        %3269 = vmatprep.subr.bf16.mxu0 0
        %3270 = vmatpush1.bf16.msra.mxu0 %v3194
        %3271 = vmatprep.subr.bf16.mxu0 0
        %3272 = vmatpush1.bf16.msra.mxu0 %v3193
        %3273 = vmatprep.subr.bf16.mxu0 0
        %3274 = vmatpush2.bf16.msra.mxu0 %v3208
        %3275 = vmatprep.subr.bf16.mxu0 0
        %3276 = vmatpush2.bf16.msra.mxu0 %v3207
        %3277 = vmatprep.subr.bf16.mxu0 0
        %3278 = vmatpush2.bf16.msra.mxu0 %v3206
        %3279 = vmatprep.subr.bf16.mxu0 0
        %3280 = vmatpush2.bf16.msra.mxu0 %v3205
        %3281 = vmatprep.subr.bf16.mxu0 0
        %3282 = vmatpush2.bf16.msra.mxu0 %v3204
        %3283 = vmatprep.subr.bf16.mxu0 0
        %3284 = vmatpush2.bf16.msra.mxu0 %v3203
        %3285 = vmatprep.subr.bf16.mxu0 0
        %3286 = vmatpush2.bf16.msra.mxu0 %v3202
        %3287 = vmatprep.subr.bf16.mxu0 0
        %3288 = vmatpush2.bf16.msra.mxu0 %v3201
        %3289 = vmatprep.mubr.bf16.mxu0 %v2989
        %3290 = vmatmul.mubr.bf16.gmra.mxu0 %v2988
        %v3291 = vpop.f32.mrf.mxu0
        %v3292 = vadd.f32 %v3063, %v3291
        %v3293 = vpop.f32.mrf.mxu0
        %v3294 = vpop.f32.mrf.mxu0
        %v3295 = vpop.f32.mrf.mxu0
        %3296 = vdwg.mxu0
        %3297 = vmatprep.subr.bf16.mxu0 0
        %3298 = vmatpush1.bf16.msra.mxu0 %v3216
        %3299 = vmatprep.subr.bf16.mxu0 0
        %3300 = vmatpush1.bf16.msra.mxu0 %v3215
        %3301 = vmatprep.subr.bf16.mxu0 0
        %3302 = vmatpush1.bf16.msra.mxu0 %v3214
        %3303 = vmatprep.subr.bf16.mxu0 0
        %3304 = vmatpush1.bf16.msra.mxu0 %v3213
        %3305 = vmatprep.subr.bf16.mxu0 0
        %3306 = vmatpush1.bf16.msra.mxu0 %v3212
        %3307 = vmatprep.subr.bf16.mxu0 0
        %3308 = vmatpush1.bf16.msra.mxu0 %v3211
        %3309 = vmatprep.subr.bf16.mxu0 0
        %3310 = vmatpush1.bf16.msra.mxu0 %v3210
        %3311 = vmatprep.subr.bf16.mxu0 0
        %3312 = vmatpush1.bf16.msra.mxu0 %v3209
        %3313 = vmatprep.subr.bf16.mxu0 0
        %3314 = vmatpush2.bf16.msra.mxu0 %v3224
        %3315 = vmatprep.subr.bf16.mxu0 0
        %3316 = vmatpush2.bf16.msra.mxu0 %v3223
        %3317 = vmatprep.subr.bf16.mxu0 0
        %3318 = vmatpush2.bf16.msra.mxu0 %v3222
        %3319 = vmatprep.subr.bf16.mxu0 0
        %3320 = vmatpush2.bf16.msra.mxu0 %v3221
        %3321 = vmatprep.subr.bf16.mxu0 0
        %3322 = vmatpush2.bf16.msra.mxu0 %v3220
        %3323 = vmatprep.subr.bf16.mxu0 0
        %3324 = vmatpush2.bf16.msra.mxu0 %v3219
        %3325 = vmatprep.subr.bf16.mxu0 0
        %3326 = vmatpush2.bf16.msra.mxu0 %v3218
        %3327 = vmatprep.subr.bf16.mxu0 0
        %3328 = vmatpush2.bf16.msra.mxu0 %v3217
        %3329 = vmatprep.mubr.bf16.mxu0 %v2991
        %3330 = vmatmul.mubr.bf16.gmra.mxu0 %v2990
        %v3331 = vpop.f32.mrf.mxu0
        %v3332 = vadd.f32 %v3292, %v3331
        %v3333 = vpop.f32.mrf.mxu0
        %v3334 = vpop.f32.mrf.mxu0
        %v3335 = vpop.f32.mrf.mxu0
        %3336 = vdwg.mxu0
        %v3337 = vadd.f32 %v3332, %v2652
        %s3338 = scalar_lea.vmem %s14, 1
        %v3339 = vld [vmem:[%s3338] sm:$0x1]
        %s3340 = scalar_lea.vmem %s15, 1
        %v3341 = vld [vmem:[%s3340] sm:$0x1]
        %3342 = vadd.xlane.f32.xlu0 %v3337
        %v3343 = vpop.xlane.xlu0 %3342
        %v3344 = vmul.f32 %v3343, %v645
        %v3345 = vsub.f32 %v3337, %v3344
        %v3346 = vmul.f32 %v3345, %v3345
        %3347 = vadd.xlane.f32.xlu0 %v3346
        %v3348 = vpop.xlane.xlu0 %3347
        %v3349 = vmul.f32 %v3348, %v645
        %v3350 = vadd.f32 %v3349, 1e-12
        %v3351 = vrsqrt.pop %v3350
        %v3352 = vmul.f32 %v3345, %v3351
        %v3354 = vlaneseq
        %v3355 = vshrl.u32 %v3354, 7
        %v3356 = vsub.s32 0, %v3355
        %v3357 = vrot.slane %v3339, %v3356
        %v3359 = vmul.f32 %v3352, %v3357
        %v3361 = vlaneseq
        %v3362 = vshrl.u32 %v3361, 7
        %v3363 = vsub.s32 0, %v3362
        %v3364 = vrot.slane %v3341, %v3363
        %v3366 = vadd.f32 %v3359, %v3364
        %v3367 = vpack.c.bf16 %v3366, %v3366
        %v3368 = vld [vmem:[%s16] sm:$0xf]
        %v3369 = vld [vmem:[%s16 + $0x4] sm:$0xf]
        %v3370 = vld [vmem:[%s16 + $0x8] sm:$0xf]
        %v3371 = vld [vmem:[%s16 + $0xc] sm:$0xf]
        %v3372 = vld [vmem:[%s16 + $0x10] sm:$0xf]
        %v3373 = vld [vmem:[%s16 + $0x14] sm:$0xf]
        %v3374 = vld [vmem:[%s16 + $0x18] sm:$0xf]
        %v3375 = vld [vmem:[%s16 + $0x1c] sm:$0xf]
        %v3376 = vld [vmem:[%s16 + $0x20] sm:$0xf]
        %v3377 = vld [vmem:[%s16 + $0x24] sm:$0xf]
        %v3378 = vld [vmem:[%s16 + $0x28] sm:$0xf]
        %v3379 = vld [vmem:[%s16 + $0x2c] sm:$0xf]
        %v3380 = vld [vmem:[%s16 + $0x30] sm:$0xf]
        %v3381 = vld [vmem:[%s16 + $0x34] sm:$0xf]
        %v3382 = vld [vmem:[%s16 + $0x38] sm:$0xf]
        %v3383 = vld [vmem:[%s16 + $0x3c] sm:$0xf]
        %v3384 = vld [vmem:[%s17] sm:$0x1]
        %v3401 = vunpack.c.l.b16 %v3368
        %v3402 = vunpack.c.l.b16 %v3369
        %v3403 = vunpack.c.l.b16 %v3370
        %v3404 = vunpack.c.l.b16 %v3371
        %v3405 = vunpack.c.l.b16 %v3372
        %v3406 = vunpack.c.l.b16 %v3373
        %v3407 = vunpack.c.l.b16 %v3374
        %v3408 = vunpack.c.l.b16 %v3375
        %v3409 = vunpack.c.l.b16 %v3376
        %v3410 = vunpack.c.l.b16 %v3377
        %v3411 = vunpack.c.l.b16 %v3378
        %v3412 = vunpack.c.l.b16 %v3379
        %v3413 = vunpack.c.l.b16 %v3380
        %v3414 = vunpack.c.l.b16 %v3381
        %v3415 = vunpack.c.l.b16 %v3382
        %v3416 = vunpack.c.l.b16 %v3383
        %v3417 = vpack.c.b16 %v3402, %v3401
        %v3418 = vpack.c.b16 %v3404, %v3403
        %v3419 = vpack.c.b16 %v3406, %v3405
        %v3420 = vpack.c.b16 %v3408, %v3407
        %v3421 = vpack.c.b16 %v3410, %v3409
        %v3422 = vpack.c.b16 %v3412, %v3411
        %v3423 = vpack.c.b16 %v3414, %v3413
        %v3424 = vpack.c.b16 %v3416, %v3415
        %3433 = vmatprep.subr.bf16.mxu0 0
        %3434 = vmatpush1.bf16.msra.mxu0 %v3424
        %3435 = vmatprep.subr.bf16.mxu0 0
        %3436 = vmatpush1.bf16.msra.mxu0 %v3423
        %3437 = vmatprep.subr.bf16.mxu0 0
        %3438 = vmatpush1.bf16.msra.mxu0 %v3422
        %3439 = vmatprep.subr.bf16.mxu0 0
        %3440 = vmatpush1.bf16.msra.mxu0 %v3421
        %3441 = vmatprep.subr.bf16.mxu0 0
        %3442 = vmatpush1.bf16.msra.mxu0 %v3420
        %3443 = vmatprep.subr.bf16.mxu0 0
        %3444 = vmatpush1.bf16.msra.mxu0 %v3419
        %3445 = vmatprep.subr.bf16.mxu0 0
        %3446 = vmatpush1.bf16.msra.mxu0 %v3418
        %3447 = vmatprep.subr.bf16.mxu0 0
        %3448 = vmatpush1.bf16.msra.mxu0 %v3417
        %3449 = vmatprep.subr.bf16.mxu0 0
        %3450 = vmatpush2.bf16.msra.mxu0 0
        %3451 = vmatprep.subr.bf16.mxu0 0
        %3452 = vmatpush2.bf16.msra.mxu0 0
        %3453 = vmatprep.subr.bf16.mxu0 0
        %3454 = vmatpush2.bf16.msra.mxu0 0
        %3455 = vmatprep.subr.bf16.mxu0 0
        %3456 = vmatpush2.bf16.msra.mxu0 0
        %3457 = vmatprep.subr.bf16.mxu0 0
        %3458 = vmatpush2.bf16.msra.mxu0 0
        %3459 = vmatprep.subr.bf16.mxu0 0
        %3460 = vmatpush2.bf16.msra.mxu0 0
        %3461 = vmatprep.subr.bf16.mxu0 0
        %3462 = vmatpush2.bf16.msra.mxu0 0
        %3463 = vmatprep.subr.bf16.mxu0 0
        %3464 = vmatpush2.bf16.msra.mxu0 0
        %3465 = vmatprep.mubr.bf16.mxu0 0
        %3466 = vmatmul.mubr.bf16.gmra.mxu0 %v3367
        %v3467 = vpop.f32.mrf.mxu0
        %v3468 = vadd.f32 %v3384, %v3467
        %v3469 = vpop.f32.mrf.mxu0
        %v3470 = vpop.f32.mrf.mxu0
        %v3471 = vpop.f32.mrf.mxu0
        %3472 = vdwg.mxu0
        %v3473 = vtanh.pop %v3468
        %v3474 = vpack.c.bf16 %v3473, %v3473
        %v3475 = vld [vmem:[%s18] sm:$0xf]
        %v3476 = vld [vmem:[%s18 + $0x4] sm:$0xf]
        %v3477 = vld [vmem:[%s18 + $0x8] sm:$0xf]
        %v3478 = vld [vmem:[%s18 + $0xc] sm:$0xf]
        %v3479 = vld [vmem:[%s18 + $0x10] sm:$0xf]
        %v3480 = vld [vmem:[%s18 + $0x14] sm:$0xf]
        %v3481 = vld [vmem:[%s18 + $0x18] sm:$0xf]
        %v3482 = vld [vmem:[%s18 + $0x1c] sm:$0xf]
        %v3483 = vld [vmem:[%s18 + $0x20] sm:$0xf]
        %v3484 = vld [vmem:[%s18 + $0x24] sm:$0xf]
        %v3485 = vld [vmem:[%s18 + $0x28] sm:$0xf]
        %v3486 = vld [vmem:[%s18 + $0x2c] sm:$0xf]
        %v3487 = vld [vmem:[%s18 + $0x30] sm:$0xf]
        %v3488 = vld [vmem:[%s18 + $0x34] sm:$0xf]
        %v3489 = vld [vmem:[%s18 + $0x38] sm:$0xf]
        %v3490 = vld [vmem:[%s18 + $0x3c] sm:$0xf]
        %v3491 = vld [vmem:[%s19] sm:$0x1]
        %v3508 = vunpack.c.l.b16 %v3475
        %v3509 = vunpack.c.l.b16 %v3476
        %v3510 = vunpack.c.l.b16 %v3477
        %v3511 = vunpack.c.l.b16 %v3478
        %v3512 = vunpack.c.l.b16 %v3479
        %v3513 = vunpack.c.l.b16 %v3480
        %v3514 = vunpack.c.l.b16 %v3481
        %v3515 = vunpack.c.l.b16 %v3482
        %v3516 = vunpack.c.l.b16 %v3483
        %v3517 = vunpack.c.l.b16 %v3484
        %v3518 = vunpack.c.l.b16 %v3485
        %v3519 = vunpack.c.l.b16 %v3486
        %v3520 = vunpack.c.l.b16 %v3487
        %v3521 = vunpack.c.l.b16 %v3488
        %v3522 = vunpack.c.l.b16 %v3489
        %v3523 = vunpack.c.l.b16 %v3490
        %v3524 = vpack.c.b16 %v3509, %v3508
        %v3525 = vpack.c.b16 %v3511, %v3510
        %v3526 = vpack.c.b16 %v3513, %v3512
        %v3527 = vpack.c.b16 %v3515, %v3514
        %v3528 = vpack.c.b16 %v3517, %v3516
        %v3529 = vpack.c.b16 %v3519, %v3518
        %v3530 = vpack.c.b16 %v3521, %v3520
        %v3531 = vpack.c.b16 %v3523, %v3522
        %3540 = vmatprep.subr.bf16.mxu0 0
        %3541 = vmatpush1.bf16.msra.mxu0 %v3531
        %3542 = vmatprep.subr.bf16.mxu0 0
        %3543 = vmatpush1.bf16.msra.mxu0 %v3530
        %3544 = vmatprep.subr.bf16.mxu0 0
        %3545 = vmatpush1.bf16.msra.mxu0 %v3529
        %3546 = vmatprep.subr.bf16.mxu0 0
        %3547 = vmatpush1.bf16.msra.mxu0 %v3528
        %3548 = vmatprep.subr.bf16.mxu0 0
        %3549 = vmatpush1.bf16.msra.mxu0 %v3527
        %3550 = vmatprep.subr.bf16.mxu0 0
        %3551 = vmatpush1.bf16.msra.mxu0 %v3526
        %3552 = vmatprep.subr.bf16.mxu0 0
        %3553 = vmatpush1.bf16.msra.mxu0 %v3525
        %3554 = vmatprep.subr.bf16.mxu0 0
        %3555 = vmatpush1.bf16.msra.mxu0 %v3524
        %3556 = vmatprep.subr.bf16.mxu0 0
        %3557 = vmatpush2.bf16.msra.mxu0 0
        %3558 = vmatprep.subr.bf16.mxu0 0
        %3559 = vmatpush2.bf16.msra.mxu0 0
        %3560 = vmatprep.subr.bf16.mxu0 0
        %3561 = vmatpush2.bf16.msra.mxu0 0
        %3562 = vmatprep.subr.bf16.mxu0 0
        %3563 = vmatpush2.bf16.msra.mxu0 0
        %3564 = vmatprep.subr.bf16.mxu0 0
        %3565 = vmatpush2.bf16.msra.mxu0 0
        %3566 = vmatprep.subr.bf16.mxu0 0
        %3567 = vmatpush2.bf16.msra.mxu0 0
        %3568 = vmatprep.subr.bf16.mxu0 0
        %3569 = vmatpush2.bf16.msra.mxu0 0
        %3570 = vmatprep.subr.bf16.mxu0 0
        %3571 = vmatpush2.bf16.msra.mxu0 0
        %3572 = vmatprep.mubr.bf16.mxu0 0
        %3573 = vmatmul.mubr.bf16.gmra.mxu0 %v3474
        %v3574 = vpop.f32.mrf.mxu0
        %v3575 = vadd.f32 %v3491, %v3574
        %v3576 = vpop.f32.mrf.mxu0
        %v3577 = vpop.f32.mrf.mxu0
        %v3578 = vpop.f32.mrf.mxu0
        %3579 = vdwg.mxu0
        %3580 = vst [vmem:[%s630] sm:$0x1] %v3575
        %s3581 = sand.u32 %s472, 1
        %s3582 = scalar_lea.sflag [#allocation4], %s3581
        %s3583 = sand.u32 %s472, 1
        %s3584 = scalar_lea.vmem [#allocation3], %s3583
        // Predicated region
        $region101: #{bert_class_forward.1} parent=99 // pred_check
          %p3585 = pneg %p482
        $region102: #{bert_class_forward.1} parent=99 // pred_check_branch
          %3587 = sbr.rel (%p3585) target = $region104
        $region103: #{bert_class_forward.1} parent=99 // pred_region
          %s3589 = ssub.s32 16, 16
          %3590 = vsyncadd %s3582, %s3589
          %s3591 = smul.addr %s34, 16
          %s3592 = scalar_lea.hbm %s20, %s3591
          %s3594 = sshll.u32 %s3584, 4
          %s3595 = int_to_ptr.vmem [resolvable:$true] %s3594
          %3597 = dma.vmem_to_hbm [thread:$0]  %s3595, 16, %s3592, %s3582
        $region104: #{bert_class_forward.1} parent=99 // pred_fallthru
          _
      $region100: #{bert_class_forward.1} parent=5 // pred_fallthru
        _
      %p3598 = scmp.le.s32.totalorder 2, %s29
      // Predicated region
      $region105: #{bert_class_forward.1} parent=5 // pred_check
        %p3599 = pneg %p3598
      $region106: #{bert_class_forward.1} parent=5 // pred_check_branch
        %3601 = sbr.rel (%p3599) target = $region108
      $region107: #{bert_class_forward.1} parent=5 // pred_region
        %s3602 = ssub.s32 %s29, 2
        // Predicated region
        $region109: #{bert_class_forward.1} parent=107 // pred_check
          %p3603 = pneg %p488
        $region110: #{bert_class_forward.1} parent=107 // pred_check_branch
          %3605 = sbr.rel (%p3603) target = $region112
        $region111: #{bert_class_forward.1} parent=107 // pred_region
          %s3606 = sand.u32 %s473, 1
          %s3607 = scalar_lea.sflag [#allocation4], %s3606
          %s3608 = sand.u32 %s473, 1
          %s3609 = scalar_lea.vmem [#allocation3], %s3608
          %3610 = dma.done %s3607, 16
        $region112: #{bert_class_forward.1} parent=107 // pred_fallthru
          _
      $region108: #{bert_class_forward.1} parent=5 // pred_fallthru
        _
    $region6: #{bert_class_forward.1} parent=1 // loop_footer
      %s33 = sadd.s32 1, %s29
    $region7: #{bert_class_forward.1} parent=1 // loop_footer_branch
      %28 = sbr.rel target = $region3
    $region8: #{bert_class_forward.1} parent=1 // loop_exit
      _
    %3611 = vsyncpa [#allocation4], 1
    %s3612 = scalar_lea.sflag [#allocation4], 1
    %3613 = vsyncpa %s3612, 1

</llo_original>
